<compile_context>
chip_gen: v7x
topology: tpu7x:2x2x1
jax: 0.10.0
libtpu: 0.0.40
codegen_flags: <defaults>
</compile_context>

<pallas_src>
import functools
import math

import jax
import jax.numpy as jnp
from jax.experimental import pallas as pl
from jax.experimental.pallas import tpu as pltpu

PAD = 0                       # Constants.PAD
LN_EPS = 1e-5                 # nn.LayerNorm default
NEG_INF = -1e9                # large negative instead of -inf (no NaN on all-pad rows)
MXU_DTYPE = jnp.bfloat16      # MXU operand dtype (f32 accumulate). jnp.float32 = exact parity.
TARGET_ROWS = 512             # aim for ~TB*L rows per grid step (MXU M-dimension)


# ----------------------------- shared attention + FFN tail -----------------------------

def _attn_ffn_tail(q, k, v, xres, bias, qnp,
                   wo_ref, bo_ref, ln1g_ref, ln1b_ref,
                   w1_ref, b1_ref, w2_ref, b2_ref, ln2g_ref, ln2b_ref,
                   o_ref, heads_ref, *, n_head, d_k, d_v, scale, mxu_dtype):
    TB, Lq, Dm = o_ref.shape
    Lk = bias.shape[-1]
    Nq = n_head * d_k
    Nv = n_head * d_v

    q3 = q.reshape(TB, Lq, Nq)
    k3 = k.reshape(TB, Lk, Nq)
    v3 = v.reshape(TB, Lk, Nv)

    # Per-head attention, unrolled (n_head small & static), batched over TB inside.
    # NOTE: if a bundle dump shows a per-head vxpose from the 'bkd' contraction,
    # hoist a single K transpose out of this loop (only 2 XLUs on v6e/v7x).
    for h in range(n_head):
        qh = q3[:, :, h * d_k:(h + 1) * d_k].astype(mxu_dtype)
        kh = k3[:, :, h * d_k:(h + 1) * d_k].astype(mxu_dtype)
        s = jnp.einsum('bqd,bkd->bqk', qh, kh,
                       preferred_element_type=jnp.float32) * scale
        s = s + bias                                  # additive key-pad bias (bcast over Lq)
        s = s - jnp.max(s, axis=-1, keepdims=True)
        e = jnp.exp(s)
        # approx reciprocal uses the EUP slot; set approx=False for bit-parity with torch.
        p = e * pl.reciprocal(jnp.sum(e, axis=-1, keepdims=True), approx=True)
        vh = v3[:, :, h * d_v:(h + 1) * d_v].astype(mxu_dtype)
        oh = jnp.einsum('bqk,bkd->bqd', p.astype(mxu_dtype), vh,
                        preferred_element_type=jnp.float32)
        heads_ref[:, h * d_v:(h + 1) * d_v] = oh.reshape(TB * Lq, d_v)

    # Single output projection over ALL heads: one (TB*Lq, Nv) x (Nv, Dm) matmul.
    y = (jnp.dot(heads_ref[...].astype(mxu_dtype), wo_ref[...],
                 preferred_element_type=jnp.float32)
         + bo_ref[...] + xres)                        # bias + residual (query side)

    qnp2 = qnp.reshape(TB * Lq, 1)

    # LayerNorm 1 + non-pad mask
    mu = jnp.mean(y, axis=-1, keepdims=True)
    var = jnp.mean((y - mu) ** 2, axis=-1, keepdims=True)
    y = (y - mu) * jax.lax.rsqrt(var + LN_EPS) * ln1g_ref[...] + ln1b_ref[...]
    y = y * qnp2

    # Position-wise FFN + residual + LayerNorm 2 + non-pad mask
    hid = jnp.maximum(
        jnp.dot(y.astype(mxu_dtype), w1_ref[...],
                preferred_element_type=jnp.float32) + b1_ref[...], 0.0)
    z = jnp.dot(hid.astype(mxu_dtype), w2_ref[...],
                preferred_element_type=jnp.float32) + b2_ref[...] + y
    mu = jnp.mean(z, axis=-1, keepdims=True)
    var = jnp.mean((z - mu) ** 2, axis=-1, keepdims=True)
    z = (z - mu) * jax.lax.rsqrt(var + LN_EPS) * ln2g_ref[...] + ln2b_ref[...]
    o_ref[...] = (z * qnp2).reshape(TB, Lq, Dm)


# ----------------------------- fused half-layer kernels -----------------------------

def _self_layer_kernel(x_ref, bias_ref, qnp_ref, wqkv_ref, bqkv_ref,
                       wo_ref, bo_ref, ln1g_ref, ln1b_ref,
                       w1_ref, b1_ref, w2_ref, b2_ref, ln2g_ref, ln2b_ref,
                       o_ref, heads_ref, *, n_head, d_k, d_v, scale, mxu_dtype):
    x = x_ref[...]                                    # (TB, L, Dm)
    TB, L, Dm = x.shape
    Nq = n_head * d_k
    x2 = x.reshape(TB * L, Dm)
    # Fused Q+K+V projection: single matmul over the shared input.
    qkv = jnp.dot(x2.astype(mxu_dtype), wqkv_ref[...],
                  preferred_element_type=jnp.float32) + bqkv_ref[...]
    q = qkv[:, :Nq]
    k = qkv[:, Nq:2 * Nq]
    v = qkv[:, 2 * Nq:]
    _attn_ffn_tail(q, k, v, x2, bias_ref[...], qnp_ref[...],
                   wo_ref, bo_ref, ln1g_ref, ln1b_ref,
                   w1_ref, b1_ref, w2_ref, b2_ref, ln2g_ref, ln2b_ref,
                   o_ref, heads_ref, n_head=n_head, d_k=d_k, d_v=d_v,
                   scale=scale, mxu_dtype=mxu_dtype)


def _cross_layer_kernel(xq_ref, xkv_ref, bias_ref, qnp_ref,
                        wq_ref, bq_ref, wkv_ref, bkv_ref,
                        wo_ref, bo_ref, ln1g_ref, ln1b_ref,
                        w1_ref, b1_ref, w2_ref, b2_ref, ln2g_ref, ln2b_ref,
                        o_ref, heads_ref, *, n_head, d_k, d_v, scale, mxu_dtype):
    xq = xq_ref[...]                                  # (TB, Lq, Dm)  query side / residual
    xkv = xkv_ref[...]                                # (TB, Lk, Dm)  key/value side
    TB, Lq, Dm = xq.shape
    Lk = xkv.shape[1]
    Nk = n_head * d_k
    xq2 = xq.reshape(TB * Lq, Dm)
    xkv2 = xkv.reshape(TB * Lk, Dm)
    q = jnp.dot(xq2.astype(mxu_dtype), wq_ref[...],
                preferred_element_type=jnp.float32) + bq_ref[...]
    kv = jnp.dot(xkv2.astype(mxu_dtype), wkv_ref[...],
                 preferred_element_type=jnp.float32) + bkv_ref[...]
    k = kv[:, :Nk]
    v = kv[:, Nk:]
    _attn_ffn_tail(q, k, v, xq2, bias_ref[...], qnp_ref[...],
                   wo_ref, bo_ref, ln1g_ref, ln1b_ref,
                   w1_ref, b1_ref, w2_ref, b2_ref, ln2g_ref, ln2b_ref,
                   o_ref, heads_ref, n_head=n_head, d_k=d_k, d_v=d_v,
                   scale=scale, mxu_dtype=mxu_dtype)


# ----------------------------- pallas_call wrapper -----------------------------

def _pick_tb(B, Lq, target_rows=TARGET_ROWS):
    """Largest divisor TB of B with TB*Lq <= target_rows, preferring >= 2 grid steps."""
    divs = [d for d in range(1, B + 1) if B % d == 0 and d * Lq <= target_rows]
    if not divs:
        return 1
    multi = [d for d in divs if B // d >= 2]          # keep pipeline / v7x megacore fed
    return max(multi) if multi else max(divs)


def fused_layer_pallas(xq, xkv, key_bias, q_np, pa, pf, cfg):
    """Fused MHA + FFN half-layer.  xkv=None => self-attention (fused QKV projection)."""
    n_head, d_k, d_v = cfg
    self_attn = xkv is None
    B, Lq, Dm = xq.shape
    Lk = Lq if self_attn else xkv.shape[1]
    Di = pf['w1'].shape[1]
    Nq = n_head * d_k
    Nv = n_head * d_v
    Nkv = Nq + Nv
    Nqkv = Nq + Nkv

    TB = _pick_tb(B, Lq)
    grid = (B // TB,)
    mxu = MXU_DTYPE

    kern_kwargs = dict(n_head=n_head, d_k=d_k, d_v=d_v,
                       scale=1.0 / math.sqrt(d_k), mxu_dtype=mxu)

    def act(shape):                     # batched activation block: TB samples / grid step
        return pl.BlockSpec(shape, lambda b: (b,) + (0,) * (len(shape) - 1))

    def wsp(shape):                     # weight: constant block -> stays resident in VMEM
        return pl.BlockSpec(shape, lambda b: (0,) * len(shape))

    tail_specs = [wsp((Nv, Dm)), wsp((1, Dm)),        # wo, bo
                  wsp((1, Dm)), wsp((1, Dm)),         # ln1 gamma, beta
                  wsp((Dm, Di)), wsp((1, Di)),        # w1, b1
                  wsp((Di, Dm)), wsp((1, Dm)),        # w2, b2
                  wsp((1, Dm)), wsp((1, Dm))]         # ln2 gamma, beta
    tail_args = (pa['wo'].astype(mxu), pa['bo'].reshape(1, Dm),
                 pa['ln_g'].reshape(1, Dm), pa['ln_b'].reshape(1, Dm),
                 pf['w1'].astype(mxu), pf['b1'].reshape(1, Di),
                 pf['w2'].astype(mxu), pf['b2'].reshape(1, Dm),
                 pf['ln_g'].reshape(1, Dm), pf['ln_b'].reshape(1, Dm))

    if self_attn:
        kern = functools.partial(_self_layer_kernel, **kern_kwargs)
        in_specs = ([act((TB, Lq, Dm)), act((TB, 1, Lk)), act((TB, Lq, 1)),
                     wsp((Dm, Nqkv)), wsp((1, Nqkv))] + tail_specs)
        args = (xq, key_bias, q_np,
                pa['wqkv'].astype(mxu), pa['bqkv'].reshape(1, Nqkv)) + tail_args
    else:
        kern = functools.partial(_cross_layer_kernel, **kern_kwargs)
        in_specs = ([act((TB, Lq, Dm)), act((TB, Lk, Dm)),
                     act((TB, 1, Lk)), act((TB, Lq, 1)),
                     wsp((Dm, Nq)), wsp((1, Nq)),
                     wsp((Dm, Nkv)), wsp((1, Nkv))] + tail_specs)
        args = (xq, xkv, key_bias, q_np,
                pa['wq'].astype(mxu), pa['bq'].reshape(1, Nq),
                pa['wkv'].astype(mxu), pa['bkv'].reshape(1, Nkv)) + tail_args

    # Rough VMEM budget: (double-buffered) weights + activation blocks + scores/scratch.
    w_itm = 2 if mxu == jnp.bfloat16 else 4
    w_bytes = (Dm * Nqkv + Nv * Dm + 2 * Dm * Di) * w_itm
    act_bytes = 4 * (2 * (2 * TB * Lq * Dm + TB * Lk * Dm + TB * Lq + TB * Lk)
                     + TB * Lq * (Nv + 2 * Lk) + TB * Lq * Di)
    est = 2 * w_bytes + act_bytes
    cp = dict(dimension_semantics=("parallel",))
    if est > 32 * 1024 * 1024:
        cp["vmem_limit_bytes"] = int(min(2 * est, 120 * 1024 * 1024))
        # TODO(synk): on v7x (64 MiB VMEM) very large configs also want single-buffered
        #             weights / an attention-vs-FFN kernel split.

    return pl.pallas_call(
        kern,
        out_shape=jax.ShapeDtypeStruct((B, Lq, Dm), jnp.float32),
        grid=grid,
        in_specs=in_specs,
        out_specs=act((TB, Lq, Dm)),
        scratch_shapes=[pltpu.VMEM((TB * Lq, Nv), jnp.float32)],   # concatenated head outputs
        compiler_params=pltpu.CompilerParams(**cp),
    )(*args)


# ----------------------------- model glue (plain JAX) -----------------------------

def key_pad_bias(seq_k):
    """Additive attention bias per key: NEG_INF where key is PAD, else 0.  (B, 1, Lk)."""
    return jnp.where(seq_k == PAD, NEG_INF, 0.0).astype(jnp.float32)[:, None, :]


def non_pad_mask(seq):
    """get_non_pad_mask: (B, L, 1) float."""
    return (seq != PAD).astype(jnp.float32)[..., None]


def graph_encoder_forward(params, g1_embs, g2_embs, g1_nids, g2_nids, cfg):
    B = g1_embs.shape[0]
    L1, L2 = g1_embs.shape[1], g2_embs.shape[1]
    np1, np2 = non_pad_mask(g1_nids), non_pad_mask(g2_nids)
    b1, b2 = key_pad_bias(g1_nids), key_pad_bias(g2_nids)

    # g1_merge / g2_merge are accumulated in the torch forward but only feed
    # _combine_embeddings (never called in forward), so they are omitted here.
    if L1 == L2:
        # Stack the two graphs along batch -> one pallas_call per layer, grid over 2B.
        x0 = jnp.concatenate([g1_embs, g2_embs], axis=0)        # rows [0:B]=g1, [B:2B]=g2
        x0_swap = jnp.concatenate([g2_embs, g1_embs], axis=0)
        np_s = jnp.concatenate([np1, np2], axis=0)
        bias_self = jnp.concatenate([b1, b2], axis=0)
        bias_cross = jnp.concatenate([b2, b1], axis=0)          # g1 queries attend g2 keys
        x = x0
        for i, lp in enumerate(params['layers']):
            if i % 2 == 0:
                # cross layers always consume the ORIGINAL embeddings (per torch forward)
                x = fused_layer_pallas(x0, x0_swap, bias_cross, np_s,
                                       lp['attn'], lp['ffn'], cfg)
            else:
                x = fused_layer_pallas(x, None, bias_self, np_s,
                                       lp['attn'], lp['ffn'], cfg)
        return x[:B], x[B:]

    # Fallback: graphs of different lengths cannot be batch-stacked.
    g1_out, g2_out = g1_embs, g2_embs
    for i, lp in enumerate(params['layers']):
        if i % 2 == 0:
            g1_out = fused_layer_pallas(g1_embs, g2_embs, b2, np1, lp['attn'], lp['ffn'], cfg)
            g2_out = fused_layer_pallas(g2_embs, g1_embs, b1, np2, lp['attn'], lp['ffn'], cfg)
        else:
            g1_out = fused_layer_pallas(g1_out, None, b1, np1, lp['attn'], lp['ffn'], cfg)
            g2_out = fused_layer_pallas(g2_out, None, b2, np2, lp['attn'], lp['ffn'], cfg)
    return g1_out, g2_out


# ----------------------------- deterministic param init -----------------------------

def _init_linear(key, din, dout):
    k1, k2 = jax.random.split(key)
    w = jax.random.normal(k1, (din, dout), jnp.float32) / math.sqrt(din)
    b = jax.random.normal(k2, (dout,), jnp.float32) * 0.01
    return w, b


def init_layer(key, d_model, d_inner, n_head, d_k, d_v):
    ks = jax.random.split(key, 6)
    wq, bq = _init_linear(ks[0], d_model, n_head * d_k)
    wk, bk = _init_linear(ks[1], d_model, n_head * d_k)
    wv, bv = _init_linear(ks[2], d_model, n_head * d_v)
    wo, bo = _init_linear(ks[3], n_head * d_v, d_model)
    w1, b1 = _init_linear(ks[4], d_model, d_inner)
    w2, b2 = _init_linear(ks[5], d_inner, d_model)
    attn = dict(wq=wq, bq=bq,
                wkv=jnp.concatenate([wk, wv], axis=1),            # fused K/V (cross layers)
                bkv=jnp.concatenate([bk, bv], axis=0),
                wqkv=jnp.concatenate([wq, wk, wv], axis=1),       # fused Q/K/V (intra layers)
                bqkv=jnp.concatenate([bq, bk, bv], axis=0),
                wo=wo, bo=bo,
                ln_g=jnp.ones((d_model,), jnp.float32),
                ln_b=jnp.zeros((d_model,), jnp.float32))
    ffn = dict(w1=w1, b1=b1, w2=w2, b2=b2,
               ln_g=jnp.ones((d_model,), jnp.float32),
               ln_b=jnp.zeros((d_model,), jnp.float32))
    return dict(attn=attn, ffn=ffn)


def init_graph_encoder(key, n_layers, n_head, d_k, d_v, d_model, d_inner):
    keys = jax.random.split(key, 2 * n_layers + 1)
    layers = [init_layer(keys[i], d_model, d_inner, n_head, d_k, d_v)
              for i in range(2 * n_layers)]
    # MLP + fusion weights exist in __init__ but are unused by forward().
    mlp_w, mlp_b = _init_linear(keys[-1], d_model, d_model)
    return dict(layers=layers, mlp_w=mlp_w, mlp_b=mlp_b,
                weights=jnp.ones((1 + 2 * n_layers,), jnp.float32))


# ----------------------------- main -----------------------------

if __name__ == "__main__":
    n_layers, n_head, d_k, d_v, d_model, d_inner = 1, 2, 16, 16, 32, 64
    B, L = 2, 8
    cfg = (n_head, d_k, d_v)

    key = jax.random.PRNGKey(0)
    k_p, k_e1, k_e2, k_n1, k_n2 = jax.random.split(key, 5)

    params = init_graph_encoder(k_p, n_layers, n_head, d_k, d_v, d_model, d_inner)

    g1_embs = jax.random.normal(k_e1, (B, L, d_model), jnp.float32)
    g2_embs = jax.random.normal(k_e2, (B, L, d_model), jnp.float32)
    # node ids with PAD (=0) tails to exercise the masks; every row has non-pad tokens
    g1_nids = jax.random.randint(k_n1, (B, L), 1, 20).at[:, L - 2:].set(PAD)
    g2_nids = jax.random.randint(k_n2, (B, L), 1, 20).at[:, L - 3:].set(PAD)

    fwd = jax.jit(functools.partial(graph_encoder_forward, cfg=cfg))
    g1_out, g2_out = fwd(params, g1_embs, g2_embs, g1_nids, g2_nids)
    jax.block_until_ready((g1_out, g2_out))

    assert g1_out.shape == (B, L, d_model) and g2_out.shape == (B, L, d_model)
    assert bool(jnp.all(jnp.isfinite(g1_out))) and bool(jnp.all(jnp.isfinite(g2_out)))
    print("KERNEL_OK")
</pallas_src>

<mosaic_0001>
module attributes {stable_mosaic.version = 11 : i64} {
  func.func @_cross_layer_kernel(%arg0: i32, %arg1: memref<2x8x32xf32, #tpu.memory_space<vmem>>, %arg2: memref<2x8x32xf32, #tpu.memory_space<vmem>>, %arg3: memref<2x1x8xf32, #tpu.memory_space<vmem>>, %arg4: memref<2x8x1xf32, #tpu.memory_space<vmem>>, %arg5: memref<32x32xbf16, #tpu.memory_space<vmem>>, %arg6: memref<1x32xf32, #tpu.memory_space<vmem>>, %arg7: memref<32x64xbf16, #tpu.memory_space<vmem>>, %arg8: memref<1x64xf32, #tpu.memory_space<vmem>>, %arg9: memref<32x32xbf16, #tpu.memory_space<vmem>>, %arg10: memref<1x32xf32, #tpu.memory_space<vmem>>, %arg11: memref<1x32xf32, #tpu.memory_space<vmem>>, %arg12: memref<1x32xf32, #tpu.memory_space<vmem>>, %arg13: memref<32x64xbf16, #tpu.memory_space<vmem>>, %arg14: memref<1x64xf32, #tpu.memory_space<vmem>>, %arg15: memref<64x32xbf16, #tpu.memory_space<vmem>>, %arg16: memref<1x32xf32, #tpu.memory_space<vmem>>, %arg17: memref<1x32xf32, #tpu.memory_space<vmem>>, %arg18: memref<1x32xf32, #tpu.memory_space<vmem>>, %arg19: memref<2x8x32xf32, #tpu.memory_space<vmem>>, %arg20: memref<16x32xf32, #tpu.memory_space<vmem>>) attributes {dimension_semantics = [#tpu.dimension_semantics<parallel>], iteration_bounds = array<i64: 2>, scalar_prefetch = 0 : i64, scratch_operands = 1 : i64, tpu.core_type = #tpu.core_type<tc>, window_params = [{transform_indices = @transform_0, window_bounds = array<i64: 2, 8, 32>}, {transform_indices = @transform_1, window_bounds = array<i64: 2, 8, 32>}, {transform_indices = @transform_2, window_bounds = array<i64: 2, 1, 8>}, {transform_indices = @transform_3, window_bounds = array<i64: 2, 8, 1>}, {pipeline_mode = #tpu.pipeline_mode<synchronous>, transform_indices = @transform_4, window_bounds = array<i64: 32, 32>}, {pipeline_mode = #tpu.pipeline_mode<synchronous>, transform_indices = @transform_5, window_bounds = array<i64: 1, 32>}, {pipeline_mode = #tpu.pipeline_mode<synchronous>, transform_indices = @transform_6, window_bounds = array<i64: 32, 64>}, {pipeline_mode = #tpu.pipeline_mode<synchronous>, transform_indices = @transform_7, window_bounds = array<i64: 1, 64>}, {pipeline_mode = #tpu.pipeline_mode<synchronous>, transform_indices = @transform_8, window_bounds = array<i64: 32, 32>}, {pipeline_mode = #tpu.pipeline_mode<synchronous>, transform_indices = @transform_9, window_bounds = array<i64: 1, 32>}, {pipeline_mode = #tpu.pipeline_mode<synchronous>, transform_indices = @transform_10, window_bounds = array<i64: 1, 32>}, {pipeline_mode = #tpu.pipeline_mode<synchronous>, transform_indices = @transform_11, window_bounds = array<i64: 1, 32>}, {pipeline_mode = #tpu.pipeline_mode<synchronous>, transform_indices = @transform_12, window_bounds = array<i64: 32, 64>}, {pipeline_mode = #tpu.pipeline_mode<synchronous>, transform_indices = @transform_13, window_bounds = array<i64: 1, 64>}, {pipeline_mode = #tpu.pipeline_mode<synchronous>, transform_indices = @transform_14, window_bounds = array<i64: 64, 32>}, {pipeline_mode = #tpu.pipeline_mode<synchronous>, transform_indices = @transform_15, window_bounds = array<i64: 1, 32>}, {pipeline_mode = #tpu.pipeline_mode<synchronous>, transform_indices = @transform_16, window_bounds = array<i64: 1, 32>}, {pipeline_mode = #tpu.pipeline_mode<synchronous>, transform_indices = @transform_17, window_bounds = array<i64: 1, 32>}, {transform_indices = @transform_18, window_bounds = array<i64: 2, 8, 32>}]} {
    %c0 = arith.constant 0 : index
    %c0_0 = arith.constant 0 : index
    %c0_1 = arith.constant 0 : index
    %0 = vector.load %arg1[%c0, %c0_0, %c0_1] : memref<2x8x32xf32, #tpu.memory_space<vmem>>, vector<2x8x32xf32>
    %c0_2 = arith.constant 0 : index
    %c0_3 = arith.constant 0 : index
    %c0_4 = arith.constant 0 : index
    %1 = vector.load %arg2[%c0_2, %c0_3, %c0_4] : memref<2x8x32xf32, #tpu.memory_space<vmem>>, vector<2x8x32xf32>
    %2 = vector.shape_cast %0 : vector<2x8x32xf32> to vector<16x32xf32>
    %3 = vector.shape_cast %1 : vector<2x8x32xf32> to vector<16x32xf32>
    %4 = arith.truncf %2 : vector<16x32xf32> to vector<16x32xbf16>
    %c0_5 = arith.constant 0 : index
    %c0_6 = arith.constant 0 : index
    %5 = vector.load %arg5[%c0_5, %c0_6] : memref<32x32xbf16, #tpu.memory_space<vmem>>, vector<32x32xbf16>
    %cst = arith.constant dense<0.000000e+00> : vector<16x32xf32>
    %6 = tpu.matmul %4, %5, %cst {dimension_numbers = #tpu.dot_dimension_numbers<[1], [0], [0], [1], [0, 0, 1, 1], [], []>} : vector<16x32xbf16>, vector<32x32xbf16>, vector<16x32xf32> -> vector<16x32xf32>
    %c0_7 = arith.constant 0 : index
    %c0_8 = arith.constant 0 : index
    %7 = vector.load %arg6[%c0_7, %c0_8] : memref<1x32xf32, #tpu.memory_space<vmem>>, vector<1x32xf32>
    %8 = vector.broadcast %7 : vector<1x32xf32> to vector<16x32xf32>
    %9 = arith.addf %6, %8 : vector<16x32xf32>
    %10 = arith.truncf %3 : vector<16x32xf32> to vector<16x32xbf16>
    %c0_9 = arith.constant 0 : index
    %c0_10 = arith.constant 0 : index
    %11 = vector.load %arg7[%c0_9, %c0_10] : memref<32x64xbf16, #tpu.memory_space<vmem>>, vector<32x64xbf16>
    %cst_11 = arith.constant dense<0.000000e+00> : vector<16x64xf32>
    %12 = tpu.matmul %10, %11, %cst_11 {dimension_numbers = #tpu.dot_dimension_numbers<[1], [0], [0], [1], [0, 0, 1, 1], [], []>} : vector<16x32xbf16>, vector<32x64xbf16>, vector<16x64xf32> -> vector<16x64xf32>
    %c0_12 = arith.constant 0 : index
    %c0_13 = arith.constant 0 : index
    %13 = vector.load %arg8[%c0_12, %c0_13] : memref<1x64xf32, #tpu.memory_space<vmem>>, vector<1x64xf32>
    %14 = vector.broadcast %13 : vector<1x64xf32> to vector<16x64xf32>
    %15 = arith.addf %12, %14 : vector<16x64xf32>
    %16 = vector.extract_strided_slice %15 {offsets = [0, 0], sizes = [16, 32], strides = [1, 1]} : vector<16x64xf32> to vector<16x32xf32>
    %17 = vector.extract_strided_slice %15 {offsets = [0, 32], sizes = [16, 32], strides = [1, 1]} : vector<16x64xf32> to vector<16x32xf32>
    %c0_14 = arith.constant 0 : index
    %c0_15 = arith.constant 0 : index
    %c0_16 = arith.constant 0 : index
    %18 = vector.load %arg3[%c0_14, %c0_15, %c0_16] : memref<2x1x8xf32, #tpu.memory_space<vmem>>, vector<2x1x8xf32>
    %c0_17 = arith.constant 0 : index
    %c0_18 = arith.constant 0 : index
    %c0_19 = arith.constant 0 : index
    %19 = vector.load %arg4[%c0_17, %c0_18, %c0_19] : memref<2x8x1xf32, #tpu.memory_space<vmem>>, vector<2x8x1xf32>
    %20 = vector.shape_cast %9 : vector<16x32xf32> to vector<2x8x32xf32>
    %21 = vector.shape_cast %16 : vector<16x32xf32> to vector<2x8x32xf32>
    %22 = vector.shape_cast %17 : vector<16x32xf32> to vector<2x8x32xf32>
    %23 = vector.extract_strided_slice %20 {offsets = [0, 0, 0], sizes = [2, 8, 16], strides = [1, 1, 1]} : vector<2x8x32xf32> to vector<2x8x16xf32>
    %24 = arith.truncf %23 : vector<2x8x16xf32> to vector<2x8x16xbf16>
    %25 = vector.extract_strided_slice %21 {offsets = [0, 0, 0], sizes = [2, 8, 16], strides = [1, 1, 1]} : vector<2x8x32xf32> to vector<2x8x16xf32>
    %26 = arith.truncf %25 : vector<2x8x16xf32> to vector<2x8x16xbf16>
    "tpu.trace_start"() <{level = 10 : i32, message = "bqd,bkd->bqk"}> : () -> ()
    %cst_20 = arith.constant dense<0.000000e+00> : vector<2x8x8xf32>
    %27 = tpu.matmul %24, %26, %cst_20 {dimension_numbers = #tpu.dot_dimension_numbers<[2], [2], [1], [1], [0, 0, 0, 1, 1, 1], [0], [0]>} : vector<2x8x16xbf16>, vector<2x8x16xbf16>, vector<2x8x8xf32> -> vector<2x8x8xf32>
    "tpu.trace_stop"() : () -> ()
    %cst_21 = arith.constant 2.500000e-01 : f32
    %28 = vector.broadcast %cst_21 : f32 to vector<2x8x8xf32>
    %29 = arith.mulf %27, %28 : vector<2x8x8xf32>
    %30 = vector.broadcast %18 : vector<2x1x8xf32> to vector<2x8x8xf32>
    %31 = arith.addf %29, %30 : vector<2x8x8xf32>
    %cst_22 = arith.constant dense<0xFF800000> : vector<2x8xf32>
    %32 = vector.multi_reduction <maximumf>, %31, %cst_22 [2] : vector<2x8x8xf32> to vector<2x8xf32>
    %33 = vector.shape_cast %32 : vector<2x8xf32> to vector<2x8x1xf32>
    %34 = vector.broadcast %33 : vector<2x8x1xf32> to vector<2x8x8xf32>
    %35 = arith.subf %31, %34 : vector<2x8x8xf32>
    %36 = math.exp %35 : vector<2x8x8xf32>
    %cst_23 = arith.constant dense<0.000000e+00> : vector<2x8xf32>
    %37 = vector.multi_reduction <add>, %36, %cst_23 [2] : vector<2x8x8xf32> to vector<2x8xf32>
    %38 = vector.shape_cast %37 : vector<2x8xf32> to vector<2x8x1xf32>
    %39 = tpu.reciprocal %38 {approx = true} : vector<2x8x1xf32> -> vector<2x8x1xf32>
    %40 = vector.broadcast %39 : vector<2x8x1xf32> to vector<2x8x8xf32>
    %41 = arith.mulf %36, %40 : vector<2x8x8xf32>
    %42 = vector.extract_strided_slice %22 {offsets = [0, 0, 0], sizes = [2, 8, 16], strides = [1, 1, 1]} : vector<2x8x32xf32> to vector<2x8x16xf32>
    %43 = arith.truncf %42 : vector<2x8x16xf32> to vector<2x8x16xbf16>
    %44 = arith.truncf %41 : vector<2x8x8xf32> to vector<2x8x8xbf16>
    "tpu.trace_start"() <{level = 10 : i32, message = "bqk,bkd->bqd"}> : () -> ()
    %cst_24 = arith.constant dense<0.000000e+00> : vector<2x8x16xf32>
    %45 = tpu.matmul %44, %43, %cst_24 {dimension_numbers = #tpu.dot_dimension_numbers<[2], [1], [1], [2], [0, 0, 0, 1, 1, 2], [0], [0]>} : vector<2x8x8xbf16>, vector<2x8x16xbf16>, vector<2x8x16xf32> -> vector<2x8x16xf32>
    "tpu.trace_stop"() : () -> ()
    %46 = vector.shape_cast %45 : vector<2x8x16xf32> to vector<16x16xf32>
    %c0_25 = arith.constant 0 : index
    %c0_26 = arith.constant 0 : index
    %47 = vector.load %arg20[%c0_25, %c0_26] : memref<16x32xf32, #tpu.memory_space<vmem>>, vector<16x16xf32>
    tpu.vector_store %arg20[%c0_25, %c0_26], %46 {strides = array<i32>} : memref<16x32xf32, #tpu.memory_space<vmem>>, vector<16x16xf32>,
    %48 = vector.extract_strided_slice %20 {offsets = [0, 0, 16], sizes = [2, 8, 16], strides = [1, 1, 1]} : vector<2x8x32xf32> to vector<2x8x16xf32>
    %49 = arith.truncf %48 : vector<2x8x16xf32> to vector<2x8x16xbf16>
    %50 = vector.extract_strided_slice %21 {offsets = [0, 0, 16], sizes = [2, 8, 16], strides = [1, 1, 1]} : vector<2x8x32xf32> to vector<2x8x16xf32>
    %51 = arith.truncf %50 : vector<2x8x16xf32> to vector<2x8x16xbf16>
    "tpu.trace_start"() <{level = 10 : i32, message = "bqd,bkd->bqk"}> : () -> ()
    %cst_27 = arith.constant dense<0.000000e+00> : vector<2x8x8xf32>
    %52 = tpu.matmul %49, %51, %cst_27 {dimension_numbers = #tpu.dot_dimension_numbers<[2], [2], [1], [1], [0, 0, 0, 1, 1, 1], [0], [0]>} : vector<2x8x16xbf16>, vector<2x8x16xbf16>, vector<2x8x8xf32> -> vector<2x8x8xf32>
    "tpu.trace_stop"() : () -> ()
    %cst_28 = arith.constant 2.500000e-01 : f32
    %53 = vector.broadcast %cst_28 : f32 to vector<2x8x8xf32>
    %54 = arith.mulf %52, %53 : vector<2x8x8xf32>
    %55 = vector.broadcast %18 : vector<2x1x8xf32> to vector<2x8x8xf32>
    %56 = arith.addf %54, %55 : vector<2x8x8xf32>
    %cst_29 = arith.constant dense<0xFF800000> : vector<2x8xf32>
    %57 = vector.multi_reduction <maximumf>, %56, %cst_29 [2] : vector<2x8x8xf32> to vector<2x8xf32>
    %58 = vector.shape_cast %57 : vector<2x8xf32> to vector<2x8x1xf32>
    %59 = vector.broadcast %58 : vector<2x8x1xf32> to vector<2x8x8xf32>
    %60 = arith.subf %56, %59 : vector<2x8x8xf32>
    %61 = math.exp %60 : vector<2x8x8xf32>
    %cst_30 = arith.constant dense<0.000000e+00> : vector<2x8xf32>
    %62 = vector.multi_reduction <add>, %61, %cst_30 [2] : vector<2x8x8xf32> to vector<2x8xf32>
    %63 = vector.shape_cast %62 : vector<2x8xf32> to vector<2x8x1xf32>
    %64 = tpu.reciprocal %63 {approx = true} : vector<2x8x1xf32> -> vector<2x8x1xf32>
    %65 = vector.broadcast %64 : vector<2x8x1xf32> to vector<2x8x8xf32>
    %66 = arith.mulf %61, %65 : vector<2x8x8xf32>
    %67 = vector.extract_strided_slice %22 {offsets = [0, 0, 16], sizes = [2, 8, 16], strides = [1, 1, 1]} : vector<2x8x32xf32> to vector<2x8x16xf32>
    %68 = arith.truncf %67 : vector<2x8x16xf32> to vector<2x8x16xbf16>
    %69 = arith.truncf %66 : vector<2x8x8xf32> to vector<2x8x8xbf16>
    "tpu.trace_start"() <{level = 10 : i32, message = "bqk,bkd->bqd"}> : () -> ()
    %cst_31 = arith.constant dense<0.000000e+00> : vector<2x8x16xf32>
    %70 = tpu.matmul %69, %68, %cst_31 {dimension_numbers = #tpu.dot_dimension_numbers<[2], [1], [1], [2], [0, 0, 0, 1, 1, 2], [0], [0]>} : vector<2x8x8xbf16>, vector<2x8x16xbf16>, vector<2x8x16xf32> -> vector<2x8x16xf32>
    "tpu.trace_stop"() : () -> ()
    %71 = vector.shape_cast %70 : vector<2x8x16xf32> to vector<16x16xf32>
    %c0_32 = arith.constant 0 : index
    %c16 = arith.constant 16 : index
    %72 = vector.load %arg20[%c0_32, %c16] : memref<16x32xf32, #tpu.memory_space<vmem>>, vector<16x16xf32>
    tpu.vector_store %arg20[%c0_32, %c16], %71 {strides = array<i32>} : memref<16x32xf32, #tpu.memory_space<vmem>>, vector<16x16xf32>,
    %c0_33 = arith.constant 0 : index
    %c0_34 = arith.constant 0 : index
    %73 = vector.load %arg20[%c0_33, %c0_34] : memref<16x32xf32, #tpu.memory_space<vmem>>, vector<16x32xf32>
    %74 = arith.truncf %73 : vector<16x32xf32> to vector<16x32xbf16>
    %c0_35 = arith.constant 0 : index
    %c0_36 = arith.constant 0 : index
    %75 = vector.load %arg9[%c0_35, %c0_36] : memref<32x32xbf16, #tpu.memory_space<vmem>>, vector<32x32xbf16>
    %cst_37 = arith.constant dense<0.000000e+00> : vector<16x32xf32>
    %76 = tpu.matmul %74, %75, %cst_37 {dimension_numbers = #tpu.dot_dimension_numbers<[1], [0], [0], [1], [0, 0, 1, 1], [], []>} : vector<16x32xbf16>, vector<32x32xbf16>, vector<16x32xf32> -> vector<16x32xf32>
    %c0_38 = arith.constant 0 : index
    %c0_39 = arith.constant 0 : index
    %77 = vector.load %arg10[%c0_38, %c0_39] : memref<1x32xf32, #tpu.memory_space<vmem>>, vector<1x32xf32>
    %78 = vector.broadcast %77 : vector<1x32xf32> to vector<16x32xf32>
    %79 = arith.addf %76, %78 : vector<16x32xf32>
    %80 = arith.addf %79, %2 : vector<16x32xf32>
    %81 = vector.shape_cast %19 : vector<2x8x1xf32> to vector<16x1xf32>
    %cst_40 = arith.constant dense<0.000000e+00> : vector<16xf32>
    %82 = vector.multi_reduction <add>, %80, %cst_40 [1] : vector<16x32xf32> to vector<16xf32>
    %83 = vector.shape_cast %82 : vector<16xf32> to vector<16x1xf32>
    %cst_41 = arith.constant 3.200000e+01 : f32
    %84 = vector.broadcast %cst_41 : f32 to vector<16x1xf32>
    %85 = arith.divf %83, %84 : vector<16x1xf32>
    %86 = vector.broadcast %85 : vector<16x1xf32> to vector<16x32xf32>
    %87 = arith.subf %80, %86 : vector<16x32xf32>
    %88 = arith.mulf %87, %87 : vector<16x32xf32>
    %cst_42 = arith.constant dense<0.000000e+00> : vector<16xf32>
    %89 = vector.multi_reduction <add>, %88, %cst_42 [1] : vector<16x32xf32> to vector<16xf32>
    %90 = vector.shape_cast %89 : vector<16xf32> to vector<16x1xf32>
    %cst_43 = arith.constant 3.200000e+01 : f32
    %91 = vector.broadcast %cst_43 : f32 to vector<16x1xf32>
    %92 = arith.divf %90, %91 : vector<16x1xf32>
    %93 = vector.broadcast %85 : vector<16x1xf32> to vector<16x32xf32>
    %94 = arith.subf %80, %93 : vector<16x32xf32>
    %cst_44 = arith.constant 9.99999974E-6 : f32
    %95 = vector.broadcast %cst_44 : f32 to vector<16x1xf32>
    %96 = arith.addf %92, %95 : vector<16x1xf32>
    %97 = math.rsqrt %96 : vector<16x1xf32>
    %98 = vector.broadcast %97 : vector<16x1xf32> to vector<16x32xf32>
    %99 = arith.mulf %94, %98 : vector<16x32xf32>
    %c0_45 = arith.constant 0 : index
    %c0_46 = arith.constant 0 : index
    %100 = vector.load %arg11[%c0_45, %c0_46] : memref<1x32xf32, #tpu.memory_space<vmem>>, vector<1x32xf32>
    %101 = vector.broadcast %100 : vector<1x32xf32> to vector<16x32xf32>
    %102 = arith.mulf %99, %101 : vector<16x32xf32>
    %c0_47 = arith.constant 0 : index
    %c0_48 = arith.constant 0 : index
    %103 = vector.load %arg12[%c0_47, %c0_48] : memref<1x32xf32, #tpu.memory_space<vmem>>, vector<1x32xf32>
    %104 = vector.broadcast %103 : vector<1x32xf32> to vector<16x32xf32>
    %105 = arith.addf %102, %104 : vector<16x32xf32>
    %106 = vector.broadcast %81 : vector<16x1xf32> to vector<16x32xf32>
    %107 = arith.mulf %105, %106 : vector<16x32xf32>
    %108 = arith.truncf %107 : vector<16x32xf32> to vector<16x32xbf16>
    %c0_49 = arith.constant 0 : index
    %c0_50 = arith.constant 0 : index
    %109 = vector.load %arg13[%c0_49, %c0_50] : memref<32x64xbf16, #tpu.memory_space<vmem>>, vector<32x64xbf16>
    %cst_51 = arith.constant dense<0.000000e+00> : vector<16x64xf32>
    %110 = tpu.matmul %108, %109, %cst_51 {dimension_numbers = #tpu.dot_dimension_numbers<[1], [0], [0], [1], [0, 0, 1, 1], [], []>} : vector<16x32xbf16>, vector<32x64xbf16>, vector<16x64xf32> -> vector<16x64xf32>
    %c0_52 = arith.constant 0 : index
    %c0_53 = arith.constant 0 : index
    %111 = vector.load %arg14[%c0_52, %c0_53] : memref<1x64xf32, #tpu.memory_space<vmem>>, vector<1x64xf32>
    %112 = vector.broadcast %111 : vector<1x64xf32> to vector<16x64xf32>
    %113 = arith.addf %110, %112 : vector<16x64xf32>
    %cst_54 = arith.constant 0.000000e+00 : f32
    %114 = vector.broadcast %cst_54 : f32 to vector<16x64xf32>
    %115 = arith.maximumf %113, %114 : vector<16x64xf32>
    %116 = arith.truncf %115 : vector<16x64xf32> to vector<16x64xbf16>
    %c0_55 = arith.constant 0 : index
    %c0_56 = arith.constant 0 : index
    %117 = vector.load %arg15[%c0_55, %c0_56] : memref<64x32xbf16, #tpu.memory_space<vmem>>, vector<64x32xbf16>
    %cst_57 = arith.constant dense<0.000000e+00> : vector<16x32xf32>
    %118 = tpu.matmul %116, %117, %cst_57 {dimension_numbers = #tpu.dot_dimension_numbers<[1], [0], [0], [1], [0, 0, 1, 1], [], []>} : vector<16x64xbf16>, vector<64x32xbf16>, vector<16x32xf32> -> vector<16x32xf32>
    %c0_58 = arith.constant 0 : index
    %c0_59 = arith.constant 0 : index
    %119 = vector.load %arg16[%c0_58, %c0_59] : memref<1x32xf32, #tpu.memory_space<vmem>>, vector<1x32xf32>
    %120 = vector.broadcast %119 : vector<1x32xf32> to vector<16x32xf32>
    %121 = arith.addf %118, %120 : vector<16x32xf32>
    %122 = arith.addf %121, %107 : vector<16x32xf32>
    %cst_60 = arith.constant dense<0.000000e+00> : vector<16xf32>
    %123 = vector.multi_reduction <add>, %122, %cst_60 [1] : vector<16x32xf32> to vector<16xf32>
    %124 = vector.shape_cast %123 : vector<16xf32> to vector<16x1xf32>
    %cst_61 = arith.constant 3.200000e+01 : f32
    %125 = vector.broadcast %cst_61 : f32 to vector<16x1xf32>
    %126 = arith.divf %124, %125 : vector<16x1xf32>
    %127 = vector.broadcast %126 : vector<16x1xf32> to vector<16x32xf32>
    %128 = arith.subf %122, %127 : vector<16x32xf32>
    %129 = arith.mulf %128, %128 : vector<16x32xf32>
    %cst_62 = arith.constant dense<0.000000e+00> : vector<16xf32>
    %130 = vector.multi_reduction <add>, %129, %cst_62 [1] : vector<16x32xf32> to vector<16xf32>
    %131 = vector.shape_cast %130 : vector<16xf32> to vector<16x1xf32>
    %cst_63 = arith.constant 3.200000e+01 : f32
    %132 = vector.broadcast %cst_63 : f32 to vector<16x1xf32>
    %133 = arith.divf %131, %132 : vector<16x1xf32>
    %134 = vector.broadcast %126 : vector<16x1xf32> to vector<16x32xf32>
    %135 = arith.subf %122, %134 : vector<16x32xf32>
    %cst_64 = arith.constant 9.99999974E-6 : f32
    %136 = vector.broadcast %cst_64 : f32 to vector<16x1xf32>
    %137 = arith.addf %133, %136 : vector<16x1xf32>
    %138 = math.rsqrt %137 : vector<16x1xf32>
    %139 = vector.broadcast %138 : vector<16x1xf32> to vector<16x32xf32>
    %140 = arith.mulf %135, %139 : vector<16x32xf32>
    %c0_65 = arith.constant 0 : index
    %c0_66 = arith.constant 0 : index
    %141 = vector.load %arg17[%c0_65, %c0_66] : memref<1x32xf32, #tpu.memory_space<vmem>>, vector<1x32xf32>
    %142 = vector.broadcast %141 : vector<1x32xf32> to vector<16x32xf32>
    %143 = arith.mulf %140, %142 : vector<16x32xf32>
    %c0_67 = arith.constant 0 : index
    %c0_68 = arith.constant 0 : index
    %144 = vector.load %arg18[%c0_67, %c0_68] : memref<1x32xf32, #tpu.memory_space<vmem>>, vector<1x32xf32>
    %145 = vector.broadcast %144 : vector<1x32xf32> to vector<16x32xf32>
    %146 = arith.addf %143, %145 : vector<16x32xf32>
    %147 = vector.broadcast %81 : vector<16x1xf32> to vector<16x32xf32>
    %148 = arith.mulf %146, %147 : vector<16x32xf32>
    %149 = vector.shape_cast %148 : vector<16x32xf32> to vector<2x8x32xf32>
    %c0_69 = arith.constant 0 : index
    %c0_70 = arith.constant 0 : index
    %c0_71 = arith.constant 0 : index
    %150 = vector.load %arg19[%c0_69, %c0_70, %c0_71] : memref<2x8x32xf32, #tpu.memory_space<vmem>>, vector<2x8x32xf32>
    tpu.vector_store %arg19[%c0_69, %c0_70, %c0_71], %149 {strides = array<i32>} : memref<2x8x32xf32, #tpu.memory_space<vmem>>, vector<2x8x32xf32>,
    return
  }
  func.func @transform_0(%arg0: i32) -> (i32, i32, i32) {
    %c0_i32 = arith.constant 0 : i32
    %c0_i32_0 = arith.constant 0 : i32
    %c0_i32_1 = arith.constant 0 : i32
    return %arg0, %c0_i32, %c0_i32_0 : i32, i32, i32
  }
  func.func @transform_1(%arg0: i32) -> (i32, i32, i32) {
    %c0_i32 = arith.constant 0 : i32
    %c0_i32_0 = arith.constant 0 : i32
    %c0_i32_1 = arith.constant 0 : i32
    return %arg0, %c0_i32, %c0_i32_0 : i32, i32, i32
  }
  func.func @transform_2(%arg0: i32) -> (i32, i32, i32) {
    %c0_i32 = arith.constant 0 : i32
    %c0_i32_0 = arith.constant 0 : i32
    %c0_i32_1 = arith.constant 0 : i32
    return %arg0, %c0_i32, %c0_i32_0 : i32, i32, i32
  }
  func.func @transform_3(%arg0: i32) -> (i32, i32, i32) {
    %c0_i32 = arith.constant 0 : i32
    %c0_i32_0 = arith.constant 0 : i32
    %c0_i32_1 = arith.constant 0 : i32
    return %arg0, %c0_i32, %c0_i32_0 : i32, i32, i32
  }
  func.func @transform_4(%arg0: i32) -> (i32, i32) {
    %c0_i32 = arith.constant 0 : i32
    %c0_i32_0 = arith.constant 0 : i32
    %c0_i32_1 = arith.constant 0 : i32
    return %c0_i32, %c0_i32_0 : i32, i32
  }
  func.func @transform_5(%arg0: i32) -> (i32, i32) {
    %c0_i32 = arith.constant 0 : i32
    %c0_i32_0 = arith.constant 0 : i32
    %c0_i32_1 = arith.constant 0 : i32
    return %c0_i32, %c0_i32_0 : i32, i32
  }
  func.func @transform_6(%arg0: i32) -> (i32, i32) {
    %c0_i32 = arith.constant 0 : i32
    %c0_i32_0 = arith.constant 0 : i32
    %c0_i32_1 = arith.constant 0 : i32
    return %c0_i32, %c0_i32_0 : i32, i32
  }
  func.func @transform_7(%arg0: i32) -> (i32, i32) {
    %c0_i32 = arith.constant 0 : i32
    %c0_i32_0 = arith.constant 0 : i32
    %c0_i32_1 = arith.constant 0 : i32
    return %c0_i32, %c0_i32_0 : i32, i32
  }
  func.func @transform_8(%arg0: i32) -> (i32, i32) {
    %c0_i32 = arith.constant 0 : i32
    %c0_i32_0 = arith.constant 0 : i32
    %c0_i32_1 = arith.constant 0 : i32
    return %c0_i32, %c0_i32_0 : i32, i32
  }
  func.func @transform_9(%arg0: i32) -> (i32, i32) {
    %c0_i32 = arith.constant 0 : i32
    %c0_i32_0 = arith.constant 0 : i32
    %c0_i32_1 = arith.constant 0 : i32
    return %c0_i32, %c0_i32_0 : i32, i32
  }
  func.func @transform_10(%arg0: i32) -> (i32, i32) {
    %c0_i32 = arith.constant 0 : i32
    %c0_i32_0 = arith.constant 0 : i32
    %c0_i32_1 = arith.constant 0 : i32
    return %c0_i32, %c0_i32_0 : i32, i32
  }
  func.func @transform_11(%arg0: i32) -> (i32, i32) {
    %c0_i32 = arith.constant 0 : i32
    %c0_i32_0 = arith.constant 0 : i32
    %c0_i32_1 = arith.constant 0 : i32
    return %c0_i32, %c0_i32_0 : i32, i32
  }
  func.func @transform_12(%arg0: i32) -> (i32, i32) {
    %c0_i32 = arith.constant 0 : i32
    %c0_i32_0 = arith.constant 0 : i32
    %c0_i32_1 = arith.constant 0 : i32
    return %c0_i32, %c0_i32_0 : i32, i32
  }
  func.func @transform_13(%arg0: i32) -> (i32, i32) {
    %c0_i32 = arith.constant 0 : i32
    %c0_i32_0 = arith.constant 0 : i32
    %c0_i32_1 = arith.constant 0 : i32
    return %c0_i32, %c0_i32_0 : i32, i32
  }
  func.func @transform_14(%arg0: i32) -> (i32, i32) {
    %c0_i32 = arith.constant 0 : i32
    %c0_i32_0 = arith.constant 0 : i32
    %c0_i32_1 = arith.constant 0 : i32
    return %c0_i32, %c0_i32_0 : i32, i32
  }
  func.func @transform_15(%arg0: i32) -> (i32, i32) {
    %c0_i32 = arith.constant 0 : i32
    %c0_i32_0 = arith.constant 0 : i32
    %c0_i32_1 = arith.constant 0 : i32
    return %c0_i32, %c0_i32_0 : i32, i32
  }
  func.func @transform_16(%arg0: i32) -> (i32, i32) {
    %c0_i32 = arith.constant 0 : i32
    %c0_i32_0 = arith.constant 0 : i32
    %c0_i32_1 = arith.constant 0 : i32
    return %c0_i32, %c0_i32_0 : i32, i32
  }
  func.func @transform_17(%arg0: i32) -> (i32, i32) {
    %c0_i32 = arith.constant 0 : i32
    %c0_i32_0 = arith.constant 0 : i32
    %c0_i32_1 = arith.constant 0 : i32
    return %c0_i32, %c0_i32_0 : i32, i32
  }
  func.func @transform_18(%arg0: i32) -> (i32, i32, i32) {
    %c0_i32 = arith.constant 0 : i32
    %c0_i32_0 = arith.constant 0 : i32
    %c0_i32_1 = arith.constant 0 : i32
    return %arg0, %c0_i32, %c0_i32_0 : i32, i32, i32
  }
}

module attributes {stable_mosaic.version = 11 : i64} {
  func.func @_self_layer_kernel(%arg0: i32, %arg1: memref<2x8x32xf32, #tpu.memory_space<vmem>>, %arg2: memref<2x1x8xf32, #tpu.memory_space<vmem>>, %arg3: memref<2x8x1xf32, #tpu.memory_space<vmem>>, %arg4: memref<32x96xbf16, #tpu.memory_space<vmem>>, %arg5: memref<1x96xf32, #tpu.memory_space<vmem>>, %arg6: memref<32x32xbf16, #tpu.memory_space<vmem>>, %arg7: memref<1x32xf32, #tpu.memory_space<vmem>>, %arg8: memref<1x32xf32, #tpu.memory_space<vmem>>, %arg9: memref<1x32xf32, #tpu.memory_space<vmem>>, %arg10: memref<32x64xbf16, #tpu.memory_space<vmem>>, %arg11: memref<1x64xf32, #tpu.memory_space<vmem>>, %arg12: memref<64x32xbf16, #tpu.memory_space<vmem>>, %arg13: memref<1x32xf32, #tpu.memory_space<vmem>>, %arg14: memref<1x32xf32, #tpu.memory_space<vmem>>, %arg15: memref<1x32xf32, #tpu.memory_space<vmem>>, %arg16: memref<2x8x32xf32, #tpu.memory_space<vmem>>, %arg17: memref<16x32xf32, #tpu.memory_space<vmem>>) attributes {dimension_semantics = [#tpu.dimension_semantics<parallel>], iteration_bounds = array<i64: 2>, scalar_prefetch = 0 : i64, scratch_operands = 1 : i64, tpu.core_type = #tpu.core_type<tc>, window_params = [{transform_indices = @transform_0, window_bounds = array<i64: 2, 8, 32>}, {transform_indices = @transform_1, window_bounds = array<i64: 2, 1, 8>}, {transform_indices = @transform_2, window_bounds = array<i64: 2, 8, 1>}, {pipeline_mode = #tpu.pipeline_mode<synchronous>, transform_indices = @transform_3, window_bounds = array<i64: 32, 96>}, {pipeline_mode = #tpu.pipeline_mode<synchronous>, transform_indices = @transform_4, window_bounds = array<i64: 1, 96>}, {pipeline_mode = #tpu.pipeline_mode<synchronous>, transform_indices = @transform_5, window_bounds = array<i64: 32, 32>}, {pipeline_mode = #tpu.pipeline_mode<synchronous>, transform_indices = @transform_6, window_bounds = array<i64: 1, 32>}, {pipeline_mode = #tpu.pipeline_mode<synchronous>, transform_indices = @transform_7, window_bounds = array<i64: 1, 32>}, {pipeline_mode = #tpu.pipeline_mode<synchronous>, transform_indices = @transform_8, window_bounds = array<i64: 1, 32>}, {pipeline_mode = #tpu.pipeline_mode<synchronous>, transform_indices = @transform_9, window_bounds = array<i64: 32, 64>}, {pipeline_mode = #tpu.pipeline_mode<synchronous>, transform_indices = @transform_10, window_bounds = array<i64: 1, 64>}, {pipeline_mode = #tpu.pipeline_mode<synchronous>, transform_indices = @transform_11, window_bounds = array<i64: 64, 32>}, {pipeline_mode = #tpu.pipeline_mode<synchronous>, transform_indices = @transform_12, window_bounds = array<i64: 1, 32>}, {pipeline_mode = #tpu.pipeline_mode<synchronous>, transform_indices = @transform_13, window_bounds = array<i64: 1, 32>}, {pipeline_mode = #tpu.pipeline_mode<synchronous>, transform_indices = @transform_14, window_bounds = array<i64: 1, 32>}, {transform_indices = @transform_15, window_bounds = array<i64: 2, 8, 32>}]} {
    %c0 = arith.constant 0 : index
    %c0_0 = arith.constant 0 : index
    %c0_1 = arith.constant 0 : index
    %0 = vector.load %arg1[%c0, %c0_0, %c0_1] : memref<2x8x32xf32, #tpu.memory_space<vmem>>, vector<2x8x32xf32>
    %1 = vector.shape_cast %0 : vector<2x8x32xf32> to vector<16x32xf32>
    %2 = arith.truncf %1 : vector<16x32xf32> to vector<16x32xbf16>
    %c0_2 = arith.constant 0 : index
    %c0_3 = arith.constant 0 : index
    %3 = vector.load %arg4[%c0_2, %c0_3] : memref<32x96xbf16, #tpu.memory_space<vmem>>, vector<32x96xbf16>
    %cst = arith.constant dense<0.000000e+00> : vector<16x96xf32>
    %4 = tpu.matmul %2, %3, %cst {dimension_numbers = #tpu.dot_dimension_numbers<[1], [0], [0], [1], [0, 0, 1, 1], [], []>} : vector<16x32xbf16>, vector<32x96xbf16>, vector<16x96xf32> -> vector<16x96xf32>
    %c0_4 = arith.constant 0 : index
    %c0_5 = arith.constant 0 : index
    %5 = vector.load %arg5[%c0_4, %c0_5] : memref<1x96xf32, #tpu.memory_space<vmem>>, vector<1x96xf32>
    %6 = vector.broadcast %5 : vector<1x96xf32> to vector<16x96xf32>
    %7 = arith.addf %4, %6 : vector<16x96xf32>
    %8 = vector.extract_strided_slice %7 {offsets = [0, 0], sizes = [16, 32], strides = [1, 1]} : vector<16x96xf32> to vector<16x32xf32>
    %9 = vector.extract_strided_slice %7 {offsets = [0, 32], sizes = [16, 32], strides = [1, 1]} : vector<16x96xf32> to vector<16x32xf32>
    %10 = vector.extract_strided_slice %7 {offsets = [0, 64], sizes = [16, 32], strides = [1, 1]} : vector<16x96xf32> to vector<16x32xf32>
    %c0_6 = arith.constant 0 : index
    %c0_7 = arith.constant 0 : index
    %c0_8 = arith.constant 0 : index
    %11 = vector.load %arg2[%c0_6, %c0_7, %c0_8] : memref<2x1x8xf32, #tpu.memory_space<vmem>>, vector<2x1x8xf32>
    %c0_9 = arith.constant 0 : index
    %c0_10 = arith.constant 0 : index
    %c0_11 = arith.constant 0 : index
    %12 = vector.load %arg3[%c0_9, %c0_10, %c0_11] : memref<2x8x1xf32, #tpu.memory_space<vmem>>, vector<2x8x1xf32>
    %13 = vector.shape_cast %8 : vector<16x32xf32> to vector<2x8x32xf32>
    %14 = vector.shape_cast %9 : vector<16x32xf32> to vector<2x8x32xf32>
    %15 = vector.shape_cast %10 : vector<16x32xf32> to vector<2x8x32xf32>
    %16 = vector.extract_strided_slice %13 {offsets = [0, 0, 0], sizes = [2, 8, 16], strides = [1, 1, 1]} : vector<2x8x32xf32> to vector<2x8x16xf32>
    %17 = arith.truncf %16 : vector<2x8x16xf32> to vector<2x8x16xbf16>
    %18 = vector.extract_strided_slice %14 {offsets = [0, 0, 0], sizes = [2, 8, 16], strides = [1, 1, 1]} : vector<2x8x32xf32> to vector<2x8x16xf32>
    %19 = arith.truncf %18 : vector<2x8x16xf32> to vector<2x8x16xbf16>
    "tpu.trace_start"() <{level = 10 : i32, message = "bqd,bkd->bqk"}> : () -> ()
    %cst_12 = arith.constant dense<0.000000e+00> : vector<2x8x8xf32>
    %20 = tpu.matmul %17, %19, %cst_12 {dimension_numbers = #tpu.dot_dimension_numbers<[2], [2], [1], [1], [0, 0, 0, 1, 1, 1], [0], [0]>} : vector<2x8x16xbf16>, vector<2x8x16xbf16>, vector<2x8x8xf32> -> vector<2x8x8xf32>
    "tpu.trace_stop"() : () -> ()
    %cst_13 = arith.constant 2.500000e-01 : f32
    %21 = vector.broadcast %cst_13 : f32 to vector<2x8x8xf32>
    %22 = arith.mulf %20, %21 : vector<2x8x8xf32>
    %23 = vector.broadcast %11 : vector<2x1x8xf32> to vector<2x8x8xf32>
    %24 = arith.addf %22, %23 : vector<2x8x8xf32>
    %cst_14 = arith.constant dense<0xFF800000> : vector<2x8xf32>
    %25 = vector.multi_reduction <maximumf>, %24, %cst_14 [2] : vector<2x8x8xf32> to vector<2x8xf32>
    %26 = vector.shape_cast %25 : vector<2x8xf32> to vector<2x8x1xf32>
    %27 = vector.broadcast %26 : vector<2x8x1xf32> to vector<2x8x8xf32>
    %28 = arith.subf %24, %27 : vector<2x8x8xf32>
    %29 = math.exp %28 : vector<2x8x8xf32>
    %cst_15 = arith.constant dense<0.000000e+00> : vector<2x8xf32>
    %30 = vector.multi_reduction <add>, %29, %cst_15 [2] : vector<2x8x8xf32> to vector<2x8xf32>
    %31 = vector.shape_cast %30 : vector<2x8xf32> to vector<2x8x1xf32>
    %32 = tpu.reciprocal %31 {approx = true} : vector<2x8x1xf32> -> vector<2x8x1xf32>
    %33 = vector.broadcast %32 : vector<2x8x1xf32> to vector<2x8x8xf32>
    %34 = arith.mulf %29, %33 : vector<2x8x8xf32>
    %35 = vector.extract_strided_slice %15 {offsets = [0, 0, 0], sizes = [2, 8, 16], strides = [1, 1, 1]} : vector<2x8x32xf32> to vector<2x8x16xf32>
    %36 = arith.truncf %35 : vector<2x8x16xf32> to vector<2x8x16xbf16>
    %37 = arith.truncf %34 : vector<2x8x8xf32> to vector<2x8x8xbf16>
    "tpu.trace_start"() <{level = 10 : i32, message = "bqk,bkd->bqd"}> : () -> ()
    %cst_16 = arith.constant dense<0.000000e+00> : vector<2x8x16xf32>
    %38 = tpu.matmul %37, %36, %cst_16 {dimension_numbers = #tpu.dot_dimension_numbers<[2], [1], [1], [2], [0, 0, 0, 1, 1, 2], [0], [0]>} : vector<2x8x8xbf16>, vector<2x8x16xbf16>, vector<2x8x16xf32> -> vector<2x8x16xf32>
    "tpu.trace_stop"() : () -> ()
    %39 = vector.shape_cast %38 : vector<2x8x16xf32> to vector<16x16xf32>
    %c0_17 = arith.constant 0 : index
    %c0_18 = arith.constant 0 : index
    %40 = vector.load %arg17[%c0_17, %c0_18] : memref<16x32xf32, #tpu.memory_space<vmem>>, vector<16x16xf32>
    tpu.vector_store %arg17[%c0_17, %c0_18], %39 {strides = array<i32>} : memref<16x32xf32, #tpu.memory_space<vmem>>, vector<16x16xf32>,
    %41 = vector.extract_strided_slice %13 {offsets = [0, 0, 16], sizes = [2, 8, 16], strides = [1, 1, 1]} : vector<2x8x32xf32> to vector<2x8x16xf32>
    %42 = arith.truncf %41 : vector<2x8x16xf32> to vector<2x8x16xbf16>
    %43 = vector.extract_strided_slice %14 {offsets = [0, 0, 16], sizes = [2, 8, 16], strides = [1, 1, 1]} : vector<2x8x32xf32> to vector<2x8x16xf32>
    %44 = arith.truncf %43 : vector<2x8x16xf32> to vector<2x8x16xbf16>
    "tpu.trace_start"() <{level = 10 : i32, message = "bqd,bkd->bqk"}> : () -> ()
    %cst_19 = arith.constant dense<0.000000e+00> : vector<2x8x8xf32>
    %45 = tpu.matmul %42, %44, %cst_19 {dimension_numbers = #tpu.dot_dimension_numbers<[2], [2], [1], [1], [0, 0, 0, 1, 1, 1], [0], [0]>} : vector<2x8x16xbf16>, vector<2x8x16xbf16>, vector<2x8x8xf32> -> vector<2x8x8xf32>
    "tpu.trace_stop"() : () -> ()
    %cst_20 = arith.constant 2.500000e-01 : f32
    %46 = vector.broadcast %cst_20 : f32 to vector<2x8x8xf32>
    %47 = arith.mulf %45, %46 : vector<2x8x8xf32>
    %48 = vector.broadcast %11 : vector<2x1x8xf32> to vector<2x8x8xf32>
    %49 = arith.addf %47, %48 : vector<2x8x8xf32>
    %cst_21 = arith.constant dense<0xFF800000> : vector<2x8xf32>
    %50 = vector.multi_reduction <maximumf>, %49, %cst_21 [2] : vector<2x8x8xf32> to vector<2x8xf32>
    %51 = vector.shape_cast %50 : vector<2x8xf32> to vector<2x8x1xf32>
    %52 = vector.broadcast %51 : vector<2x8x1xf32> to vector<2x8x8xf32>
    %53 = arith.subf %49, %52 : vector<2x8x8xf32>
    %54 = math.exp %53 : vector<2x8x8xf32>
    %cst_22 = arith.constant dense<0.000000e+00> : vector<2x8xf32>
    %55 = vector.multi_reduction <add>, %54, %cst_22 [2] : vector<2x8x8xf32> to vector<2x8xf32>
    %56 = vector.shape_cast %55 : vector<2x8xf32> to vector<2x8x1xf32>
    %57 = tpu.reciprocal %56 {approx = true} : vector<2x8x1xf32> -> vector<2x8x1xf32>
    %58 = vector.broadcast %57 : vector<2x8x1xf32> to vector<2x8x8xf32>
    %59 = arith.mulf %54, %58 : vector<2x8x8xf32>
    %60 = vector.extract_strided_slice %15 {offsets = [0, 0, 16], sizes = [2, 8, 16], strides = [1, 1, 1]} : vector<2x8x32xf32> to vector<2x8x16xf32>
    %61 = arith.truncf %60 : vector<2x8x16xf32> to vector<2x8x16xbf16>
    %62 = arith.truncf %59 : vector<2x8x8xf32> to vector<2x8x8xbf16>
    "tpu.trace_start"() <{level = 10 : i32, message = "bqk,bkd->bqd"}> : () -> ()
    %cst_23 = arith.constant dense<0.000000e+00> : vector<2x8x16xf32>
    %63 = tpu.matmul %62, %61, %cst_23 {dimension_numbers = #tpu.dot_dimension_numbers<[2], [1], [1], [2], [0, 0, 0, 1, 1, 2], [0], [0]>} : vector<2x8x8xbf16>, vector<2x8x16xbf16>, vector<2x8x16xf32> -> vector<2x8x16xf32>
    "tpu.trace_stop"() : () -> ()
    %64 = vector.shape_cast %63 : vector<2x8x16xf32> to vector<16x16xf32>
    %c0_24 = arith.constant 0 : index
    %c16 = arith.constant 16 : index
    %65 = vector.load %arg17[%c0_24, %c16] : memref<16x32xf32, #tpu.memory_space<vmem>>, vector<16x16xf32>
    tpu.vector_store %arg17[%c0_24, %c16], %64 {strides = array<i32>} : memref<16x32xf32, #tpu.memory_space<vmem>>, vector<16x16xf32>,
    %c0_25 = arith.constant 0 : index
    %c0_26 = arith.constant 0 : index
    %66 = vector.load %arg17[%c0_25, %c0_26] : memref<16x32xf32, #tpu.memory_space<vmem>>, vector<16x32xf32>
    %67 = arith.truncf %66 : vector<16x32xf32> to vector<16x32xbf16>
    %c0_27 = arith.constant 0 : index
    %c0_28 = arith.constant 0 : index
    %68 = vector.load %arg6[%c0_27, %c0_28] : memref<32x32xbf16, #tpu.memory_space<vmem>>, vector<32x32xbf16>
    %cst_29 = arith.constant dense<0.000000e+00> : vector<16x32xf32>
    %69 = tpu.matmul %67, %68, %cst_29 {dimension_numbers = #tpu.dot_dimension_numbers<[1], [0], [0], [1], [0, 0, 1, 1], [], []>} : vector<16x32xbf16>, vector<32x32xbf16>, vector<16x32xf32> -> vector<16x32xf32>
    %c0_30 = arith.constant 0 : index
    %c0_31 = arith.constant 0 : index
    %70 = vector.load %arg7[%c0_30, %c0_31] : memref<1x32xf32, #tpu.memory_space<vmem>>, vector<1x32xf32>
    %71 = vector.broadcast %70 : vector<1x32xf32> to vector<16x32xf32>
    %72 = arith.addf %69, %71 : vector<16x32xf32>
    %73 = arith.addf %72, %1 : vector<16x32xf32>
    %74 = vector.shape_cast %12 : vector<2x8x1xf32> to vector<16x1xf32>
    %cst_32 = arith.constant dense<0.000000e+00> : vector<16xf32>
    %75 = vector.multi_reduction <add>, %73, %cst_32 [1] : vector<16x32xf32> to vector<16xf32>
    %76 = vector.shape_cast %75 : vector<16xf32> to vector<16x1xf32>
    %cst_33 = arith.constant 3.200000e+01 : f32
    %77 = vector.broadcast %cst_33 : f32 to vector<16x1xf32>
    %78 = arith.divf %76, %77 : vector<16x1xf32>
    %79 = vector.broadcast %78 : vector<16x1xf32> to vector<16x32xf32>
    %80 = arith.subf %73, %79 : vector<16x32xf32>
    %81 = arith.mulf %80, %80 : vector<16x32xf32>
    %cst_34 = arith.constant dense<0.000000e+00> : vector<16xf32>
    %82 = vector.multi_reduction <add>, %81, %cst_34 [1] : vector<16x32xf32> to vector<16xf32>
    %83 = vector.shape_cast %82 : vector<16xf32> to vector<16x1xf32>
    %cst_35 = arith.constant 3.200000e+01 : f32
    %84 = vector.broadcast %cst_35 : f32 to vector<16x1xf32>
    %85 = arith.divf %83, %84 : vector<16x1xf32>
    %86 = vector.broadcast %78 : vector<16x1xf32> to vector<16x32xf32>
    %87 = arith.subf %73, %86 : vector<16x32xf32>
    %cst_36 = arith.constant 9.99999974E-6 : f32
    %88 = vector.broadcast %cst_36 : f32 to vector<16x1xf32>
    %89 = arith.addf %85, %88 : vector<16x1xf32>
    %90 = math.rsqrt %89 : vector<16x1xf32>
    %91 = vector.broadcast %90 : vector<16x1xf32> to vector<16x32xf32>
    %92 = arith.mulf %87, %91 : vector<16x32xf32>
    %c0_37 = arith.constant 0 : index
    %c0_38 = arith.constant 0 : index
    %93 = vector.load %arg8[%c0_37, %c0_38] : memref<1x32xf32, #tpu.memory_space<vmem>>, vector<1x32xf32>
    %94 = vector.broadcast %93 : vector<1x32xf32> to vector<16x32xf32>
    %95 = arith.mulf %92, %94 : vector<16x32xf32>
    %c0_39 = arith.constant 0 : index
    %c0_40 = arith.constant 0 : index
    %96 = vector.load %arg9[%c0_39, %c0_40] : memref<1x32xf32, #tpu.memory_space<vmem>>, vector<1x32xf32>
    %97 = vector.broadcast %96 : vector<1x32xf32> to vector<16x32xf32>
    %98 = arith.addf %95, %97 : vector<16x32xf32>
    %99 = vector.broadcast %74 : vector<16x1xf32> to vector<16x32xf32>
    %100 = arith.mulf %98, %99 : vector<16x32xf32>
    %101 = arith.truncf %100 : vector<16x32xf32> to vector<16x32xbf16>
    %c0_41 = arith.constant 0 : index
    %c0_42 = arith.constant 0 : index
    %102 = vector.load %arg10[%c0_41, %c0_42] : memref<32x64xbf16, #tpu.memory_space<vmem>>, vector<32x64xbf16>
    %cst_43 = arith.constant dense<0.000000e+00> : vector<16x64xf32>
    %103 = tpu.matmul %101, %102, %cst_43 {dimension_numbers = #tpu.dot_dimension_numbers<[1], [0], [0], [1], [0, 0, 1, 1], [], []>} : vector<16x32xbf16>, vector<32x64xbf16>, vector<16x64xf32> -> vector<16x64xf32>
    %c0_44 = arith.constant 0 : index
    %c0_45 = arith.constant 0 : index
    %104 = vector.load %arg11[%c0_44, %c0_45] : memref<1x64xf32, #tpu.memory_space<vmem>>, vector<1x64xf32>
    %105 = vector.broadcast %104 : vector<1x64xf32> to vector<16x64xf32>
    %106 = arith.addf %103, %105 : vector<16x64xf32>
    %cst_46 = arith.constant 0.000000e+00 : f32
    %107 = vector.broadcast %cst_46 : f32 to vector<16x64xf32>
    %108 = arith.maximumf %106, %107 : vector<16x64xf32>
    %109 = arith.truncf %108 : vector<16x64xf32> to vector<16x64xbf16>
    %c0_47 = arith.constant 0 : index
    %c0_48 = arith.constant 0 : index
    %110 = vector.load %arg12[%c0_47, %c0_48] : memref<64x32xbf16, #tpu.memory_space<vmem>>, vector<64x32xbf16>
    %cst_49 = arith.constant dense<0.000000e+00> : vector<16x32xf32>
    %111 = tpu.matmul %109, %110, %cst_49 {dimension_numbers = #tpu.dot_dimension_numbers<[1], [0], [0], [1], [0, 0, 1, 1], [], []>} : vector<16x64xbf16>, vector<64x32xbf16>, vector<16x32xf32> -> vector<16x32xf32>
    %c0_50 = arith.constant 0 : index
    %c0_51 = arith.constant 0 : index
    %112 = vector.load %arg13[%c0_50, %c0_51] : memref<1x32xf32, #tpu.memory_space<vmem>>, vector<1x32xf32>
    %113 = vector.broadcast %112 : vector<1x32xf32> to vector<16x32xf32>
    %114 = arith.addf %111, %113 : vector<16x32xf32>
    %115 = arith.addf %114, %100 : vector<16x32xf32>
    %cst_52 = arith.constant dense<0.000000e+00> : vector<16xf32>
    %116 = vector.multi_reduction <add>, %115, %cst_52 [1] : vector<16x32xf32> to vector<16xf32>
    %117 = vector.shape_cast %116 : vector<16xf32> to vector<16x1xf32>
    %cst_53 = arith.constant 3.200000e+01 : f32
    %118 = vector.broadcast %cst_53 : f32 to vector<16x1xf32>
    %119 = arith.divf %117, %118 : vector<16x1xf32>
    %120 = vector.broadcast %119 : vector<16x1xf32> to vector<16x32xf32>
    %121 = arith.subf %115, %120 : vector<16x32xf32>
    %122 = arith.mulf %121, %121 : vector<16x32xf32>
    %cst_54 = arith.constant dense<0.000000e+00> : vector<16xf32>
    %123 = vector.multi_reduction <add>, %122, %cst_54 [1] : vector<16x32xf32> to vector<16xf32>
    %124 = vector.shape_cast %123 : vector<16xf32> to vector<16x1xf32>
    %cst_55 = arith.constant 3.200000e+01 : f32
    %125 = vector.broadcast %cst_55 : f32 to vector<16x1xf32>
    %126 = arith.divf %124, %125 : vector<16x1xf32>
    %127 = vector.broadcast %119 : vector<16x1xf32> to vector<16x32xf32>
    %128 = arith.subf %115, %127 : vector<16x32xf32>
    %cst_56 = arith.constant 9.99999974E-6 : f32
    %129 = vector.broadcast %cst_56 : f32 to vector<16x1xf32>
    %130 = arith.addf %126, %129 : vector<16x1xf32>
    %131 = math.rsqrt %130 : vector<16x1xf32>
    %132 = vector.broadcast %131 : vector<16x1xf32> to vector<16x32xf32>
    %133 = arith.mulf %128, %132 : vector<16x32xf32>
    %c0_57 = arith.constant 0 : index
    %c0_58 = arith.constant 0 : index
    %134 = vector.load %arg14[%c0_57, %c0_58] : memref<1x32xf32, #tpu.memory_space<vmem>>, vector<1x32xf32>
    %135 = vector.broadcast %134 : vector<1x32xf32> to vector<16x32xf32>
    %136 = arith.mulf %133, %135 : vector<16x32xf32>
    %c0_59 = arith.constant 0 : index
    %c0_60 = arith.constant 0 : index
    %137 = vector.load %arg15[%c0_59, %c0_60] : memref<1x32xf32, #tpu.memory_space<vmem>>, vector<1x32xf32>
    %138 = vector.broadcast %137 : vector<1x32xf32> to vector<16x32xf32>
    %139 = arith.addf %136, %138 : vector<16x32xf32>
    %140 = vector.broadcast %74 : vector<16x1xf32> to vector<16x32xf32>
    %141 = arith.mulf %139, %140 : vector<16x32xf32>
    %142 = vector.shape_cast %141 : vector<16x32xf32> to vector<2x8x32xf32>
    %c0_61 = arith.constant 0 : index
    %c0_62 = arith.constant 0 : index
    %c0_63 = arith.constant 0 : index
    %143 = vector.load %arg16[%c0_61, %c0_62, %c0_63] : memref<2x8x32xf32, #tpu.memory_space<vmem>>, vector<2x8x32xf32>
    tpu.vector_store %arg16[%c0_61, %c0_62, %c0_63], %142 {strides = array<i32>} : memref<2x8x32xf32, #tpu.memory_space<vmem>>, vector<2x8x32xf32>,
    return
  }
  func.func @transform_0(%arg0: i32) -> (i32, i32, i32) {
    %c0_i32 = arith.constant 0 : i32
    %c0_i32_0 = arith.constant 0 : i32
    %c0_i32_1 = arith.constant 0 : i32
    return %arg0, %c0_i32, %c0_i32_0 : i32, i32, i32
  }
  func.func @transform_1(%arg0: i32) -> (i32, i32, i32) {
    %c0_i32 = arith.constant 0 : i32
    %c0_i32_0 = arith.constant 0 : i32
    %c0_i32_1 = arith.constant 0 : i32
    return %arg0, %c0_i32, %c0_i32_0 : i32, i32, i32
  }
  func.func @transform_2(%arg0: i32) -> (i32, i32, i32) {
    %c0_i32 = arith.constant 0 : i32
    %c0_i32_0 = arith.constant 0 : i32
    %c0_i32_1 = arith.constant 0 : i32
    return %arg0, %c0_i32, %c0_i32_0 : i32, i32, i32
  }
  func.func @transform_3(%arg0: i32) -> (i32, i32) {
    %c0_i32 = arith.constant 0 : i32
    %c0_i32_0 = arith.constant 0 : i32
    %c0_i32_1 = arith.constant 0 : i32
    return %c0_i32, %c0_i32_0 : i32, i32
  }
  func.func @transform_4(%arg0: i32) -> (i32, i32) {
    %c0_i32 = arith.constant 0 : i32
    %c0_i32_0 = arith.constant 0 : i32
    %c0_i32_1 = arith.constant 0 : i32
    return %c0_i32, %c0_i32_0 : i32, i32
  }
  func.func @transform_5(%arg0: i32) -> (i32, i32) {
    %c0_i32 = arith.constant 0 : i32
    %c0_i32_0 = arith.constant 0 : i32
    %c0_i32_1 = arith.constant 0 : i32
    return %c0_i32, %c0_i32_0 : i32, i32
  }
  func.func @transform_6(%arg0: i32) -> (i32, i32) {
    %c0_i32 = arith.constant 0 : i32
    %c0_i32_0 = arith.constant 0 : i32
    %c0_i32_1 = arith.constant 0 : i32
    return %c0_i32, %c0_i32_0 : i32, i32
  }
  func.func @transform_7(%arg0: i32) -> (i32, i32) {
    %c0_i32 = arith.constant 0 : i32
    %c0_i32_0 = arith.constant 0 : i32
    %c0_i32_1 = arith.constant 0 : i32
    return %c0_i32, %c0_i32_0 : i32, i32
  }
  func.func @transform_8(%arg0: i32) -> (i32, i32) {
    %c0_i32 = arith.constant 0 : i32
    %c0_i32_0 = arith.constant 0 : i32
    %c0_i32_1 = arith.constant 0 : i32
    return %c0_i32, %c0_i32_0 : i32, i32
  }
  func.func @transform_9(%arg0: i32) -> (i32, i32) {
    %c0_i32 = arith.constant 0 : i32
    %c0_i32_0 = arith.constant 0 : i32
    %c0_i32_1 = arith.constant 0 : i32
    return %c0_i32, %c0_i32_0 : i32, i32
  }
  func.func @transform_10(%arg0: i32) -> (i32, i32) {
    %c0_i32 = arith.constant 0 : i32
    %c0_i32_0 = arith.constant 0 : i32
    %c0_i32_1 = arith.constant 0 : i32
    return %c0_i32, %c0_i32_0 : i32, i32
  }
  func.func @transform_11(%arg0: i32) -> (i32, i32) {
    %c0_i32 = arith.constant 0 : i32
    %c0_i32_0 = arith.constant 0 : i32
    %c0_i32_1 = arith.constant 0 : i32
    return %c0_i32, %c0_i32_0 : i32, i32
  }
  func.func @transform_12(%arg0: i32) -> (i32, i32) {
    %c0_i32 = arith.constant 0 : i32
    %c0_i32_0 = arith.constant 0 : i32
    %c0_i32_1 = arith.constant 0 : i32
    return %c0_i32, %c0_i32_0 : i32, i32
  }
  func.func @transform_13(%arg0: i32) -> (i32, i32) {
    %c0_i32 = arith.constant 0 : i32
    %c0_i32_0 = arith.constant 0 : i32
    %c0_i32_1 = arith.constant 0 : i32
    return %c0_i32, %c0_i32_0 : i32, i32
  }
  func.func @transform_14(%arg0: i32) -> (i32, i32) {
    %c0_i32 = arith.constant 0 : i32
    %c0_i32_0 = arith.constant 0 : i32
    %c0_i32_1 = arith.constant 0 : i32
    return %c0_i32, %c0_i32_0 : i32, i32
  }
  func.func @transform_15(%arg0: i32) -> (i32, i32, i32) {
    %c0_i32 = arith.constant 0 : i32
    %c0_i32_0 = arith.constant 0 : i32
    %c0_i32_1 = arith.constant 0 : i32
    return %arg0, %c0_i32, %c0_i32_0 : i32, i32, i32
  }
}

</mosaic_0001>

<llo_original>
// kernel: graph_encoder_forward.2
$region0: #{graph_encoder_forward.2}
  #allocation0 [shape = 'u32[]', space=smem, size = 0x4, offset = 0x4, fixed_abs, tag = 'smem constant byte address 0x4 - core index']
  #allocation1 [shape = 'u32[144,128]{1,0:T(1,128)}', space=vmem, size = 0x12000, scoped, tag = 'internal scratch']
  #allocation2 [shape = 'f32[16,32]{1,0:T(8,128)}', space=vmem, size = 0x2000, scoped, tag = 'scratch operand']
  %s0 = inlined_call_operand.vmem [shape: f32[4,8,32], index: 0, kind: input, shape index: {}]
  %s1 = inlined_call_operand.vmem [shape: f32[4,8,32], index: 1, kind: input, shape index: {}]
  %s2 = inlined_call_operand.vmem [shape: f32[4,1,8], index: 2, kind: input, shape index: {}]
  %s3 = inlined_call_operand.vmem [shape: f32[4,8,1], index: 3, kind: input, shape index: {}]
  %s4 = inlined_call_operand.vmem [shape: bf16[32,32], index: 4, kind: input, shape index: {}]
  %s5 = inlined_call_operand.vmem [shape: f32[1,32], index: 5, kind: input, shape index: {}]
  %s6 = inlined_call_operand.vmem [shape: bf16[32,64], index: 6, kind: input, shape index: {}]
  %s7 = inlined_call_operand.vmem [shape: f32[1,64], index: 7, kind: input, shape index: {}]
  %s8 = inlined_call_operand.vmem [shape: bf16[32,32], index: 8, kind: input, shape index: {}]
  %s9 = inlined_call_operand.vmem [shape: f32[1,32], index: 9, kind: input, shape index: {}]
  %s10 = inlined_call_operand.vmem [shape: f32[1,32], index: 10, kind: input, shape index: {}]
  %s11 = inlined_call_operand.vmem [shape: f32[1,32], index: 11, kind: input, shape index: {}]
  %s12 = inlined_call_operand.vmem [shape: bf16[32,64], index: 12, kind: input, shape index: {}]
  %s13 = inlined_call_operand.vmem [shape: f32[1,64], index: 13, kind: input, shape index: {}]
  %s14 = inlined_call_operand.vmem [shape: bf16[64,32], index: 14, kind: input, shape index: {}]
  %s15 = inlined_call_operand.vmem [shape: f32[1,32], index: 15, kind: input, shape index: {}]
  %s16 = inlined_call_operand.vmem [shape: f32[1,32], index: 16, kind: input, shape index: {}]
  %s17 = inlined_call_operand.vmem [shape: f32[1,32], index: 17, kind: input, shape index: {}]
  %s18 = inlined_call_operand.vmem [shape: f32[4,8,32], index: 18, kind: output, shape index: {}]
  %s19 = sld [smem:[#allocation0]]
  $region105: #{graph_encoder_forward.2} parent=0
    _
  %s21 = ssub.s32 1, %s19
  %s22 = scalar_select 0, %s21, %s19
  loop: start=0, step=1, limit=4
  $region2: #{graph_encoder_forward.2} parent=0 // loop_pre_header
    _
  $region3: #{graph_encoder_forward.2} parent=0 // loop_header
    %s24 = sphi 0, %s28
    %p25 = scmp.ge.s32.totalorder %s24, 4
    %s34 = sphi 0, %s36
    %s37 = sphi 0, %s34
    %s38 = sphi 0, %s37
    %s54 = sphi 0, %s38
    %s60 = sphi 0, %s62
    %s63 = sphi 0, %s60
    %s64 = sphi 0, %s63
    %s80 = sphi 0, %s64
    %s86 = sphi 0, %s88
    %s89 = sphi 0, %s86
    %s90 = sphi 0, %s89
    %s106 = sphi 0, %s90
    %s112 = sphi 0, %s114
    %s115 = sphi 0, %s112
    %s116 = sphi 0, %s115
    %s132 = sphi 0, %s116
    %s136 = sphi 0, %s136
    %s138 = sphi 0, %s136
    %s139 = sphi 0, %s138
    %s153 = sphi 0, %s139
    %s157 = sphi 0, %s157
    %s159 = sphi 0, %s157
    %s160 = sphi 0, %s159
    %s174 = sphi 0, %s160
    %s178 = sphi 0, %s178
    %s180 = sphi 0, %s178
    %s181 = sphi 0, %s180
    %s195 = sphi 0, %s181
    %s199 = sphi 0, %s199
    %s201 = sphi 0, %s199
    %s202 = sphi 0, %s201
    %s216 = sphi 0, %s202
    %s220 = sphi 0, %s220
    %s222 = sphi 0, %s220
    %s223 = sphi 0, %s222
    %s237 = sphi 0, %s223
    %s241 = sphi 0, %s241
    %s243 = sphi 0, %s241
    %s244 = sphi 0, %s243
    %s258 = sphi 0, %s244
    %s262 = sphi 0, %s262
    %s264 = sphi 0, %s262
    %s265 = sphi 0, %s264
    %s279 = sphi 0, %s265
    %s283 = sphi 0, %s283
    %s285 = sphi 0, %s283
    %s286 = sphi 0, %s285
    %s300 = sphi 0, %s286
    %s304 = sphi 0, %s304
    %s306 = sphi 0, %s304
    %s307 = sphi 0, %s306
    %s321 = sphi 0, %s307
    %s325 = sphi 0, %s325
    %s327 = sphi 0, %s325
    %s328 = sphi 0, %s327
    %s342 = sphi 0, %s328
    %s346 = sphi 0, %s346
    %s348 = sphi 0, %s346
    %s349 = sphi 0, %s348
    %s363 = sphi 0, %s349
    %s367 = sphi 0, %s367
    %s369 = sphi 0, %s367
    %s370 = sphi 0, %s369
    %s384 = sphi 0, %s370
    %s388 = sphi 0, %s388
    %s390 = sphi 0, %s388
    %s391 = sphi 0, %s390
    %s405 = sphi 0, %s391
    %s409 = sphi 0, %s409
    %s411 = sphi 0, %s409
    %s412 = sphi 0, %s411
    %s426 = sphi 0, %s412
    %s432 = sphi 0, %s434
    %s435 = sphi 0, %s432
    %s436 = sphi 0, %s435
    %s452 = sphi 0, %s436
  $region4: #{graph_encoder_forward.2} parent=0 // loop_header_branch
    %27 = sbr.rel (%p25) target = $region8
  $region5: #{graph_encoder_forward.2} parent=0 // loop_body
    %s29 = ssub.s32 %s24, 1
    %s30 = ssub.s32 %s24, 2
    %s31 = sadd.s32 %s24, 1
    %s32 = ssub.s32 %s24, %s31
    %p33 = scmp.eq.s32.totalorder %s32, 0
    %s35 = sadd.s32 %s34, 1
    %s36 = scalar_select %p33, %s34, %s35
    %p39 = pneg %p33
    %p40 = scmp.eq.s32.totalorder %s24, 1
    %p41 = por %p39, %p40
    %p42 = scmp.ne.s32.totalorder %s34, %s37
    %p43 = scmp.eq.s32.totalorder %s24, 0
    %p44 = por %p42, %p43
    %p45 = scmp.ne.s32.totalorder %s34, %s37
    %p46 = scmp.eq.s32.totalorder %s29, 1
    %p47 = por %p45, %p46
    %p48 = scmp.ne.s32.totalorder %s37, %s38
    %p49 = scmp.eq.s32.totalorder %s29, 0
    %p50 = por %p48, %p49
    %p51 = scmp.ne.s32.totalorder %s37, %s38
    %p52 = scmp.eq.s32.totalorder %s30, 1
    %p53 = por %p51, %p52
    %p55 = scmp.ne.s32.totalorder %s38, %s54
    %p56 = scmp.eq.s32.totalorder %s30, 0
    %p57 = por %p55, %p56
    %s58 = ssub.s32 %s24, %s31
    %p59 = scmp.eq.s32.totalorder %s58, 0
    %s61 = sadd.s32 %s60, 1
    %s62 = scalar_select %p59, %s60, %s61
    %p65 = pneg %p59
    %p66 = scmp.eq.s32.totalorder %s24, 1
    %p67 = por %p65, %p66
    %p68 = scmp.ne.s32.totalorder %s60, %s63
    %p69 = scmp.eq.s32.totalorder %s24, 0
    %p70 = por %p68, %p69
    %p71 = scmp.ne.s32.totalorder %s60, %s63
    %p72 = scmp.eq.s32.totalorder %s29, 1
    %p73 = por %p71, %p72
    %p74 = scmp.ne.s32.totalorder %s63, %s64
    %p75 = scmp.eq.s32.totalorder %s29, 0
    %p76 = por %p74, %p75
    %p77 = scmp.ne.s32.totalorder %s63, %s64
    %p78 = scmp.eq.s32.totalorder %s30, 1
    %p79 = por %p77, %p78
    %p81 = scmp.ne.s32.totalorder %s64, %s80
    %p82 = scmp.eq.s32.totalorder %s30, 0
    %p83 = por %p81, %p82
    %s84 = ssub.s32 %s24, %s31
    %p85 = scmp.eq.s32.totalorder %s84, 0
    %s87 = sadd.s32 %s86, 1
    %s88 = scalar_select %p85, %s86, %s87
    %p91 = pneg %p85
    %p92 = scmp.eq.s32.totalorder %s24, 1
    %p93 = por %p91, %p92
    %p94 = scmp.ne.s32.totalorder %s86, %s89
    %p95 = scmp.eq.s32.totalorder %s24, 0
    %p96 = por %p94, %p95
    %p97 = scmp.ne.s32.totalorder %s86, %s89
    %p98 = scmp.eq.s32.totalorder %s29, 1
    %p99 = por %p97, %p98
    %p100 = scmp.ne.s32.totalorder %s89, %s90
    %p101 = scmp.eq.s32.totalorder %s29, 0
    %p102 = por %p100, %p101
    %p103 = scmp.ne.s32.totalorder %s89, %s90
    %p104 = scmp.eq.s32.totalorder %s30, 1
    %p105 = por %p103, %p104
    %p107 = scmp.ne.s32.totalorder %s90, %s106
    %p108 = scmp.eq.s32.totalorder %s30, 0
    %p109 = por %p107, %p108
    %s110 = ssub.s32 %s24, %s31
    %p111 = scmp.eq.s32.totalorder %s110, 0
    %s113 = sadd.s32 %s112, 1
    %s114 = scalar_select %p111, %s112, %s113
    %p117 = pneg %p111
    %p118 = scmp.eq.s32.totalorder %s24, 1
    %p119 = por %p117, %p118
    %p120 = scmp.ne.s32.totalorder %s112, %s115
    %p121 = scmp.eq.s32.totalorder %s24, 0
    %p122 = por %p120, %p121
    %p123 = scmp.ne.s32.totalorder %s112, %s115
    %p124 = scmp.eq.s32.totalorder %s29, 1
    %p125 = por %p123, %p124
    %p126 = scmp.ne.s32.totalorder %s115, %s116
    %p127 = scmp.eq.s32.totalorder %s29, 0
    %p128 = por %p126, %p127
    %p129 = scmp.ne.s32.totalorder %s115, %s116
    %p130 = scmp.eq.s32.totalorder %s30, 1
    %p131 = por %p129, %p130
    %p133 = scmp.ne.s32.totalorder %s116, %s132
    %p134 = scmp.eq.s32.totalorder %s30, 0
    %p135 = por %p133, %p134
    %s137 = sadd.s32 %s136, 1
    %p140 = scmp.eq.s32.totalorder %s24, 1
    %p141 = scmp.ne.s32.totalorder %s136, %s138
    %p142 = scmp.eq.s32.totalorder %s24, 0
    %p143 = por %p141, %p142
    %p144 = scmp.ne.s32.totalorder %s136, %s138
    %p145 = scmp.eq.s32.totalorder %s29, 1
    %p146 = por %p144, %p145
    %p147 = scmp.ne.s32.totalorder %s138, %s139
    %p148 = scmp.eq.s32.totalorder %s29, 0
    %p149 = por %p147, %p148
    %p150 = scmp.ne.s32.totalorder %s138, %s139
    %p151 = scmp.eq.s32.totalorder %s30, 1
    %p152 = por %p150, %p151
    %p154 = scmp.ne.s32.totalorder %s139, %s153
    %p155 = scmp.eq.s32.totalorder %s30, 0
    %p156 = por %p154, %p155
    %s158 = sadd.s32 %s157, 1
    %p161 = scmp.eq.s32.totalorder %s24, 1
    %p162 = scmp.ne.s32.totalorder %s157, %s159
    %p163 = scmp.eq.s32.totalorder %s24, 0
    %p164 = por %p162, %p163
    %p165 = scmp.ne.s32.totalorder %s157, %s159
    %p166 = scmp.eq.s32.totalorder %s29, 1
    %p167 = por %p165, %p166
    %p168 = scmp.ne.s32.totalorder %s159, %s160
    %p169 = scmp.eq.s32.totalorder %s29, 0
    %p170 = por %p168, %p169
    %p171 = scmp.ne.s32.totalorder %s159, %s160
    %p172 = scmp.eq.s32.totalorder %s30, 1
    %p173 = por %p171, %p172
    %p175 = scmp.ne.s32.totalorder %s160, %s174
    %p176 = scmp.eq.s32.totalorder %s30, 0
    %p177 = por %p175, %p176
    %s179 = sadd.s32 %s178, 1
    %p182 = scmp.eq.s32.totalorder %s24, 1
    %p183 = scmp.ne.s32.totalorder %s178, %s180
    %p184 = scmp.eq.s32.totalorder %s24, 0
    %p185 = por %p183, %p184
    %p186 = scmp.ne.s32.totalorder %s178, %s180
    %p187 = scmp.eq.s32.totalorder %s29, 1
    %p188 = por %p186, %p187
    %p189 = scmp.ne.s32.totalorder %s180, %s181
    %p190 = scmp.eq.s32.totalorder %s29, 0
    %p191 = por %p189, %p190
    %p192 = scmp.ne.s32.totalorder %s180, %s181
    %p193 = scmp.eq.s32.totalorder %s30, 1
    %p194 = por %p192, %p193
    %p196 = scmp.ne.s32.totalorder %s181, %s195
    %p197 = scmp.eq.s32.totalorder %s30, 0
    %p198 = por %p196, %p197
    %s200 = sadd.s32 %s199, 1
    %p203 = scmp.eq.s32.totalorder %s24, 1
    %p204 = scmp.ne.s32.totalorder %s199, %s201
    %p205 = scmp.eq.s32.totalorder %s24, 0
    %p206 = por %p204, %p205
    %p207 = scmp.ne.s32.totalorder %s199, %s201
    %p208 = scmp.eq.s32.totalorder %s29, 1
    %p209 = por %p207, %p208
    %p210 = scmp.ne.s32.totalorder %s201, %s202
    %p211 = scmp.eq.s32.totalorder %s29, 0
    %p212 = por %p210, %p211
    %p213 = scmp.ne.s32.totalorder %s201, %s202
    %p214 = scmp.eq.s32.totalorder %s30, 1
    %p215 = por %p213, %p214
    %p217 = scmp.ne.s32.totalorder %s202, %s216
    %p218 = scmp.eq.s32.totalorder %s30, 0
    %p219 = por %p217, %p218
    %s221 = sadd.s32 %s220, 1
    %p224 = scmp.eq.s32.totalorder %s24, 1
    %p225 = scmp.ne.s32.totalorder %s220, %s222
    %p226 = scmp.eq.s32.totalorder %s24, 0
    %p227 = por %p225, %p226
    %p228 = scmp.ne.s32.totalorder %s220, %s222
    %p229 = scmp.eq.s32.totalorder %s29, 1
    %p230 = por %p228, %p229
    %p231 = scmp.ne.s32.totalorder %s222, %s223
    %p232 = scmp.eq.s32.totalorder %s29, 0
    %p233 = por %p231, %p232
    %p234 = scmp.ne.s32.totalorder %s222, %s223
    %p235 = scmp.eq.s32.totalorder %s30, 1
    %p236 = por %p234, %p235
    %p238 = scmp.ne.s32.totalorder %s223, %s237
    %p239 = scmp.eq.s32.totalorder %s30, 0
    %p240 = por %p238, %p239
    %s242 = sadd.s32 %s241, 1
    %p245 = scmp.eq.s32.totalorder %s24, 1
    %p246 = scmp.ne.s32.totalorder %s241, %s243
    %p247 = scmp.eq.s32.totalorder %s24, 0
    %p248 = por %p246, %p247
    %p249 = scmp.ne.s32.totalorder %s241, %s243
    %p250 = scmp.eq.s32.totalorder %s29, 1
    %p251 = por %p249, %p250
    %p252 = scmp.ne.s32.totalorder %s243, %s244
    %p253 = scmp.eq.s32.totalorder %s29, 0
    %p254 = por %p252, %p253
    %p255 = scmp.ne.s32.totalorder %s243, %s244
    %p256 = scmp.eq.s32.totalorder %s30, 1
    %p257 = por %p255, %p256
    %p259 = scmp.ne.s32.totalorder %s244, %s258
    %p260 = scmp.eq.s32.totalorder %s30, 0
    %p261 = por %p259, %p260
    %s263 = sadd.s32 %s262, 1
    %p266 = scmp.eq.s32.totalorder %s24, 1
    %p267 = scmp.ne.s32.totalorder %s262, %s264
    %p268 = scmp.eq.s32.totalorder %s24, 0
    %p269 = por %p267, %p268
    %p270 = scmp.ne.s32.totalorder %s262, %s264
    %p271 = scmp.eq.s32.totalorder %s29, 1
    %p272 = por %p270, %p271
    %p273 = scmp.ne.s32.totalorder %s264, %s265
    %p274 = scmp.eq.s32.totalorder %s29, 0
    %p275 = por %p273, %p274
    %p276 = scmp.ne.s32.totalorder %s264, %s265
    %p277 = scmp.eq.s32.totalorder %s30, 1
    %p278 = por %p276, %p277
    %p280 = scmp.ne.s32.totalorder %s265, %s279
    %p281 = scmp.eq.s32.totalorder %s30, 0
    %p282 = por %p280, %p281
    %s284 = sadd.s32 %s283, 1
    %p287 = scmp.eq.s32.totalorder %s24, 1
    %p288 = scmp.ne.s32.totalorder %s283, %s285
    %p289 = scmp.eq.s32.totalorder %s24, 0
    %p290 = por %p288, %p289
    %p291 = scmp.ne.s32.totalorder %s283, %s285
    %p292 = scmp.eq.s32.totalorder %s29, 1
    %p293 = por %p291, %p292
    %p294 = scmp.ne.s32.totalorder %s285, %s286
    %p295 = scmp.eq.s32.totalorder %s29, 0
    %p296 = por %p294, %p295
    %p297 = scmp.ne.s32.totalorder %s285, %s286
    %p298 = scmp.eq.s32.totalorder %s30, 1
    %p299 = por %p297, %p298
    %p301 = scmp.ne.s32.totalorder %s286, %s300
    %p302 = scmp.eq.s32.totalorder %s30, 0
    %p303 = por %p301, %p302
    %s305 = sadd.s32 %s304, 1
    %p308 = scmp.eq.s32.totalorder %s24, 1
    %p309 = scmp.ne.s32.totalorder %s304, %s306
    %p310 = scmp.eq.s32.totalorder %s24, 0
    %p311 = por %p309, %p310
    %p312 = scmp.ne.s32.totalorder %s304, %s306
    %p313 = scmp.eq.s32.totalorder %s29, 1
    %p314 = por %p312, %p313
    %p315 = scmp.ne.s32.totalorder %s306, %s307
    %p316 = scmp.eq.s32.totalorder %s29, 0
    %p317 = por %p315, %p316
    %p318 = scmp.ne.s32.totalorder %s306, %s307
    %p319 = scmp.eq.s32.totalorder %s30, 1
    %p320 = por %p318, %p319
    %p322 = scmp.ne.s32.totalorder %s307, %s321
    %p323 = scmp.eq.s32.totalorder %s30, 0
    %p324 = por %p322, %p323
    %s326 = sadd.s32 %s325, 1
    %p329 = scmp.eq.s32.totalorder %s24, 1
    %p330 = scmp.ne.s32.totalorder %s325, %s327
    %p331 = scmp.eq.s32.totalorder %s24, 0
    %p332 = por %p330, %p331
    %p333 = scmp.ne.s32.totalorder %s325, %s327
    %p334 = scmp.eq.s32.totalorder %s29, 1
    %p335 = por %p333, %p334
    %p336 = scmp.ne.s32.totalorder %s327, %s328
    %p337 = scmp.eq.s32.totalorder %s29, 0
    %p338 = por %p336, %p337
    %p339 = scmp.ne.s32.totalorder %s327, %s328
    %p340 = scmp.eq.s32.totalorder %s30, 1
    %p341 = por %p339, %p340
    %p343 = scmp.ne.s32.totalorder %s328, %s342
    %p344 = scmp.eq.s32.totalorder %s30, 0
    %p345 = por %p343, %p344
    %s347 = sadd.s32 %s346, 1
    %p350 = scmp.eq.s32.totalorder %s24, 1
    %p351 = scmp.ne.s32.totalorder %s346, %s348
    %p352 = scmp.eq.s32.totalorder %s24, 0
    %p353 = por %p351, %p352
    %p354 = scmp.ne.s32.totalorder %s346, %s348
    %p355 = scmp.eq.s32.totalorder %s29, 1
    %p356 = por %p354, %p355
    %p357 = scmp.ne.s32.totalorder %s348, %s349
    %p358 = scmp.eq.s32.totalorder %s29, 0
    %p359 = por %p357, %p358
    %p360 = scmp.ne.s32.totalorder %s348, %s349
    %p361 = scmp.eq.s32.totalorder %s30, 1
    %p362 = por %p360, %p361
    %p364 = scmp.ne.s32.totalorder %s349, %s363
    %p365 = scmp.eq.s32.totalorder %s30, 0
    %p366 = por %p364, %p365
    %s368 = sadd.s32 %s367, 1
    %p371 = scmp.eq.s32.totalorder %s24, 1
    %p372 = scmp.ne.s32.totalorder %s367, %s369
    %p373 = scmp.eq.s32.totalorder %s24, 0
    %p374 = por %p372, %p373
    %p375 = scmp.ne.s32.totalorder %s367, %s369
    %p376 = scmp.eq.s32.totalorder %s29, 1
    %p377 = por %p375, %p376
    %p378 = scmp.ne.s32.totalorder %s369, %s370
    %p379 = scmp.eq.s32.totalorder %s29, 0
    %p380 = por %p378, %p379
    %p381 = scmp.ne.s32.totalorder %s369, %s370
    %p382 = scmp.eq.s32.totalorder %s30, 1
    %p383 = por %p381, %p382
    %p385 = scmp.ne.s32.totalorder %s370, %s384
    %p386 = scmp.eq.s32.totalorder %s30, 0
    %p387 = por %p385, %p386
    %s389 = sadd.s32 %s388, 1
    %p392 = scmp.eq.s32.totalorder %s24, 1
    %p393 = scmp.ne.s32.totalorder %s388, %s390
    %p394 = scmp.eq.s32.totalorder %s24, 0
    %p395 = por %p393, %p394
    %p396 = scmp.ne.s32.totalorder %s388, %s390
    %p397 = scmp.eq.s32.totalorder %s29, 1
    %p398 = por %p396, %p397
    %p399 = scmp.ne.s32.totalorder %s390, %s391
    %p400 = scmp.eq.s32.totalorder %s29, 0
    %p401 = por %p399, %p400
    %p402 = scmp.ne.s32.totalorder %s390, %s391
    %p403 = scmp.eq.s32.totalorder %s30, 1
    %p404 = por %p402, %p403
    %p406 = scmp.ne.s32.totalorder %s391, %s405
    %p407 = scmp.eq.s32.totalorder %s30, 0
    %p408 = por %p406, %p407
    %s410 = sadd.s32 %s409, 1
    %p413 = scmp.eq.s32.totalorder %s24, 1
    %p414 = scmp.ne.s32.totalorder %s409, %s411
    %p415 = scmp.eq.s32.totalorder %s24, 0
    %p416 = por %p414, %p415
    %p417 = scmp.ne.s32.totalorder %s409, %s411
    %p418 = scmp.eq.s32.totalorder %s29, 1
    %p419 = por %p417, %p418
    %p420 = scmp.ne.s32.totalorder %s411, %s412
    %p421 = scmp.eq.s32.totalorder %s29, 0
    %p422 = por %p420, %p421
    %p423 = scmp.ne.s32.totalorder %s411, %s412
    %p424 = scmp.eq.s32.totalorder %s30, 1
    %p425 = por %p423, %p424
    %p427 = scmp.ne.s32.totalorder %s412, %s426
    %p428 = scmp.eq.s32.totalorder %s30, 0
    %p429 = por %p427, %p428
    %s430 = ssub.s32 %s24, %s31
    %p431 = scmp.eq.s32.totalorder %s430, 0
    %s433 = sadd.s32 %s432, 1
    %s434 = scalar_select %p431, %s432, %s433
    %p437 = pneg %p431
    %p438 = scmp.eq.s32.totalorder %s24, 1
    %p439 = por %p437, %p438
    %p440 = scmp.ne.s32.totalorder %s432, %s435
    %p441 = scmp.eq.s32.totalorder %s24, 0
    %p442 = por %p440, %p441
    %p443 = scmp.ne.s32.totalorder %s432, %s435
    %p444 = scmp.eq.s32.totalorder %s29, 1
    %p445 = por %p443, %p444
    %p446 = scmp.ne.s32.totalorder %s435, %s436
    %p447 = scmp.eq.s32.totalorder %s29, 0
    %p448 = por %p446, %p447
    %p449 = scmp.ne.s32.totalorder %s435, %s436
    %p450 = scmp.eq.s32.totalorder %s30, 1
    %p451 = por %p449, %p450
    %p453 = scmp.ne.s32.totalorder %s436, %s452
    %p454 = scmp.eq.s32.totalorder %s30, 0
    %p455 = por %p453, %p454
    %p456 = scmp.le.s32.totalorder 1, %s24
    %p457 = scmp.lt.s32.totalorder %s24, 3
    %p458 = pnand %p456, %p457
    %p459 = pneg %p458
    // Predicated region
    $region9: #{graph_encoder_forward.2} parent=5 // pred_check
      _
    $region10: #{graph_encoder_forward.2} parent=5 // pred_check_branch
      %461 = sbr.rel (%p458) target = $region12
    $region11: #{graph_encoder_forward.2} parent=5 // pred_region
      %s462 = ssub.s32 %s24, 1
      // Predicated region
      $region13: #{graph_encoder_forward.2} parent=11 // pred_check
        %p463 = pneg %p149
      $region14: #{graph_encoder_forward.2} parent=11 // pred_check_branch
        %465 = sbr.rel (%p463) target = $region16
      $region15: #{graph_encoder_forward.2} parent=11 // pred_region
        _
      $region16: #{graph_encoder_forward.2} parent=11 // pred_fallthru
        _
      // Predicated region
      $region17: #{graph_encoder_forward.2} parent=11 // pred_check
        %p466 = pneg %p170
      $region18: #{graph_encoder_forward.2} parent=11 // pred_check_branch
        %468 = sbr.rel (%p466) target = $region20
      $region19: #{graph_encoder_forward.2} parent=11 // pred_region
        _
      $region20: #{graph_encoder_forward.2} parent=11 // pred_fallthru
        _
      // Predicated region
      $region21: #{graph_encoder_forward.2} parent=11 // pred_check
        %p469 = pneg %p191
      $region22: #{graph_encoder_forward.2} parent=11 // pred_check_branch
        %471 = sbr.rel (%p469) target = $region24
      $region23: #{graph_encoder_forward.2} parent=11 // pred_region
        _
      $region24: #{graph_encoder_forward.2} parent=11 // pred_fallthru
        _
      // Predicated region
      $region25: #{graph_encoder_forward.2} parent=11 // pred_check
        %p472 = pneg %p212
      $region26: #{graph_encoder_forward.2} parent=11 // pred_check_branch
        %474 = sbr.rel (%p472) target = $region28
      $region27: #{graph_encoder_forward.2} parent=11 // pred_region
        _
      $region28: #{graph_encoder_forward.2} parent=11 // pred_fallthru
        _
      // Predicated region
      $region29: #{graph_encoder_forward.2} parent=11 // pred_check
        %p475 = pneg %p233
      $region30: #{graph_encoder_forward.2} parent=11 // pred_check_branch
        %477 = sbr.rel (%p475) target = $region32
      $region31: #{graph_encoder_forward.2} parent=11 // pred_region
        _
      $region32: #{graph_encoder_forward.2} parent=11 // pred_fallthru
        _
      // Predicated region
      $region33: #{graph_encoder_forward.2} parent=11 // pred_check
        %p478 = pneg %p254
      $region34: #{graph_encoder_forward.2} parent=11 // pred_check_branch
        %480 = sbr.rel (%p478) target = $region36
      $region35: #{graph_encoder_forward.2} parent=11 // pred_region
        _
      $region36: #{graph_encoder_forward.2} parent=11 // pred_fallthru
        _
      // Predicated region
      $region37: #{graph_encoder_forward.2} parent=11 // pred_check
        %p481 = pneg %p275
      $region38: #{graph_encoder_forward.2} parent=11 // pred_check_branch
        %483 = sbr.rel (%p481) target = $region40
      $region39: #{graph_encoder_forward.2} parent=11 // pred_region
        _
      $region40: #{graph_encoder_forward.2} parent=11 // pred_fallthru
        _
      // Predicated region
      $region41: #{graph_encoder_forward.2} parent=11 // pred_check
        %p484 = pneg %p296
      $region42: #{graph_encoder_forward.2} parent=11 // pred_check_branch
        %486 = sbr.rel (%p484) target = $region44
      $region43: #{graph_encoder_forward.2} parent=11 // pred_region
        _
      $region44: #{graph_encoder_forward.2} parent=11 // pred_fallthru
        _
      // Predicated region
      $region45: #{graph_encoder_forward.2} parent=11 // pred_check
        %p487 = pneg %p317
      $region46: #{graph_encoder_forward.2} parent=11 // pred_check_branch
        %489 = sbr.rel (%p487) target = $region48
      $region47: #{graph_encoder_forward.2} parent=11 // pred_region
        _
      $region48: #{graph_encoder_forward.2} parent=11 // pred_fallthru
        _
      // Predicated region
      $region49: #{graph_encoder_forward.2} parent=11 // pred_check
        %p490 = pneg %p338
      $region50: #{graph_encoder_forward.2} parent=11 // pred_check_branch
        %492 = sbr.rel (%p490) target = $region52
      $region51: #{graph_encoder_forward.2} parent=11 // pred_region
        _
      $region52: #{graph_encoder_forward.2} parent=11 // pred_fallthru
        _
      // Predicated region
      $region53: #{graph_encoder_forward.2} parent=11 // pred_check
        %p493 = pneg %p359
      $region54: #{graph_encoder_forward.2} parent=11 // pred_check_branch
        %495 = sbr.rel (%p493) target = $region56
      $region55: #{graph_encoder_forward.2} parent=11 // pred_region
        _
      $region56: #{graph_encoder_forward.2} parent=11 // pred_fallthru
        _
      // Predicated region
      $region57: #{graph_encoder_forward.2} parent=11 // pred_check
        %p496 = pneg %p380
      $region58: #{graph_encoder_forward.2} parent=11 // pred_check_branch
        %498 = sbr.rel (%p496) target = $region60
      $region59: #{graph_encoder_forward.2} parent=11 // pred_region
        _
      $region60: #{graph_encoder_forward.2} parent=11 // pred_fallthru
        _
      // Predicated region
      $region61: #{graph_encoder_forward.2} parent=11 // pred_check
        %p499 = pneg %p401
      $region62: #{graph_encoder_forward.2} parent=11 // pred_check_branch
        %501 = sbr.rel (%p499) target = $region64
      $region63: #{graph_encoder_forward.2} parent=11 // pred_region
        _
      $region64: #{graph_encoder_forward.2} parent=11 // pred_fallthru
        _
      // Predicated region
      $region65: #{graph_encoder_forward.2} parent=11 // pred_check
        %p502 = pneg %p422
      $region66: #{graph_encoder_forward.2} parent=11 // pred_check_branch
        %504 = sbr.rel (%p502) target = $region68
      $region67: #{graph_encoder_forward.2} parent=11 // pred_region
        _
      $region68: #{graph_encoder_forward.2} parent=11 // pred_fallthru
        _
    $region12: #{graph_encoder_forward.2} parent=5 // pred_fallthru
      _
    %p505 = scmp.lt.s32.totalorder %s24, 2
    // Predicated region
    $region69: #{graph_encoder_forward.2} parent=5 // pred_check
      %p506 = pneg %p505
    $region70: #{graph_encoder_forward.2} parent=5 // pred_check_branch
      %508 = sbr.rel (%p506) target = $region72
    $region71: #{graph_encoder_forward.2} parent=5 // pred_region
      // Predicated region
      $region73: #{graph_encoder_forward.2} parent=71 // pred_check
        %p509 = pneg %p44
      $region74: #{graph_encoder_forward.2} parent=71 // pred_check_branch
        %511 = sbr.rel (%p509) target = $region76
      $region75: #{graph_encoder_forward.2} parent=71 // pred_region
        %s512 = smul.u32 2, %s24
        %p513 = scmp.lt.s32.totalorder %s512, 3
        %s514 = scalar_select %p513, %s512, 3
        %s515 = smul.addr %s514, 8
        %s516 = scalar_lea.vmem %s0, %s515
        %s517 = smul.u32 2, %s24
      $region76: #{graph_encoder_forward.2} parent=71 // pred_fallthru
        _
      // Predicated region
      $region77: #{graph_encoder_forward.2} parent=71 // pred_check
        %p518 = pneg %p70
      $region78: #{graph_encoder_forward.2} parent=71 // pred_check_branch
        %520 = sbr.rel (%p518) target = $region80
      $region79: #{graph_encoder_forward.2} parent=71 // pred_region
        %s521 = smul.u32 2, %s24
        %p522 = scmp.lt.s32.totalorder %s521, 3
        %s523 = scalar_select %p522, %s521, 3
        %s524 = smul.addr %s523, 8
        %s525 = scalar_lea.vmem %s1, %s524
        %s526 = smul.u32 2, %s24
      $region80: #{graph_encoder_forward.2} parent=71 // pred_fallthru
        _
      // Predicated region
      $region81: #{graph_encoder_forward.2} parent=71 // pred_check
        %p527 = pneg %p96
      $region82: #{graph_encoder_forward.2} parent=71 // pred_check_branch
        %529 = sbr.rel (%p527) target = $region84
      $region83: #{graph_encoder_forward.2} parent=71 // pred_region
        %s530 = smul.u32 2, %s24
        %p531 = scmp.lt.s32.totalorder %s530, 3
        %s532 = scalar_select %p531, %s530, 3
        %s533 = scalar_lea.vmem %s2, %s532
        %s534 = smul.u32 2, %s24
      $region84: #{graph_encoder_forward.2} parent=71 // pred_fallthru
        _
      // Predicated region
      $region85: #{graph_encoder_forward.2} parent=71 // pred_check
        %p535 = pneg %p122
      $region86: #{graph_encoder_forward.2} parent=71 // pred_check_branch
        %537 = sbr.rel (%p535) target = $region88
      $region87: #{graph_encoder_forward.2} parent=71 // pred_region
        %s538 = smul.u32 2, %s24
        %p539 = scmp.lt.s32.totalorder %s538, 3
        %s540 = scalar_select %p539, %s538, 3
        %s541 = smul.addr %s540, 8
        %s542 = scalar_lea.vmem %s3, %s541
        %s543 = smul.u32 2, %s24
      $region88: #{graph_encoder_forward.2} parent=71 // pred_fallthru
        _
    $region72: #{graph_encoder_forward.2} parent=5 // pred_fallthru
      _
    %p544 = scmp.le.s32.totalorder 1, %s24
    %p545 = scmp.lt.s32.totalorder %s24, 3
    %p546 = pnand %p544, %p545
    %p547 = pneg %p546
    // Predicated region
    $region89: #{graph_encoder_forward.2} parent=5 // pred_check
      _
    $region90: #{graph_encoder_forward.2} parent=5 // pred_check_branch
      %549 = sbr.rel (%p546) target = $region92
    $region91: #{graph_encoder_forward.2} parent=5 // pred_region
      %s550 = ssub.s32 %s24, 1
      %s551 = smul.u32 2, %s29
      %p552 = scmp.lt.s32.totalorder %s551, 3
      %s553 = scalar_select %p552, %s551, 3
      %s554 = smul.addr %s553, 8
      %s555 = scalar_lea.vmem %s0, %s554
      %p556 = pneg %p50
      %p557 = pneg %p47
      %s558 = smul.u32 2, %s29
      %p559 = scmp.lt.s32.totalorder %s558, 3
      %s560 = scalar_select %p559, %s558, 3
      %s561 = smul.addr %s560, 8
      %s562 = scalar_lea.vmem %s1, %s561
      %p563 = pneg %p76
      %p564 = pneg %p73
      %s565 = smul.u32 2, %s29
      %p566 = scmp.lt.s32.totalorder %s565, 3
      %s567 = scalar_select %p566, %s565, 3
      %s568 = scalar_lea.vmem %s2, %s567
      %p569 = pneg %p102
      %p570 = pneg %p99
      %s571 = smul.u32 2, %s29
      %p572 = scmp.lt.s32.totalorder %s571, 3
      %s573 = scalar_select %p572, %s571, 3
      %s574 = smul.addr %s573, 8
      %s575 = scalar_lea.vmem %s3, %s574
      %p576 = pneg %p128
      %p577 = pneg %p125
      %p578 = pneg %p149
      %p579 = pneg %p146
      %p580 = pneg %p170
      %p581 = pneg %p167
      %p582 = pneg %p191
      %p583 = pneg %p188
      %p584 = pneg %p212
      %p585 = pneg %p209
      %p586 = pneg %p233
      %p587 = pneg %p230
      %p588 = pneg %p254
      %p589 = pneg %p251
      %p590 = pneg %p275
      %p591 = pneg %p272
      %p592 = pneg %p296
      %p593 = pneg %p293
      %p594 = pneg %p317
      %p595 = pneg %p314
      %p596 = pneg %p338
      %p597 = pneg %p335
      %p598 = pneg %p359
      %p599 = pneg %p356
      %p600 = pneg %p380
      %p601 = pneg %p377
      %p602 = pneg %p401
      %p603 = pneg %p398
      %p604 = pneg %p422
      %p605 = pneg %p419
      %p606 = pneg %p448
      %p607 = pneg %p445
      %s608 = smul.u32 2, %s29
      %p609 = scmp.lt.s32.totalorder %s608, 3
      %s610 = scalar_select %p609, %s608, 3
      %s611 = smul.addr %s610, 8
      %s612 = scalar_lea.vmem %s18, %s611
      %s613 = smul.u32 2, %s29
      %p614 = scmp.lt.s32.totalorder %s613, 3
      %s615 = scalar_select %p614, %s613, 3
      %s616 = smul.addr %s615, 8
      %s617 = scalar_lea.vmem %s0, %s616
      %s618 = smul.u32 2, %s29
      %s619 = smul.u32 2, %s29
      %p620 = scmp.lt.s32.totalorder %s619, 3
      %s621 = scalar_select %p620, %s619, 3
      %s622 = smul.addr %s621, 8
      %s623 = scalar_lea.vmem %s1, %s622
      %s624 = smul.u32 2, %s29
      %s625 = smul.u32 2, %s29
      %p626 = scmp.lt.s32.totalorder %s625, 3
      %s627 = scalar_select %p626, %s625, 3
      %s628 = scalar_lea.vmem %s2, %s627
      %s629 = smul.u32 2, %s29
      %s630 = smul.u32 2, %s29
      %p631 = scmp.lt.s32.totalorder %s630, 3
      %s632 = scalar_select %p631, %s630, 3
      %s633 = smul.addr %s632, 8
      %s634 = scalar_lea.vmem %s3, %s633
      %s635 = smul.u32 2, %s29
      %s636 = smul.u32 2, %s29
      %p637 = scmp.lt.s32.totalorder %s636, 3
      %s638 = scalar_select %p637, %s636, 3
      %s639 = smul.addr %s638, 8
      %s640 = scalar_lea.vmem %s18, %s639
      %s641 = smul.u32 2, %s29
      %v643 = vld [vmem:[%s617] sm:$0xff]
      %v644 = vld [vmem:[%s617 + $0x8] sm:$0xff]
      %v645 = vld [vmem:[%s623] sm:$0xff]
      %v646 = vld [vmem:[%s623 + $0x8] sm:$0xff]
      %v647 = vpack.c.bf16 %v644, %v643
      %v648 = vld [vmem:[%s4] sm:$0xf]
      %v649 = vld [vmem:[%s4 + $0x4] sm:$0xf]
      %v650 = vld [vmem:[%s4 + $0x8] sm:$0xf]
      %v651 = vld [vmem:[%s4 + $0xc] sm:$0xf]
      %v652 = vld [vmem:[%s5] sm:$0x1]
      %v654 = vlaneseq
      %v655 = vshrl.u32 %v654, 7
      %v656 = vsub.s32 0, %v655
      %v657 = vrot.slane %v652, %v656
      %v663 = vunpack.c.l.b16 %v648
      %v664 = vunpack.c.l.b16 %v649
      %v665 = vunpack.c.l.b16 %v650
      %v666 = vunpack.c.l.b16 %v651
      %v667 = vpack.c.b16 %v664, %v663
      %v668 = vpack.c.b16 %v666, %v665
      %vm671 = vcmask 261120
      %v673 = vsel %vm671, %v647, 0
      %675 = vmatprep.subr.bf16.mxu0 0
      %676 = vmatpush1.bf16.msra.mxu0 %v667
      %677 = vmatprep.subr.bf16.mxu0 0
      %678 = vmatpush1.bf16.msra.mxu0 %v668
      %679 = vmatprep.subr.bf16.mxu0 0
      %680 = vmatpush1.bf16.msra.mxu0 0
      %681 = vmatprep.subr.bf16.mxu0 0
      %682 = vmatpush1.bf16.msra.mxu0 0
      %683 = vmatprep.subr.bf16.mxu0 0
      %684 = vmatpush1.bf16.msra.mxu0 0
      %685 = vmatprep.subr.bf16.mxu0 0
      %686 = vmatpush1.bf16.msra.mxu0 0
      %687 = vmatprep.subr.bf16.mxu0 0
      %688 = vmatpush1.bf16.msra.mxu0 0
      %689 = vmatprep.subr.bf16.mxu0 0
      %690 = vmatpush1.bf16.msra.mxu0 0
      %691 = vmatprep.subr.bf16.mxu0 0
      %692 = vmatpush1.bf16.msra.mxu0 0
      %693 = vmatprep.subr.bf16.mxu0 0
      %694 = vmatpush1.bf16.msra.mxu0 0
      %695 = vmatprep.subr.bf16.mxu0 0
      %696 = vmatpush1.bf16.msra.mxu0 0
      %697 = vmatprep.subr.bf16.mxu0 0
      %698 = vmatpush1.bf16.msra.mxu0 0
      %699 = vmatprep.subr.bf16.mxu0 0
      %700 = vmatpush1.bf16.msra.mxu0 0
      %701 = vmatprep.subr.bf16.mxu0 0
      %702 = vmatpush1.bf16.msra.mxu0 0
      %703 = vmatprep.subr.bf16.mxu0 0
      %704 = vmatpush1.bf16.msra.mxu0 0
      %705 = vmatprep.subr.bf16.mxu0 0
      %706 = vmatpush1.bf16.msra.mxu0 0
      %707 = vmatprep.mubr.bf16.mxu0 0
      %708 = vmatmul.mubr.bf16.gmra.mrb[0].mxu0 %v673
      %v709 = vpop.f32.mrb[0].mxu0
      %v710 = vadd.f32 %v657, %v709
      %v711 = vpop.f32.mrb[0].mxu0
      %v712 = vpop.f32.mrb[0].mxu0
      %v713 = vadd.f32 %v657, %v712
      %v714 = vpop.f32.mrb[0].mxu0
      %715 = vdwg.mxu0
      %v716 = vpack.c.bf16 %v646, %v645
      %v717 = vld [vmem:[%s6] sm:$0xf]
      %v718 = vld [vmem:[%s6 + $0x4] sm:$0xf]
      %v719 = vld [vmem:[%s6 + $0x8] sm:$0xf]
      %v720 = vld [vmem:[%s6 + $0xc] sm:$0xf]
      %v721 = vld [vmem:[%s7] sm:$0x1]
      %v723 = vlaneseq
      %v724 = vshrl.u32 %v723, 7
      %v725 = vsub.s32 0, %v724
      %v726 = vrot.slane %v721, %v725
      %v732 = vunpack.c.l.b16 %v717
      %v733 = vunpack.c.l.b16 %v718
      %v734 = vunpack.c.l.b16 %v719
      %v735 = vunpack.c.l.b16 %v720
      %v736 = vpack.c.b16 %v733, %v732
      %v737 = vpack.c.b16 %v735, %v734
      %v741 = vsel %vm671, %v716, 0
      %743 = vmatprep.subr.bf16.mxu0 0
      %744 = vmatpush1.bf16.msra.mxu0 %v736
      %745 = vmatprep.subr.bf16.mxu0 0
      %746 = vmatpush1.bf16.msra.mxu0 %v737
      %747 = vmatprep.subr.bf16.mxu0 0
      %748 = vmatpush1.bf16.msra.mxu0 0
      %749 = vmatprep.subr.bf16.mxu0 0
      %750 = vmatpush1.bf16.msra.mxu0 0
      %751 = vmatprep.subr.bf16.mxu0 0
      %752 = vmatpush1.bf16.msra.mxu0 0
      %753 = vmatprep.subr.bf16.mxu0 0
      %754 = vmatpush1.bf16.msra.mxu0 0
      %755 = vmatprep.subr.bf16.mxu0 0
      %756 = vmatpush1.bf16.msra.mxu0 0
      %757 = vmatprep.subr.bf16.mxu0 0
      %758 = vmatpush1.bf16.msra.mxu0 0
      %759 = vmatprep.subr.bf16.mxu0 0
      %760 = vmatpush1.bf16.msra.mxu0 0
      %761 = vmatprep.subr.bf16.mxu0 0
      %762 = vmatpush1.bf16.msra.mxu0 0
      %763 = vmatprep.subr.bf16.mxu0 0
      %764 = vmatpush1.bf16.msra.mxu0 0
      %765 = vmatprep.subr.bf16.mxu0 0
      %766 = vmatpush1.bf16.msra.mxu0 0
      %767 = vmatprep.subr.bf16.mxu0 0
      %768 = vmatpush1.bf16.msra.mxu0 0
      %769 = vmatprep.subr.bf16.mxu0 0
      %770 = vmatpush1.bf16.msra.mxu0 0
      %771 = vmatprep.subr.bf16.mxu0 0
      %772 = vmatpush1.bf16.msra.mxu0 0
      %773 = vmatprep.subr.bf16.mxu0 0
      %774 = vmatpush1.bf16.msra.mxu0 0
      %775 = vmatprep.mubr.bf16.mxu0 0
      %776 = vmatmul.mubr.bf16.gmra.mrb[0].mxu0 %v741
      %v777 = vpop.f32.mrb[0].mxu0
      %v778 = vadd.f32 %v726, %v777
      %v779 = vpop.f32.mrb[0].mxu0
      %v780 = vpop.f32.mrb[0].mxu0
      %v781 = vadd.f32 %v726, %v780
      %v782 = vpop.f32.mrb[0].mxu0
      %783 = vdwg.mxu0
      %v784 = vld [vmem:[%s628] sm:$0x1]
      %v785 = vld [vmem:[%s628 + $0x1] sm:$0x1]
      %v786 = vld [vmem:[%s634] sm:$0xff]
      %v787 = vld [vmem:[%s634 + $0x8] sm:$0xff]
      %v788 = vpack.c.bf16 %v710, %v710
      %v789 = vpack.c.bf16 %v713, %v713
      %v790 = vpack.c.bf16 %v778, %v778
      %v791 = vpack.c.bf16 %v781, %v781
      %vm792 = vcmask 130048
      %v794 = vsel %vm792, %v788, 0
      %v797 = vsel %vm792, %v790, 0
      %799 = vmatprep.subr.bf16.mxu0 0
      %800 = vmatpush1.bf16.xpose.msra.mxu0 %v797
      %801 = vmatprep.subr.bf16.mxu0 0
      %802 = vmatpush1.bf16.xpose.msra.mxu0 0
      %803 = vmatprep.subr.bf16.mxu0 0
      %804 = vmatpush1.bf16.xpose.msra.mxu0 0
      %805 = vmatprep.subr.bf16.mxu0 0
      %806 = vmatpush1.bf16.xpose.msra.mxu0 0
      %807 = vmatprep.subr.bf16.mxu0 0
      %808 = vmatpush1.bf16.xpose.msra.mxu0 0
      %809 = vmatprep.subr.bf16.mxu0 0
      %810 = vmatpush1.bf16.xpose.msra.mxu0 0
      %811 = vmatprep.subr.bf16.mxu0 0
      %812 = vmatpush1.bf16.xpose.msra.mxu0 0
      %813 = vmatprep.subr.bf16.mxu0 0
      %814 = vmatpush1.bf16.xpose.msra.mxu0 0
      %815 = vmatprep.subr.bf16.mxu0 0
      %816 = vmatpush1.bf16.xpose.msra.mxu0 0
      %817 = vmatprep.subr.bf16.mxu0 0
      %818 = vmatpush1.bf16.xpose.msra.mxu0 0
      %819 = vmatprep.subr.bf16.mxu0 0
      %820 = vmatpush1.bf16.xpose.msra.mxu0 0
      %821 = vmatprep.subr.bf16.mxu0 0
      %822 = vmatpush1.bf16.xpose.msra.mxu0 0
      %823 = vmatprep.subr.bf16.mxu0 0
      %824 = vmatpush1.bf16.xpose.msra.mxu0 0
      %825 = vmatprep.subr.bf16.mxu0 0
      %826 = vmatpush1.bf16.xpose.msra.mxu0 0
      %827 = vmatprep.subr.bf16.mxu0 0
      %828 = vmatpush1.bf16.xpose.msra.mxu0 0
      %829 = vmatprep.subr.bf16.mxu0 0
      %830 = vmatpush1.bf16.xpose.msra.mxu0 0
      %831 = vmatprep.mubr.bf16.mxu0 0
      %832 = vmatmul.mubr.bf16.gmra.mrb[0].mxu0 %v794
      %v833 = vpop.f32.mrb[0].mxu0
      %v834 = vadd.f32 0.0, %v833
      %v835 = vpop.f32.mrb[0].mxu0
      %v836 = vpop.f32.mrb[0].mxu0
      %v837 = vpop.f32.mrb[0].mxu0
      %838 = vdwg.mxu0
      %v840 = vsel %vm792, %v789, 0
      %v843 = vsel %vm792, %v791, 0
      %845 = vmatprep.subr.bf16.mxu0 0
      %846 = vmatpush1.bf16.xpose.msra.mxu0 %v843
      %847 = vmatprep.subr.bf16.mxu0 0
      %848 = vmatpush1.bf16.xpose.msra.mxu0 0
      %849 = vmatprep.subr.bf16.mxu0 0
      %850 = vmatpush1.bf16.xpose.msra.mxu0 0
      %851 = vmatprep.subr.bf16.mxu0 0
      %852 = vmatpush1.bf16.xpose.msra.mxu0 0
      %853 = vmatprep.subr.bf16.mxu0 0
      %854 = vmatpush1.bf16.xpose.msra.mxu0 0
      %855 = vmatprep.subr.bf16.mxu0 0
      %856 = vmatpush1.bf16.xpose.msra.mxu0 0
      %857 = vmatprep.subr.bf16.mxu0 0
      %858 = vmatpush1.bf16.xpose.msra.mxu0 0
      %859 = vmatprep.subr.bf16.mxu0 0
      %860 = vmatpush1.bf16.xpose.msra.mxu0 0
      %861 = vmatprep.subr.bf16.mxu0 0
      %862 = vmatpush1.bf16.xpose.msra.mxu0 0
      %863 = vmatprep.subr.bf16.mxu0 0
      %864 = vmatpush1.bf16.xpose.msra.mxu0 0
      %865 = vmatprep.subr.bf16.mxu0 0
      %866 = vmatpush1.bf16.xpose.msra.mxu0 0
      %867 = vmatprep.subr.bf16.mxu0 0
      %868 = vmatpush1.bf16.xpose.msra.mxu0 0
      %869 = vmatprep.subr.bf16.mxu0 0
      %870 = vmatpush1.bf16.xpose.msra.mxu0 0
      %871 = vmatprep.subr.bf16.mxu0 0
      %872 = vmatpush1.bf16.xpose.msra.mxu0 0
      %873 = vmatprep.subr.bf16.mxu0 0
      %874 = vmatpush1.bf16.xpose.msra.mxu0 0
      %875 = vmatprep.subr.bf16.mxu0 0
      %876 = vmatpush1.bf16.xpose.msra.mxu0 0
      %877 = vmatprep.mubr.bf16.mxu0 0
      %878 = vmatmul.mubr.bf16.gmra.mrb[0].mxu0 %v840
      %v879 = vpop.f32.mrb[0].mxu0
      %v880 = vadd.f32 0.0, %v879
      %v881 = vpop.f32.mrb[0].mxu0
      %v882 = vpop.f32.mrb[0].mxu0
      %v883 = vpop.f32.mrb[0].mxu0
      %884 = vdwg.mxu0
      %v885 = vmul.f32 %v834, 0.25
      %v886 = vmul.f32 %v880, 0.25
      %v889 = vlaneseq
      %v890 = vshrl.u32 %v889, 7
      %v891 = vsub.s32 0, %v890
      %v892 = vrot.slane %v784, %v891
      %v893 = vlaneseq
      %v894 = vshrl.u32 %v893, 7
      %v895 = vsub.s32 0, %v894
      %v896 = vrot.slane %v785, %v895
      %v899 = vadd.f32 %v885, %v892
      %v900 = vadd.f32 %v886, %v896
      %vm901 = vcmask 64512
      %v902 = vsel %vm901, %v899, -inf
      %903 = vmax.xlane.f32.xlu0 %v902
      %v904 = vpop.xlane.xlu0 %903
      %v905 = vsel %vm901, %v900, -inf
      %906 = vmax.xlane.f32.xlu0 %v905
      %v907 = vpop.xlane.xlu0 %906
      %v908 = vsub.f32 %v899, %v904
      %v909 = vsub.f32 %v900, %v907
      %v910 = vmul.f32 %v908, 1.442695
      %v911 = vpow.pop %v910
      %v912 = vmul.f32 %v909, 1.442695
      %v913 = vpow.pop %v912
      %v914 = vsel %vm901, %v911, 0.0
      %915 = vadd.xlane.f32.xlu0 %v914
      %v916 = vpop.xlane.xlu0 %915
      %v917 = vsel %vm901, %v913, 0.0
      %918 = vadd.xlane.f32.xlu0 %v917
      %v919 = vpop.xlane.xlu0 %918
      %v920 = vrcp.pop %v916
      %v921 = vrcp.pop %v919
      %v922 = vmul.f32 %v911, %v920
      %v923 = vmul.f32 %v913, %v921
      %v924 = vpack.c.bf16 %v922, %v922
      %v925 = vpack.c.bf16 %v923, %v923
      %927 = vrot.lane.b32.xlu0 %v790, 96
      %v928 = vpop.permute.xlu0 %927
      %v930 = vsel %vm901, %v924, 0
      %vm932 = vcmask 1043456
      %v934 = vsel %vm932, %v928, 0
      %936 = vmatprep.subr.bf16.mxu0 0
      %937 = vmatpush1.bf16.msra.mxu0 %v934
      %938 = vmatprep.subr.bf16.mxu0 0
      %939 = vmatpush1.bf16.msra.mxu0 0
      %940 = vmatprep.subr.bf16.mxu0 0
      %941 = vmatpush1.bf16.msra.mxu0 0
      %942 = vmatprep.subr.bf16.mxu0 0
      %943 = vmatpush1.bf16.msra.mxu0 0
      %944 = vmatprep.subr.bf16.mxu0 0
      %945 = vmatpush1.bf16.msra.mxu0 0
      %946 = vmatprep.subr.bf16.mxu0 0
      %947 = vmatpush1.bf16.msra.mxu0 0
      %948 = vmatprep.subr.bf16.mxu0 0
      %949 = vmatpush1.bf16.msra.mxu0 0
      %950 = vmatprep.subr.bf16.mxu0 0
      %951 = vmatpush1.bf16.msra.mxu0 0
      %952 = vmatprep.subr.bf16.mxu0 0
      %953 = vmatpush1.bf16.msra.mxu0 0
      %954 = vmatprep.subr.bf16.mxu0 0
      %955 = vmatpush1.bf16.msra.mxu0 0
      %956 = vmatprep.subr.bf16.mxu0 0
      %957 = vmatpush1.bf16.msra.mxu0 0
      %958 = vmatprep.subr.bf16.mxu0 0
      %959 = vmatpush1.bf16.msra.mxu0 0
      %960 = vmatprep.subr.bf16.mxu0 0
      %961 = vmatpush1.bf16.msra.mxu0 0
      %962 = vmatprep.subr.bf16.mxu0 0
      %963 = vmatpush1.bf16.msra.mxu0 0
      %964 = vmatprep.subr.bf16.mxu0 0
      %965 = vmatpush1.bf16.msra.mxu0 0
      %966 = vmatprep.subr.bf16.mxu0 0
      %967 = vmatpush1.bf16.msra.mxu0 0
      %968 = vmatprep.mubr.bf16.mxu0 0
      %969 = vmatmul.mubr.bf16.gmra.mrb[0].mxu0 %v930
      %v970 = vpop.f32.mrb[0].mxu0
      %v971 = vadd.f32 0.0, %v970
      %v972 = vpop.f32.mrb[0].mxu0
      %v973 = vpop.f32.mrb[0].mxu0
      %v974 = vpop.f32.mrb[0].mxu0
      %975 = vdwg.mxu0
      %977 = vrot.lane.b32.xlu0 %v791, 96
      %v978 = vpop.permute.xlu0 %977
      %v980 = vsel %vm901, %v925, 0
      %v983 = vsel %vm932, %v978, 0
      %985 = vmatprep.subr.bf16.mxu0 0
      %986 = vmatpush1.bf16.msra.mxu0 %v983
      %987 = vmatprep.subr.bf16.mxu0 0
      %988 = vmatpush1.bf16.msra.mxu0 0
      %989 = vmatprep.subr.bf16.mxu0 0
      %990 = vmatpush1.bf16.msra.mxu0 0
      %991 = vmatprep.subr.bf16.mxu0 0
      %992 = vmatpush1.bf16.msra.mxu0 0
      %993 = vmatprep.subr.bf16.mxu0 0
      %994 = vmatpush1.bf16.msra.mxu0 0
      %995 = vmatprep.subr.bf16.mxu0 0
      %996 = vmatpush1.bf16.msra.mxu0 0
      %997 = vmatprep.subr.bf16.mxu0 0
      %998 = vmatpush1.bf16.msra.mxu0 0
      %999 = vmatprep.subr.bf16.mxu0 0
      %1000 = vmatpush1.bf16.msra.mxu0 0
      %1001 = vmatprep.subr.bf16.mxu0 0
      %1002 = vmatpush1.bf16.msra.mxu0 0
      %1003 = vmatprep.subr.bf16.mxu0 0
      %1004 = vmatpush1.bf16.msra.mxu0 0
      %1005 = vmatprep.subr.bf16.mxu0 0
      %1006 = vmatpush1.bf16.msra.mxu0 0
      %1007 = vmatprep.subr.bf16.mxu0 0
      %1008 = vmatpush1.bf16.msra.mxu0 0
      %1009 = vmatprep.subr.bf16.mxu0 0
      %1010 = vmatpush1.bf16.msra.mxu0 0
      %1011 = vmatprep.subr.bf16.mxu0 0
      %1012 = vmatpush1.bf16.msra.mxu0 0
      %1013 = vmatprep.subr.bf16.mxu0 0
      %1014 = vmatpush1.bf16.msra.mxu0 0
      %1015 = vmatprep.subr.bf16.mxu0 0
      %1016 = vmatpush1.bf16.msra.mxu0 0
      %1017 = vmatprep.mubr.bf16.mxu0 0
      %1018 = vmatmul.mubr.bf16.gmra.mrb[0].mxu0 %v980
      %v1019 = vpop.f32.mrb[0].mxu0
      %v1020 = vadd.f32 0.0, %v1019
      %v1021 = vpop.f32.mrb[0].mxu0
      %v1022 = vpop.f32.mrb[0].mxu0
      %v1023 = vpop.f32.mrb[0].mxu0
      %1024 = vdwg.mxu0
      %1025 = vst.msk [vmem:[#allocation2] sm:$0xff] %vm792, %v971
      %1026 = vst.msk [vmem:[#allocation2 + $0x8] sm:$0xff] %vm792, %v1020
      %1028 = vrot.lane.b32.xlu0 %v788, 112
      %v1029 = vpop.permute.xlu0 %1028
      %1030 = vrot.lane.b32.xlu0 %v790, 112
      %v1031 = vpop.permute.xlu0 %1030
      %v1033 = vsel %vm792, %v1029, 0
      %v1036 = vsel %vm792, %v1031, 0
      %1038 = vmatprep.subr.bf16.mxu0 0
      %1039 = vmatpush1.bf16.xpose.msra.mxu0 %v1036
      %1040 = vmatprep.subr.bf16.mxu0 0
      %1041 = vmatpush1.bf16.xpose.msra.mxu0 0
      %1042 = vmatprep.subr.bf16.mxu0 0
      %1043 = vmatpush1.bf16.xpose.msra.mxu0 0
      %1044 = vmatprep.subr.bf16.mxu0 0
      %1045 = vmatpush1.bf16.xpose.msra.mxu0 0
      %1046 = vmatprep.subr.bf16.mxu0 0
      %1047 = vmatpush1.bf16.xpose.msra.mxu0 0
      %1048 = vmatprep.subr.bf16.mxu0 0
      %1049 = vmatpush1.bf16.xpose.msra.mxu0 0
      %1050 = vmatprep.subr.bf16.mxu0 0
      %1051 = vmatpush1.bf16.xpose.msra.mxu0 0
      %1052 = vmatprep.subr.bf16.mxu0 0
      %1053 = vmatpush1.bf16.xpose.msra.mxu0 0
      %1054 = vmatprep.subr.bf16.mxu0 0
      %1055 = vmatpush1.bf16.xpose.msra.mxu0 0
      %1056 = vmatprep.subr.bf16.mxu0 0
      %1057 = vmatpush1.bf16.xpose.msra.mxu0 0
      %1058 = vmatprep.subr.bf16.mxu0 0
      %1059 = vmatpush1.bf16.xpose.msra.mxu0 0
      %1060 = vmatprep.subr.bf16.mxu0 0
      %1061 = vmatpush1.bf16.xpose.msra.mxu0 0
      %1062 = vmatprep.subr.bf16.mxu0 0
      %1063 = vmatpush1.bf16.xpose.msra.mxu0 0
      %1064 = vmatprep.subr.bf16.mxu0 0
      %1065 = vmatpush1.bf16.xpose.msra.mxu0 0
      %1066 = vmatprep.subr.bf16.mxu0 0
      %1067 = vmatpush1.bf16.xpose.msra.mxu0 0
      %1068 = vmatprep.subr.bf16.mxu0 0
      %1069 = vmatpush1.bf16.xpose.msra.mxu0 0
      %1070 = vmatprep.mubr.bf16.mxu0 0
      %1071 = vmatmul.mubr.bf16.gmra.mrb[0].mxu0 %v1033
      %v1072 = vpop.f32.mrb[0].mxu0
      %v1073 = vadd.f32 0.0, %v1072
      %v1074 = vpop.f32.mrb[0].mxu0
      %v1075 = vpop.f32.mrb[0].mxu0
      %v1076 = vpop.f32.mrb[0].mxu0
      %1077 = vdwg.mxu0
      %1079 = vrot.lane.b32.xlu0 %v789, 112
      %v1080 = vpop.permute.xlu0 %1079
      %1081 = vrot.lane.b32.xlu0 %v791, 112
      %v1082 = vpop.permute.xlu0 %1081
      %v1084 = vsel %vm792, %v1080, 0
      %v1087 = vsel %vm792, %v1082, 0
      %1089 = vmatprep.subr.bf16.mxu0 0
      %1090 = vmatpush1.bf16.xpose.msra.mxu0 %v1087
      %1091 = vmatprep.subr.bf16.mxu0 0
      %1092 = vmatpush1.bf16.xpose.msra.mxu0 0
      %1093 = vmatprep.subr.bf16.mxu0 0
      %1094 = vmatpush1.bf16.xpose.msra.mxu0 0
      %1095 = vmatprep.subr.bf16.mxu0 0
      %1096 = vmatpush1.bf16.xpose.msra.mxu0 0
      %1097 = vmatprep.subr.bf16.mxu0 0
      %1098 = vmatpush1.bf16.xpose.msra.mxu0 0
      %1099 = vmatprep.subr.bf16.mxu0 0
      %1100 = vmatpush1.bf16.xpose.msra.mxu0 0
      %1101 = vmatprep.subr.bf16.mxu0 0
      %1102 = vmatpush1.bf16.xpose.msra.mxu0 0
      %1103 = vmatprep.subr.bf16.mxu0 0
      %1104 = vmatpush1.bf16.xpose.msra.mxu0 0
      %1105 = vmatprep.subr.bf16.mxu0 0
      %1106 = vmatpush1.bf16.xpose.msra.mxu0 0
      %1107 = vmatprep.subr.bf16.mxu0 0
      %1108 = vmatpush1.bf16.xpose.msra.mxu0 0
      %1109 = vmatprep.subr.bf16.mxu0 0
      %1110 = vmatpush1.bf16.xpose.msra.mxu0 0
      %1111 = vmatprep.subr.bf16.mxu0 0
      %1112 = vmatpush1.bf16.xpose.msra.mxu0 0
      %1113 = vmatprep.subr.bf16.mxu0 0
      %1114 = vmatpush1.bf16.xpose.msra.mxu0 0
      %1115 = vmatprep.subr.bf16.mxu0 0
      %1116 = vmatpush1.bf16.xpose.msra.mxu0 0
      %1117 = vmatprep.subr.bf16.mxu0 0
      %1118 = vmatpush1.bf16.xpose.msra.mxu0 0
      %1119 = vmatprep.subr.bf16.mxu0 0
      %1120 = vmatpush1.bf16.xpose.msra.mxu0 0
      %1121 = vmatprep.mubr.bf16.mxu0 0
      %1122 = vmatmul.mubr.bf16.gmra.mrb[0].mxu0 %v1084
      %v1123 = vpop.f32.mrb[0].mxu0
      %v1124 = vadd.f32 0.0, %v1123
      %v1125 = vpop.f32.mrb[0].mxu0
      %v1126 = vpop.f32.mrb[0].mxu0
      %v1127 = vpop.f32.mrb[0].mxu0
      %1128 = vdwg.mxu0
      %v1129 = vmul.f32 %v1073, 0.25
      %v1130 = vmul.f32 %v1124, 0.25
      %v1131 = vadd.f32 %v1129, %v892
      %v1132 = vadd.f32 %v1130, %v896
      %v1133 = vsel %vm901, %v1131, -inf
      %1134 = vmax.xlane.f32.xlu0 %v1133
      %v1135 = vpop.xlane.xlu0 %1134
      %v1136 = vsel %vm901, %v1132, -inf
      %1137 = vmax.xlane.f32.xlu0 %v1136
      %v1138 = vpop.xlane.xlu0 %1137
      %v1139 = vsub.f32 %v1131, %v1135
      %v1140 = vsub.f32 %v1132, %v1138
      %v1141 = vmul.f32 %v1139, 1.442695
      %v1142 = vpow.pop %v1141
      %v1143 = vmul.f32 %v1140, 1.442695
      %v1144 = vpow.pop %v1143
      %v1145 = vsel %vm901, %v1142, 0.0
      %1146 = vadd.xlane.f32.xlu0 %v1145
      %v1147 = vpop.xlane.xlu0 %1146
      %v1148 = vsel %vm901, %v1144, 0.0
      %1149 = vadd.xlane.f32.xlu0 %v1148
      %v1150 = vpop.xlane.xlu0 %1149
      %v1151 = vrcp.pop %v1147
      %v1152 = vrcp.pop %v1150
      %v1153 = vmul.f32 %v1142, %v1151
      %v1154 = vmul.f32 %v1144, %v1152
      %v1155 = vpack.c.bf16 %v1153, %v1153
      %v1156 = vpack.c.bf16 %v1154, %v1154
      %1157 = vrot.lane.b32.xlu0 %v790, 80
      %v1158 = vpop.permute.xlu0 %1157
      %v1160 = vsel %vm901, %v1155, 0
      %v1163 = vsel %vm932, %v1158, 0
      %1165 = vmatprep.subr.bf16.mxu0 0
      %1166 = vmatpush1.bf16.msra.mxu0 %v1163
      %1167 = vmatprep.subr.bf16.mxu0 0
      %1168 = vmatpush1.bf16.msra.mxu0 0
      %1169 = vmatprep.subr.bf16.mxu0 0
      %1170 = vmatpush1.bf16.msra.mxu0 0
      %1171 = vmatprep.subr.bf16.mxu0 0
      %1172 = vmatpush1.bf16.msra.mxu0 0
      %1173 = vmatprep.subr.bf16.mxu0 0
      %1174 = vmatpush1.bf16.msra.mxu0 0
      %1175 = vmatprep.subr.bf16.mxu0 0
      %1176 = vmatpush1.bf16.msra.mxu0 0
      %1177 = vmatprep.subr.bf16.mxu0 0
      %1178 = vmatpush1.bf16.msra.mxu0 0
      %1179 = vmatprep.subr.bf16.mxu0 0
      %1180 = vmatpush1.bf16.msra.mxu0 0
      %1181 = vmatprep.subr.bf16.mxu0 0
      %1182 = vmatpush1.bf16.msra.mxu0 0
      %1183 = vmatprep.subr.bf16.mxu0 0
      %1184 = vmatpush1.bf16.msra.mxu0 0
      %1185 = vmatprep.subr.bf16.mxu0 0
      %1186 = vmatpush1.bf16.msra.mxu0 0
      %1187 = vmatprep.subr.bf16.mxu0 0
      %1188 = vmatpush1.bf16.msra.mxu0 0
      %1189 = vmatprep.subr.bf16.mxu0 0
      %1190 = vmatpush1.bf16.msra.mxu0 0
      %1191 = vmatprep.subr.bf16.mxu0 0
      %1192 = vmatpush1.bf16.msra.mxu0 0
      %1193 = vmatprep.subr.bf16.mxu0 0
      %1194 = vmatpush1.bf16.msra.mxu0 0
      %1195 = vmatprep.subr.bf16.mxu0 0
      %1196 = vmatpush1.bf16.msra.mxu0 0
      %1197 = vmatprep.mubr.bf16.mxu0 0
      %1198 = vmatmul.mubr.bf16.gmra.mrb[0].mxu0 %v1160
      %v1199 = vpop.f32.mrb[0].mxu0
      %v1200 = vadd.f32 0.0, %v1199
      %v1201 = vpop.f32.mrb[0].mxu0
      %v1202 = vpop.f32.mrb[0].mxu0
      %v1203 = vpop.f32.mrb[0].mxu0
      %1204 = vdwg.mxu0
      %1205 = vrot.lane.b32.xlu0 %v791, 80
      %v1206 = vpop.permute.xlu0 %1205
      %v1208 = vsel %vm901, %v1156, 0
      %v1211 = vsel %vm932, %v1206, 0
      %1213 = vmatprep.subr.bf16.mxu0 0
      %1214 = vmatpush1.bf16.msra.mxu0 %v1211
      %1215 = vmatprep.subr.bf16.mxu0 0
      %1216 = vmatpush1.bf16.msra.mxu0 0
      %1217 = vmatprep.subr.bf16.mxu0 0
      %1218 = vmatpush1.bf16.msra.mxu0 0
      %1219 = vmatprep.subr.bf16.mxu0 0
      %1220 = vmatpush1.bf16.msra.mxu0 0
      %1221 = vmatprep.subr.bf16.mxu0 0
      %1222 = vmatpush1.bf16.msra.mxu0 0
      %1223 = vmatprep.subr.bf16.mxu0 0
      %1224 = vmatpush1.bf16.msra.mxu0 0
      %1225 = vmatprep.subr.bf16.mxu0 0
      %1226 = vmatpush1.bf16.msra.mxu0 0
      %1227 = vmatprep.subr.bf16.mxu0 0
      %1228 = vmatpush1.bf16.msra.mxu0 0
      %1229 = vmatprep.subr.bf16.mxu0 0
      %1230 = vmatpush1.bf16.msra.mxu0 0
      %1231 = vmatprep.subr.bf16.mxu0 0
      %1232 = vmatpush1.bf16.msra.mxu0 0
      %1233 = vmatprep.subr.bf16.mxu0 0
      %1234 = vmatpush1.bf16.msra.mxu0 0
      %1235 = vmatprep.subr.bf16.mxu0 0
      %1236 = vmatpush1.bf16.msra.mxu0 0
      %1237 = vmatprep.subr.bf16.mxu0 0
      %1238 = vmatpush1.bf16.msra.mxu0 0
      %1239 = vmatprep.subr.bf16.mxu0 0
      %1240 = vmatpush1.bf16.msra.mxu0 0
      %1241 = vmatprep.subr.bf16.mxu0 0
      %1242 = vmatpush1.bf16.msra.mxu0 0
      %1243 = vmatprep.subr.bf16.mxu0 0
      %1244 = vmatpush1.bf16.msra.mxu0 0
      %1245 = vmatprep.mubr.bf16.mxu0 0
      %1246 = vmatmul.mubr.bf16.gmra.mrb[0].mxu0 %v1208
      %v1247 = vpop.f32.mrb[0].mxu0
      %v1248 = vadd.f32 0.0, %v1247
      %v1249 = vpop.f32.mrb[0].mxu0
      %v1250 = vpop.f32.mrb[0].mxu0
      %v1251 = vpop.f32.mrb[0].mxu0
      %1252 = vdwg.mxu0
      %1255 = vrot.lane.b32.xlu0 %v1200, 16
      %v1256 = vpop.permute.xlu0 %1255
      %1257 = vrot.lane.b32.xlu0 %v1248, 16
      %v1258 = vpop.permute.xlu0 %1257
      %vm1261 = vcmask 261248
      %1262 = vst.msk [vmem:[#allocation2] sm:$0xff] %vm1261, %v1256
      %1263 = vst.msk [vmem:[#allocation2 + $0x8] sm:$0xff] %vm1261, %v1258
      %v1264 = vld [vmem:[#allocation2] sm:$0xff]
      %v1265 = vld [vmem:[#allocation2 + $0x8] sm:$0xff]
      %v1266 = vpack.c.bf16 %v1265, %v1264
      %v1267 = vld [vmem:[%s8] sm:$0xf]
      %v1268 = vld [vmem:[%s8 + $0x4] sm:$0xf]
      %v1269 = vld [vmem:[%s8 + $0x8] sm:$0xf]
      %v1270 = vld [vmem:[%s8 + $0xc] sm:$0xf]
      %v1271 = vld [vmem:[%s9] sm:$0x1]
      %v1273 = vlaneseq
      %v1274 = vshrl.u32 %v1273, 7
      %v1275 = vsub.s32 0, %v1274
      %v1276 = vrot.slane %v1271, %v1275
      %v1282 = vunpack.c.l.b16 %v1267
      %v1283 = vunpack.c.l.b16 %v1268
      %v1284 = vunpack.c.l.b16 %v1269
      %v1285 = vunpack.c.l.b16 %v1270
      %v1286 = vpack.c.b16 %v1283, %v1282
      %v1287 = vpack.c.b16 %v1285, %v1284
      %v1291 = vsel %vm671, %v1266, 0
      %1293 = vmatprep.subr.bf16.mxu0 0
      %1294 = vmatpush1.bf16.msra.mxu0 %v1286
      %1295 = vmatprep.subr.bf16.mxu0 0
      %1296 = vmatpush1.bf16.msra.mxu0 %v1287
      %1297 = vmatprep.subr.bf16.mxu0 0
      %1298 = vmatpush1.bf16.msra.mxu0 0
      %1299 = vmatprep.subr.bf16.mxu0 0
      %1300 = vmatpush1.bf16.msra.mxu0 0
      %1301 = vmatprep.subr.bf16.mxu0 0
      %1302 = vmatpush1.bf16.msra.mxu0 0
      %1303 = vmatprep.subr.bf16.mxu0 0
      %1304 = vmatpush1.bf16.msra.mxu0 0
      %1305 = vmatprep.subr.bf16.mxu0 0
      %1306 = vmatpush1.bf16.msra.mxu0 0
      %1307 = vmatprep.subr.bf16.mxu0 0
      %1308 = vmatpush1.bf16.msra.mxu0 0
      %1309 = vmatprep.subr.bf16.mxu0 0
      %1310 = vmatpush1.bf16.msra.mxu0 0
      %1311 = vmatprep.subr.bf16.mxu0 0
      %1312 = vmatpush1.bf16.msra.mxu0 0
      %1313 = vmatprep.subr.bf16.mxu0 0
      %1314 = vmatpush1.bf16.msra.mxu0 0
      %1315 = vmatprep.subr.bf16.mxu0 0
      %1316 = vmatpush1.bf16.msra.mxu0 0
      %1317 = vmatprep.subr.bf16.mxu0 0
      %1318 = vmatpush1.bf16.msra.mxu0 0
      %1319 = vmatprep.subr.bf16.mxu0 0
      %1320 = vmatpush1.bf16.msra.mxu0 0
      %1321 = vmatprep.subr.bf16.mxu0 0
      %1322 = vmatpush1.bf16.msra.mxu0 0
      %1323 = vmatprep.subr.bf16.mxu0 0
      %1324 = vmatpush1.bf16.msra.mxu0 0
      %1325 = vmatprep.mubr.bf16.mxu0 0
      %1326 = vmatmul.mubr.bf16.gmra.mrb[0].mxu0 %v1291
      %v1327 = vpop.f32.mrb[0].mxu0
      %v1328 = vadd.f32 %v1276, %v1327
      %v1329 = vpop.f32.mrb[0].mxu0
      %v1330 = vpop.f32.mrb[0].mxu0
      %v1331 = vadd.f32 %v1276, %v1330
      %v1332 = vpop.f32.mrb[0].mxu0
      %1333 = vdwg.mxu0
      %v1334 = vadd.f32 %v1328, %v643
      %v1335 = vadd.f32 %v1331, %v644
      %v1336 = vsel %vm671, %v1334, 0.0
      %1337 = vadd.xlane.f32.xlu0 %v1336
      %v1338 = vpop.xlane.xlu0 %1337
      %v1339 = vsel %vm671, %v1335, 0.0
      %1340 = vadd.xlane.f32.xlu0 %v1339
      %v1341 = vpop.xlane.xlu0 %1340
      %v1342 = vrcp.pop 32.0
      %v1343 = vmul.f32 %v1338, %v1342
      %v1344 = vmul.f32 %v1341, %v1342
      %v1345 = vsub.f32 %v1334, %v1343
      %v1346 = vsub.f32 %v1335, %v1344
      %v1347 = vmul.f32 %v1345, %v1345
      %v1348 = vmul.f32 %v1346, %v1346
      %v1349 = vsel %vm671, %v1347, 0.0
      %1350 = vadd.xlane.f32.xlu0 %v1349
      %v1351 = vpop.xlane.xlu0 %1350
      %v1352 = vsel %vm671, %v1348, 0.0
      %1353 = vadd.xlane.f32.xlu0 %v1352
      %v1354 = vpop.xlane.xlu0 %1353
      %v1355 = vmul.f32 %v1351, %v1342
      %v1356 = vmul.f32 %v1354, %v1342
      %v1357 = vadd.f32 %v1355, 1e-05
      %v1358 = vadd.f32 %v1356, 1e-05
      %v1359 = vrsqrt.pop %v1357
      %v1360 = vrsqrt.pop %v1358
      %v1361 = vmul.f32 %v1345, %v1359
      %v1362 = vmul.f32 %v1346, %v1360
      %v1363 = vld [vmem:[%s10] sm:$0x1]
      %v1365 = vlaneseq
      %v1366 = vshrl.u32 %v1365, 7
      %v1367 = vsub.s32 0, %v1366
      %v1368 = vrot.slane %v1363, %v1367
      %v1370 = vmul.f32 %v1361, %v1368
      %v1371 = vmul.f32 %v1362, %v1368
      %v1372 = vld [vmem:[%s11] sm:$0x1]
      %v1374 = vlaneseq
      %v1375 = vshrl.u32 %v1374, 7
      %v1376 = vsub.s32 0, %v1375
      %v1377 = vrot.slane %v1372, %v1376
      %v1379 = vadd.f32 %v1370, %v1377
      %v1380 = vadd.f32 %v1371, %v1377
      %1382 = vset.pattern.permute.xlu0 0
      %1383 = vperm.xlu0 %1382, %v786
      %v1384 = vpop.permute.xlu0 %1383
      %1387 = vset.pattern.permute.xlu0 0
      %1388 = vperm.xlu0 %1387, %v787
      %v1389 = vpop.permute.xlu0 %1388
      %v1391 = vmul.f32 %v1379, %v1384
      %v1392 = vmul.f32 %v1380, %v1389
      %v1393 = vpack.c.bf16 %v1392, %v1391
      %v1394 = vld [vmem:[%s12] sm:$0xf]
      %v1395 = vld [vmem:[%s12 + $0x4] sm:$0xf]
      %v1396 = vld [vmem:[%s12 + $0x8] sm:$0xf]
      %v1397 = vld [vmem:[%s12 + $0xc] sm:$0xf]
      %v1398 = vld [vmem:[%s13] sm:$0x1]
      %v1400 = vlaneseq
      %v1401 = vshrl.u32 %v1400, 7
      %v1402 = vsub.s32 0, %v1401
      %v1403 = vrot.slane %v1398, %v1402
      %v1409 = vunpack.c.l.b16 %v1394
      %v1410 = vunpack.c.l.b16 %v1395
      %v1411 = vunpack.c.l.b16 %v1396
      %v1412 = vunpack.c.l.b16 %v1397
      %v1413 = vpack.c.b16 %v1410, %v1409
      %v1414 = vpack.c.b16 %v1412, %v1411
      %v1418 = vsel %vm671, %v1393, 0
      %1420 = vmatprep.subr.bf16.mxu0 0
      %1421 = vmatpush1.bf16.msra.mxu0 %v1413
      %1422 = vmatprep.subr.bf16.mxu0 0
      %1423 = vmatpush1.bf16.msra.mxu0 %v1414
      %1424 = vmatprep.subr.bf16.mxu0 0
      %1425 = vmatpush1.bf16.msra.mxu0 0
      %1426 = vmatprep.subr.bf16.mxu0 0
      %1427 = vmatpush1.bf16.msra.mxu0 0
      %1428 = vmatprep.subr.bf16.mxu0 0
      %1429 = vmatpush1.bf16.msra.mxu0 0
      %1430 = vmatprep.subr.bf16.mxu0 0
      %1431 = vmatpush1.bf16.msra.mxu0 0
      %1432 = vmatprep.subr.bf16.mxu0 0
      %1433 = vmatpush1.bf16.msra.mxu0 0
      %1434 = vmatprep.subr.bf16.mxu0 0
      %1435 = vmatpush1.bf16.msra.mxu0 0
      %1436 = vmatprep.subr.bf16.mxu0 0
      %1437 = vmatpush1.bf16.msra.mxu0 0
      %1438 = vmatprep.subr.bf16.mxu0 0
      %1439 = vmatpush1.bf16.msra.mxu0 0
      %1440 = vmatprep.subr.bf16.mxu0 0
      %1441 = vmatpush1.bf16.msra.mxu0 0
      %1442 = vmatprep.subr.bf16.mxu0 0
      %1443 = vmatpush1.bf16.msra.mxu0 0
      %1444 = vmatprep.subr.bf16.mxu0 0
      %1445 = vmatpush1.bf16.msra.mxu0 0
      %1446 = vmatprep.subr.bf16.mxu0 0
      %1447 = vmatpush1.bf16.msra.mxu0 0
      %1448 = vmatprep.subr.bf16.mxu0 0
      %1449 = vmatpush1.bf16.msra.mxu0 0
      %1450 = vmatprep.subr.bf16.mxu0 0
      %1451 = vmatpush1.bf16.msra.mxu0 0
      %1452 = vmatprep.mubr.bf16.mxu0 0
      %1453 = vmatmul.mubr.bf16.gmra.mrb[0].mxu0 %v1418
      %v1454 = vpop.f32.mrb[0].mxu0
      %v1455 = vadd.f32 %v1403, %v1454
      %v1456 = vpop.f32.mrb[0].mxu0
      %v1457 = vpop.f32.mrb[0].mxu0
      %v1458 = vadd.f32 %v1403, %v1457
      %v1459 = vpop.f32.mrb[0].mxu0
      %1460 = vdwg.mxu0
      %v1461 = vmax.f32 %v1455, 0.0
      %v1462 = vmax.f32 %v1458, 0.0
      %v1463 = vpack.c.bf16 %v1462, %v1461
      %v1464 = vld [vmem:[%s14] sm:$0xf]
      %v1465 = vld [vmem:[%s14 + $0x4] sm:$0xf]
      %v1466 = vld [vmem:[%s14 + $0x8] sm:$0xf]
      %v1467 = vld [vmem:[%s14 + $0xc] sm:$0xf]
      %v1468 = vld [vmem:[%s14 + $0x10] sm:$0xf]
      %v1469 = vld [vmem:[%s14 + $0x14] sm:$0xf]
      %v1470 = vld [vmem:[%s14 + $0x18] sm:$0xf]
      %v1471 = vld [vmem:[%s14 + $0x1c] sm:$0xf]
      %v1472 = vld [vmem:[%s15] sm:$0x1]
      %v1474 = vlaneseq
      %v1475 = vshrl.u32 %v1474, 7
      %v1476 = vsub.s32 0, %v1475
      %v1477 = vrot.slane %v1472, %v1476
      %v1487 = vunpack.c.l.b16 %v1464
      %v1488 = vunpack.c.l.b16 %v1465
      %v1489 = vunpack.c.l.b16 %v1466
      %v1490 = vunpack.c.l.b16 %v1467
      %v1491 = vunpack.c.l.b16 %v1468
      %v1492 = vunpack.c.l.b16 %v1469
      %v1493 = vunpack.c.l.b16 %v1470
      %v1494 = vunpack.c.l.b16 %v1471
      %v1495 = vpack.c.b16 %v1488, %v1487
      %v1496 = vpack.c.b16 %v1490, %v1489
      %v1497 = vpack.c.b16 %v1492, %v1491
      %v1498 = vpack.c.b16 %v1494, %v1493
      %vm1503 = vcmask 523264
      %v1505 = vsel %vm1503, %v1463, 0
      %1507 = vmatprep.subr.bf16.mxu0 0
      %1508 = vmatpush1.bf16.msra.mxu0 %v1495
      %1509 = vmatprep.subr.bf16.mxu0 0
      %1510 = vmatpush1.bf16.msra.mxu0 %v1496
      %1511 = vmatprep.subr.bf16.mxu0 0
      %1512 = vmatpush1.bf16.msra.mxu0 %v1497
      %1513 = vmatprep.subr.bf16.mxu0 0
      %1514 = vmatpush1.bf16.msra.mxu0 %v1498
      %1515 = vmatprep.subr.bf16.mxu0 0
      %1516 = vmatpush1.bf16.msra.mxu0 0
      %1517 = vmatprep.subr.bf16.mxu0 0
      %1518 = vmatpush1.bf16.msra.mxu0 0
      %1519 = vmatprep.subr.bf16.mxu0 0
      %1520 = vmatpush1.bf16.msra.mxu0 0
      %1521 = vmatprep.subr.bf16.mxu0 0
      %1522 = vmatpush1.bf16.msra.mxu0 0
      %1523 = vmatprep.subr.bf16.mxu0 0
      %1524 = vmatpush1.bf16.msra.mxu0 0
      %1525 = vmatprep.subr.bf16.mxu0 0
      %1526 = vmatpush1.bf16.msra.mxu0 0
      %1527 = vmatprep.subr.bf16.mxu0 0
      %1528 = vmatpush1.bf16.msra.mxu0 0
      %1529 = vmatprep.subr.bf16.mxu0 0
      %1530 = vmatpush1.bf16.msra.mxu0 0
      %1531 = vmatprep.subr.bf16.mxu0 0
      %1532 = vmatpush1.bf16.msra.mxu0 0
      %1533 = vmatprep.subr.bf16.mxu0 0
      %1534 = vmatpush1.bf16.msra.mxu0 0
      %1535 = vmatprep.subr.bf16.mxu0 0
      %1536 = vmatpush1.bf16.msra.mxu0 0
      %1537 = vmatprep.subr.bf16.mxu0 0
      %1538 = vmatpush1.bf16.msra.mxu0 0
      %1539 = vmatprep.mubr.bf16.mxu0 0
      %1540 = vmatmul.mubr.bf16.gmra.mrb[0].mxu0 %v1505
      %v1541 = vpop.f32.mrb[0].mxu0
      %v1542 = vadd.f32 %v1477, %v1541
      %v1543 = vpop.f32.mrb[0].mxu0
      %v1544 = vpop.f32.mrb[0].mxu0
      %v1545 = vadd.f32 %v1477, %v1544
      %v1546 = vpop.f32.mrb[0].mxu0
      %1547 = vdwg.mxu0
      %v1548 = vadd.f32 %v1542, %v1391
      %v1549 = vadd.f32 %v1545, %v1392
      %v1550 = vsel %vm671, %v1548, 0.0
      %1551 = vadd.xlane.f32.xlu0 %v1550
      %v1552 = vpop.xlane.xlu0 %1551
      %v1553 = vsel %vm671, %v1549, 0.0
      %1554 = vadd.xlane.f32.xlu0 %v1553
      %v1555 = vpop.xlane.xlu0 %1554
      %v1556 = vmul.f32 %v1552, %v1342
      %v1557 = vmul.f32 %v1555, %v1342
      %v1558 = vsub.f32 %v1548, %v1556
      %v1559 = vsub.f32 %v1549, %v1557
      %v1560 = vmul.f32 %v1558, %v1558
      %v1561 = vmul.f32 %v1559, %v1559
      %v1562 = vsel %vm671, %v1560, 0.0
      %1563 = vadd.xlane.f32.xlu0 %v1562
      %v1564 = vpop.xlane.xlu0 %1563
      %v1565 = vsel %vm671, %v1561, 0.0
      %1566 = vadd.xlane.f32.xlu0 %v1565
      %v1567 = vpop.xlane.xlu0 %1566
      %v1568 = vmul.f32 %v1564, %v1342
      %v1569 = vmul.f32 %v1567, %v1342
      %v1570 = vadd.f32 %v1568, 1e-05
      %v1571 = vadd.f32 %v1569, 1e-05
      %v1572 = vrsqrt.pop %v1570
      %v1573 = vrsqrt.pop %v1571
      %v1574 = vmul.f32 %v1558, %v1572
      %v1575 = vmul.f32 %v1559, %v1573
      %v1576 = vld [vmem:[%s16] sm:$0x1]
      %v1578 = vlaneseq
      %v1579 = vshrl.u32 %v1578, 7
      %v1580 = vsub.s32 0, %v1579
      %v1581 = vrot.slane %v1576, %v1580
      %v1583 = vmul.f32 %v1574, %v1581
      %v1584 = vmul.f32 %v1575, %v1581
      %v1585 = vld [vmem:[%s17] sm:$0x1]
      %v1587 = vlaneseq
      %v1588 = vshrl.u32 %v1587, 7
      %v1589 = vsub.s32 0, %v1588
      %v1590 = vrot.slane %v1585, %v1589
      %v1592 = vadd.f32 %v1583, %v1590
      %v1593 = vadd.f32 %v1584, %v1590
      %v1594 = vmul.f32 %v1592, %v1384
      %v1595 = vmul.f32 %v1593, %v1389
      %1596 = vst.msk [vmem:[%s640] sm:$0xff] %vm671, %v1594
      %1597 = vst.msk [vmem:[%s640 + $0x8] sm:$0xff] %vm671, %v1595
      %s1598 = smul.u32 2, %s29
      %p1599 = scmp.lt.s32.totalorder %s1598, 3
      %s1600 = scalar_select %p1599, %s1598, 3
      %s1601 = smul.addr %s1600, 8
      %s1602 = scalar_lea.vmem %s18, %s1601
      // Predicated region
      $region93: #{graph_encoder_forward.2} parent=91 // pred_check
        %p1603 = pneg %p445
      $region94: #{graph_encoder_forward.2} parent=91 // pred_check_branch
        %1605 = sbr.rel (%p1603) target = $region96
      $region95: #{graph_encoder_forward.2} parent=91 // pred_region
        %s1606 = smul.u32 2, %s29
      $region96: #{graph_encoder_forward.2} parent=91 // pred_fallthru
        _
    $region92: #{graph_encoder_forward.2} parent=5 // pred_fallthru
      _
    %p1607 = scmp.le.s32.totalorder 2, %s24
    // Predicated region
    $region97: #{graph_encoder_forward.2} parent=5 // pred_check
      %p1608 = pneg %p1607
    $region98: #{graph_encoder_forward.2} parent=5 // pred_check_branch
      %1610 = sbr.rel (%p1608) target = $region100
    $region99: #{graph_encoder_forward.2} parent=5 // pred_region
      %s1611 = ssub.s32 %s24, 2
      // Predicated region
      $region101: #{graph_encoder_forward.2} parent=99 // pred_check
        %p1612 = pneg %p451
      $region102: #{graph_encoder_forward.2} parent=99 // pred_check_branch
        %1614 = sbr.rel (%p1612) target = $region104
      $region103: #{graph_encoder_forward.2} parent=99 // pred_region
        %s1615 = smul.u32 2, %s30
        %p1616 = scmp.lt.s32.totalorder %s1615, 3
        %s1617 = scalar_select %p1616, %s1615, 3
        %s1618 = smul.addr %s1617, 8
        %s1619 = scalar_lea.vmem %s18, %s1618
      $region104: #{graph_encoder_forward.2} parent=99 // pred_fallthru
        _
    $region100: #{graph_encoder_forward.2} parent=5 // pred_fallthru
      _
  $region6: #{graph_encoder_forward.2} parent=0 // loop_footer
    %s28 = sadd.s32 1, %s24
  $region7: #{graph_encoder_forward.2} parent=0 // loop_footer_branch
    %23 = sbr.rel target = $region3
  $region8: #{graph_encoder_forward.2} parent=0 // loop_exit
    _

// kernel: graph_encoder_forward.3
$region0: #{graph_encoder_forward.3}
  #allocation0 [shape = 'u32[]', space=smem, size = 0x4, offset = 0x4, fixed_abs, tag = 'smem constant byte address 0x4 - core index']
  #allocation1 [shape = 'u32[144,128]{1,0:T(1,128)}', space=vmem, size = 0x12000, scoped, tag = 'internal scratch']
  #allocation2 [shape = 'f32[16,32]{1,0:T(8,128)}', space=vmem, size = 0x2000, scoped, tag = 'scratch operand']
  %s0 = inlined_call_operand.vmem [shape: f32[4,8,32], index: 0, kind: input, shape index: {}]
  %s1 = inlined_call_operand.vmem [shape: f32[4,1,8], index: 1, kind: input, shape index: {}]
  %s2 = inlined_call_operand.vmem [shape: f32[4,8,1], index: 2, kind: input, shape index: {}]
  %s3 = inlined_call_operand.vmem [shape: bf16[32,96], index: 3, kind: input, shape index: {}]
  %s4 = inlined_call_operand.vmem [shape: f32[1,96], index: 4, kind: input, shape index: {}]
  %s5 = inlined_call_operand.vmem [shape: bf16[32,32], index: 5, kind: input, shape index: {}]
  %s6 = inlined_call_operand.vmem [shape: f32[1,32], index: 6, kind: input, shape index: {}]
  %s7 = inlined_call_operand.vmem [shape: f32[1,32], index: 7, kind: input, shape index: {}]
  %s8 = inlined_call_operand.vmem [shape: f32[1,32], index: 8, kind: input, shape index: {}]
  %s9 = inlined_call_operand.vmem [shape: bf16[32,64], index: 9, kind: input, shape index: {}]
  %s10 = inlined_call_operand.vmem [shape: f32[1,64], index: 10, kind: input, shape index: {}]
  %s11 = inlined_call_operand.vmem [shape: bf16[64,32], index: 11, kind: input, shape index: {}]
  %s12 = inlined_call_operand.vmem [shape: f32[1,32], index: 12, kind: input, shape index: {}]
  %s13 = inlined_call_operand.vmem [shape: f32[1,32], index: 13, kind: input, shape index: {}]
  %s14 = inlined_call_operand.vmem [shape: f32[1,32], index: 14, kind: input, shape index: {}]
  %s15 = inlined_call_operand.vmem [shape: f32[4,8,32], index: 15, kind: output, shape index: {}]
  %s16 = sld [smem:[#allocation0]]
  $region93: #{graph_encoder_forward.3} parent=0
    _
  %s18 = ssub.s32 1, %s16
  %s19 = scalar_select 0, %s18, %s16
  loop: start=0, step=1, limit=4
  $region2: #{graph_encoder_forward.3} parent=0 // loop_pre_header
    _
  $region3: #{graph_encoder_forward.3} parent=0 // loop_header
    %s21 = sphi 0, %s25
    %p22 = scmp.ge.s32.totalorder %s21, 4
    %s31 = sphi 0, %s33
    %s34 = sphi 0, %s31
    %s35 = sphi 0, %s34
    %s51 = sphi 0, %s35
    %s57 = sphi 0, %s59
    %s60 = sphi 0, %s57
    %s61 = sphi 0, %s60
    %s77 = sphi 0, %s61
    %s83 = sphi 0, %s85
    %s86 = sphi 0, %s83
    %s87 = sphi 0, %s86
    %s103 = sphi 0, %s87
    %s107 = sphi 0, %s107
    %s109 = sphi 0, %s107
    %s110 = sphi 0, %s109
    %s124 = sphi 0, %s110
    %s128 = sphi 0, %s128
    %s130 = sphi 0, %s128
    %s131 = sphi 0, %s130
    %s145 = sphi 0, %s131
    %s149 = sphi 0, %s149
    %s151 = sphi 0, %s149
    %s152 = sphi 0, %s151
    %s166 = sphi 0, %s152
    %s170 = sphi 0, %s170
    %s172 = sphi 0, %s170
    %s173 = sphi 0, %s172
    %s187 = sphi 0, %s173
    %s191 = sphi 0, %s191
    %s193 = sphi 0, %s191
    %s194 = sphi 0, %s193
    %s208 = sphi 0, %s194
    %s212 = sphi 0, %s212
    %s214 = sphi 0, %s212
    %s215 = sphi 0, %s214
    %s229 = sphi 0, %s215
    %s233 = sphi 0, %s233
    %s235 = sphi 0, %s233
    %s236 = sphi 0, %s235
    %s250 = sphi 0, %s236
    %s254 = sphi 0, %s254
    %s256 = sphi 0, %s254
    %s257 = sphi 0, %s256
    %s271 = sphi 0, %s257
    %s275 = sphi 0, %s275
    %s277 = sphi 0, %s275
    %s278 = sphi 0, %s277
    %s292 = sphi 0, %s278
    %s296 = sphi 0, %s296
    %s298 = sphi 0, %s296
    %s299 = sphi 0, %s298
    %s313 = sphi 0, %s299
    %s317 = sphi 0, %s317
    %s319 = sphi 0, %s317
    %s320 = sphi 0, %s319
    %s334 = sphi 0, %s320
    %s338 = sphi 0, %s338
    %s340 = sphi 0, %s338
    %s341 = sphi 0, %s340
    %s355 = sphi 0, %s341
    %s361 = sphi 0, %s363
    %s364 = sphi 0, %s361
    %s365 = sphi 0, %s364
    %s381 = sphi 0, %s365
  $region4: #{graph_encoder_forward.3} parent=0 // loop_header_branch
    %24 = sbr.rel (%p22) target = $region8
  $region5: #{graph_encoder_forward.3} parent=0 // loop_body
    %s26 = ssub.s32 %s21, 1
    %s27 = ssub.s32 %s21, 2
    %s28 = sadd.s32 %s21, 1
    %s29 = ssub.s32 %s21, %s28
    %p30 = scmp.eq.s32.totalorder %s29, 0
    %s32 = sadd.s32 %s31, 1
    %s33 = scalar_select %p30, %s31, %s32
    %p36 = pneg %p30
    %p37 = scmp.eq.s32.totalorder %s21, 1
    %p38 = por %p36, %p37
    %p39 = scmp.ne.s32.totalorder %s31, %s34
    %p40 = scmp.eq.s32.totalorder %s21, 0
    %p41 = por %p39, %p40
    %p42 = scmp.ne.s32.totalorder %s31, %s34
    %p43 = scmp.eq.s32.totalorder %s26, 1
    %p44 = por %p42, %p43
    %p45 = scmp.ne.s32.totalorder %s34, %s35
    %p46 = scmp.eq.s32.totalorder %s26, 0
    %p47 = por %p45, %p46
    %p48 = scmp.ne.s32.totalorder %s34, %s35
    %p49 = scmp.eq.s32.totalorder %s27, 1
    %p50 = por %p48, %p49
    %p52 = scmp.ne.s32.totalorder %s35, %s51
    %p53 = scmp.eq.s32.totalorder %s27, 0
    %p54 = por %p52, %p53
    %s55 = ssub.s32 %s21, %s28
    %p56 = scmp.eq.s32.totalorder %s55, 0
    %s58 = sadd.s32 %s57, 1
    %s59 = scalar_select %p56, %s57, %s58
    %p62 = pneg %p56
    %p63 = scmp.eq.s32.totalorder %s21, 1
    %p64 = por %p62, %p63
    %p65 = scmp.ne.s32.totalorder %s57, %s60
    %p66 = scmp.eq.s32.totalorder %s21, 0
    %p67 = por %p65, %p66
    %p68 = scmp.ne.s32.totalorder %s57, %s60
    %p69 = scmp.eq.s32.totalorder %s26, 1
    %p70 = por %p68, %p69
    %p71 = scmp.ne.s32.totalorder %s60, %s61
    %p72 = scmp.eq.s32.totalorder %s26, 0
    %p73 = por %p71, %p72
    %p74 = scmp.ne.s32.totalorder %s60, %s61
    %p75 = scmp.eq.s32.totalorder %s27, 1
    %p76 = por %p74, %p75
    %p78 = scmp.ne.s32.totalorder %s61, %s77
    %p79 = scmp.eq.s32.totalorder %s27, 0
    %p80 = por %p78, %p79
    %s81 = ssub.s32 %s21, %s28
    %p82 = scmp.eq.s32.totalorder %s81, 0
    %s84 = sadd.s32 %s83, 1
    %s85 = scalar_select %p82, %s83, %s84
    %p88 = pneg %p82
    %p89 = scmp.eq.s32.totalorder %s21, 1
    %p90 = por %p88, %p89
    %p91 = scmp.ne.s32.totalorder %s83, %s86
    %p92 = scmp.eq.s32.totalorder %s21, 0
    %p93 = por %p91, %p92
    %p94 = scmp.ne.s32.totalorder %s83, %s86
    %p95 = scmp.eq.s32.totalorder %s26, 1
    %p96 = por %p94, %p95
    %p97 = scmp.ne.s32.totalorder %s86, %s87
    %p98 = scmp.eq.s32.totalorder %s26, 0
    %p99 = por %p97, %p98
    %p100 = scmp.ne.s32.totalorder %s86, %s87
    %p101 = scmp.eq.s32.totalorder %s27, 1
    %p102 = por %p100, %p101
    %p104 = scmp.ne.s32.totalorder %s87, %s103
    %p105 = scmp.eq.s32.totalorder %s27, 0
    %p106 = por %p104, %p105
    %s108 = sadd.s32 %s107, 1
    %p111 = scmp.eq.s32.totalorder %s21, 1
    %p112 = scmp.ne.s32.totalorder %s107, %s109
    %p113 = scmp.eq.s32.totalorder %s21, 0
    %p114 = por %p112, %p113
    %p115 = scmp.ne.s32.totalorder %s107, %s109
    %p116 = scmp.eq.s32.totalorder %s26, 1
    %p117 = por %p115, %p116
    %p118 = scmp.ne.s32.totalorder %s109, %s110
    %p119 = scmp.eq.s32.totalorder %s26, 0
    %p120 = por %p118, %p119
    %p121 = scmp.ne.s32.totalorder %s109, %s110
    %p122 = scmp.eq.s32.totalorder %s27, 1
    %p123 = por %p121, %p122
    %p125 = scmp.ne.s32.totalorder %s110, %s124
    %p126 = scmp.eq.s32.totalorder %s27, 0
    %p127 = por %p125, %p126
    %s129 = sadd.s32 %s128, 1
    %p132 = scmp.eq.s32.totalorder %s21, 1
    %p133 = scmp.ne.s32.totalorder %s128, %s130
    %p134 = scmp.eq.s32.totalorder %s21, 0
    %p135 = por %p133, %p134
    %p136 = scmp.ne.s32.totalorder %s128, %s130
    %p137 = scmp.eq.s32.totalorder %s26, 1
    %p138 = por %p136, %p137
    %p139 = scmp.ne.s32.totalorder %s130, %s131
    %p140 = scmp.eq.s32.totalorder %s26, 0
    %p141 = por %p139, %p140
    %p142 = scmp.ne.s32.totalorder %s130, %s131
    %p143 = scmp.eq.s32.totalorder %s27, 1
    %p144 = por %p142, %p143
    %p146 = scmp.ne.s32.totalorder %s131, %s145
    %p147 = scmp.eq.s32.totalorder %s27, 0
    %p148 = por %p146, %p147
    %s150 = sadd.s32 %s149, 1
    %p153 = scmp.eq.s32.totalorder %s21, 1
    %p154 = scmp.ne.s32.totalorder %s149, %s151
    %p155 = scmp.eq.s32.totalorder %s21, 0
    %p156 = por %p154, %p155
    %p157 = scmp.ne.s32.totalorder %s149, %s151
    %p158 = scmp.eq.s32.totalorder %s26, 1
    %p159 = por %p157, %p158
    %p160 = scmp.ne.s32.totalorder %s151, %s152
    %p161 = scmp.eq.s32.totalorder %s26, 0
    %p162 = por %p160, %p161
    %p163 = scmp.ne.s32.totalorder %s151, %s152
    %p164 = scmp.eq.s32.totalorder %s27, 1
    %p165 = por %p163, %p164
    %p167 = scmp.ne.s32.totalorder %s152, %s166
    %p168 = scmp.eq.s32.totalorder %s27, 0
    %p169 = por %p167, %p168
    %s171 = sadd.s32 %s170, 1
    %p174 = scmp.eq.s32.totalorder %s21, 1
    %p175 = scmp.ne.s32.totalorder %s170, %s172
    %p176 = scmp.eq.s32.totalorder %s21, 0
    %p177 = por %p175, %p176
    %p178 = scmp.ne.s32.totalorder %s170, %s172
    %p179 = scmp.eq.s32.totalorder %s26, 1
    %p180 = por %p178, %p179
    %p181 = scmp.ne.s32.totalorder %s172, %s173
    %p182 = scmp.eq.s32.totalorder %s26, 0
    %p183 = por %p181, %p182
    %p184 = scmp.ne.s32.totalorder %s172, %s173
    %p185 = scmp.eq.s32.totalorder %s27, 1
    %p186 = por %p184, %p185
    %p188 = scmp.ne.s32.totalorder %s173, %s187
    %p189 = scmp.eq.s32.totalorder %s27, 0
    %p190 = por %p188, %p189
    %s192 = sadd.s32 %s191, 1
    %p195 = scmp.eq.s32.totalorder %s21, 1
    %p196 = scmp.ne.s32.totalorder %s191, %s193
    %p197 = scmp.eq.s32.totalorder %s21, 0
    %p198 = por %p196, %p197
    %p199 = scmp.ne.s32.totalorder %s191, %s193
    %p200 = scmp.eq.s32.totalorder %s26, 1
    %p201 = por %p199, %p200
    %p202 = scmp.ne.s32.totalorder %s193, %s194
    %p203 = scmp.eq.s32.totalorder %s26, 0
    %p204 = por %p202, %p203
    %p205 = scmp.ne.s32.totalorder %s193, %s194
    %p206 = scmp.eq.s32.totalorder %s27, 1
    %p207 = por %p205, %p206
    %p209 = scmp.ne.s32.totalorder %s194, %s208
    %p210 = scmp.eq.s32.totalorder %s27, 0
    %p211 = por %p209, %p210
    %s213 = sadd.s32 %s212, 1
    %p216 = scmp.eq.s32.totalorder %s21, 1
    %p217 = scmp.ne.s32.totalorder %s212, %s214
    %p218 = scmp.eq.s32.totalorder %s21, 0
    %p219 = por %p217, %p218
    %p220 = scmp.ne.s32.totalorder %s212, %s214
    %p221 = scmp.eq.s32.totalorder %s26, 1
    %p222 = por %p220, %p221
    %p223 = scmp.ne.s32.totalorder %s214, %s215
    %p224 = scmp.eq.s32.totalorder %s26, 0
    %p225 = por %p223, %p224
    %p226 = scmp.ne.s32.totalorder %s214, %s215
    %p227 = scmp.eq.s32.totalorder %s27, 1
    %p228 = por %p226, %p227
    %p230 = scmp.ne.s32.totalorder %s215, %s229
    %p231 = scmp.eq.s32.totalorder %s27, 0
    %p232 = por %p230, %p231
    %s234 = sadd.s32 %s233, 1
    %p237 = scmp.eq.s32.totalorder %s21, 1
    %p238 = scmp.ne.s32.totalorder %s233, %s235
    %p239 = scmp.eq.s32.totalorder %s21, 0
    %p240 = por %p238, %p239
    %p241 = scmp.ne.s32.totalorder %s233, %s235
    %p242 = scmp.eq.s32.totalorder %s26, 1
    %p243 = por %p241, %p242
    %p244 = scmp.ne.s32.totalorder %s235, %s236
    %p245 = scmp.eq.s32.totalorder %s26, 0
    %p246 = por %p244, %p245
    %p247 = scmp.ne.s32.totalorder %s235, %s236
    %p248 = scmp.eq.s32.totalorder %s27, 1
    %p249 = por %p247, %p248
    %p251 = scmp.ne.s32.totalorder %s236, %s250
    %p252 = scmp.eq.s32.totalorder %s27, 0
    %p253 = por %p251, %p252
    %s255 = sadd.s32 %s254, 1
    %p258 = scmp.eq.s32.totalorder %s21, 1
    %p259 = scmp.ne.s32.totalorder %s254, %s256
    %p260 = scmp.eq.s32.totalorder %s21, 0
    %p261 = por %p259, %p260
    %p262 = scmp.ne.s32.totalorder %s254, %s256
    %p263 = scmp.eq.s32.totalorder %s26, 1
    %p264 = por %p262, %p263
    %p265 = scmp.ne.s32.totalorder %s256, %s257
    %p266 = scmp.eq.s32.totalorder %s26, 0
    %p267 = por %p265, %p266
    %p268 = scmp.ne.s32.totalorder %s256, %s257
    %p269 = scmp.eq.s32.totalorder %s27, 1
    %p270 = por %p268, %p269
    %p272 = scmp.ne.s32.totalorder %s257, %s271
    %p273 = scmp.eq.s32.totalorder %s27, 0
    %p274 = por %p272, %p273
    %s276 = sadd.s32 %s275, 1
    %p279 = scmp.eq.s32.totalorder %s21, 1
    %p280 = scmp.ne.s32.totalorder %s275, %s277
    %p281 = scmp.eq.s32.totalorder %s21, 0
    %p282 = por %p280, %p281
    %p283 = scmp.ne.s32.totalorder %s275, %s277
    %p284 = scmp.eq.s32.totalorder %s26, 1
    %p285 = por %p283, %p284
    %p286 = scmp.ne.s32.totalorder %s277, %s278
    %p287 = scmp.eq.s32.totalorder %s26, 0
    %p288 = por %p286, %p287
    %p289 = scmp.ne.s32.totalorder %s277, %s278
    %p290 = scmp.eq.s32.totalorder %s27, 1
    %p291 = por %p289, %p290
    %p293 = scmp.ne.s32.totalorder %s278, %s292
    %p294 = scmp.eq.s32.totalorder %s27, 0
    %p295 = por %p293, %p294
    %s297 = sadd.s32 %s296, 1
    %p300 = scmp.eq.s32.totalorder %s21, 1
    %p301 = scmp.ne.s32.totalorder %s296, %s298
    %p302 = scmp.eq.s32.totalorder %s21, 0
    %p303 = por %p301, %p302
    %p304 = scmp.ne.s32.totalorder %s296, %s298
    %p305 = scmp.eq.s32.totalorder %s26, 1
    %p306 = por %p304, %p305
    %p307 = scmp.ne.s32.totalorder %s298, %s299
    %p308 = scmp.eq.s32.totalorder %s26, 0
    %p309 = por %p307, %p308
    %p310 = scmp.ne.s32.totalorder %s298, %s299
    %p311 = scmp.eq.s32.totalorder %s27, 1
    %p312 = por %p310, %p311
    %p314 = scmp.ne.s32.totalorder %s299, %s313
    %p315 = scmp.eq.s32.totalorder %s27, 0
    %p316 = por %p314, %p315
    %s318 = sadd.s32 %s317, 1
    %p321 = scmp.eq.s32.totalorder %s21, 1
    %p322 = scmp.ne.s32.totalorder %s317, %s319
    %p323 = scmp.eq.s32.totalorder %s21, 0
    %p324 = por %p322, %p323
    %p325 = scmp.ne.s32.totalorder %s317, %s319
    %p326 = scmp.eq.s32.totalorder %s26, 1
    %p327 = por %p325, %p326
    %p328 = scmp.ne.s32.totalorder %s319, %s320
    %p329 = scmp.eq.s32.totalorder %s26, 0
    %p330 = por %p328, %p329
    %p331 = scmp.ne.s32.totalorder %s319, %s320
    %p332 = scmp.eq.s32.totalorder %s27, 1
    %p333 = por %p331, %p332
    %p335 = scmp.ne.s32.totalorder %s320, %s334
    %p336 = scmp.eq.s32.totalorder %s27, 0
    %p337 = por %p335, %p336
    %s339 = sadd.s32 %s338, 1
    %p342 = scmp.eq.s32.totalorder %s21, 1
    %p343 = scmp.ne.s32.totalorder %s338, %s340
    %p344 = scmp.eq.s32.totalorder %s21, 0
    %p345 = por %p343, %p344
    %p346 = scmp.ne.s32.totalorder %s338, %s340
    %p347 = scmp.eq.s32.totalorder %s26, 1
    %p348 = por %p346, %p347
    %p349 = scmp.ne.s32.totalorder %s340, %s341
    %p350 = scmp.eq.s32.totalorder %s26, 0
    %p351 = por %p349, %p350
    %p352 = scmp.ne.s32.totalorder %s340, %s341
    %p353 = scmp.eq.s32.totalorder %s27, 1
    %p354 = por %p352, %p353
    %p356 = scmp.ne.s32.totalorder %s341, %s355
    %p357 = scmp.eq.s32.totalorder %s27, 0
    %p358 = por %p356, %p357
    %s359 = ssub.s32 %s21, %s28
    %p360 = scmp.eq.s32.totalorder %s359, 0
    %s362 = sadd.s32 %s361, 1
    %s363 = scalar_select %p360, %s361, %s362
    %p366 = pneg %p360
    %p367 = scmp.eq.s32.totalorder %s21, 1
    %p368 = por %p366, %p367
    %p369 = scmp.ne.s32.totalorder %s361, %s364
    %p370 = scmp.eq.s32.totalorder %s21, 0
    %p371 = por %p369, %p370
    %p372 = scmp.ne.s32.totalorder %s361, %s364
    %p373 = scmp.eq.s32.totalorder %s26, 1
    %p374 = por %p372, %p373
    %p375 = scmp.ne.s32.totalorder %s364, %s365
    %p376 = scmp.eq.s32.totalorder %s26, 0
    %p377 = por %p375, %p376
    %p378 = scmp.ne.s32.totalorder %s364, %s365
    %p379 = scmp.eq.s32.totalorder %s27, 1
    %p380 = por %p378, %p379
    %p382 = scmp.ne.s32.totalorder %s365, %s381
    %p383 = scmp.eq.s32.totalorder %s27, 0
    %p384 = por %p382, %p383
    %p385 = scmp.le.s32.totalorder 1, %s21
    %p386 = scmp.lt.s32.totalorder %s21, 3
    %p387 = pnand %p385, %p386
    %p388 = pneg %p387
    // Predicated region
    $region9: #{graph_encoder_forward.3} parent=5 // pred_check
      _
    $region10: #{graph_encoder_forward.3} parent=5 // pred_check_branch
      %390 = sbr.rel (%p387) target = $region12
    $region11: #{graph_encoder_forward.3} parent=5 // pred_region
      %s391 = ssub.s32 %s21, 1
      // Predicated region
      $region13: #{graph_encoder_forward.3} parent=11 // pred_check
        %p392 = pneg %p120
      $region14: #{graph_encoder_forward.3} parent=11 // pred_check_branch
        %394 = sbr.rel (%p392) target = $region16
      $region15: #{graph_encoder_forward.3} parent=11 // pred_region
        _
      $region16: #{graph_encoder_forward.3} parent=11 // pred_fallthru
        _
      // Predicated region
      $region17: #{graph_encoder_forward.3} parent=11 // pred_check
        %p395 = pneg %p141
      $region18: #{graph_encoder_forward.3} parent=11 // pred_check_branch
        %397 = sbr.rel (%p395) target = $region20
      $region19: #{graph_encoder_forward.3} parent=11 // pred_region
        _
      $region20: #{graph_encoder_forward.3} parent=11 // pred_fallthru
        _
      // Predicated region
      $region21: #{graph_encoder_forward.3} parent=11 // pred_check
        %p398 = pneg %p162
      $region22: #{graph_encoder_forward.3} parent=11 // pred_check_branch
        %400 = sbr.rel (%p398) target = $region24
      $region23: #{graph_encoder_forward.3} parent=11 // pred_region
        _
      $region24: #{graph_encoder_forward.3} parent=11 // pred_fallthru
        _
      // Predicated region
      $region25: #{graph_encoder_forward.3} parent=11 // pred_check
        %p401 = pneg %p183
      $region26: #{graph_encoder_forward.3} parent=11 // pred_check_branch
        %403 = sbr.rel (%p401) target = $region28
      $region27: #{graph_encoder_forward.3} parent=11 // pred_region
        _
      $region28: #{graph_encoder_forward.3} parent=11 // pred_fallthru
        _
      // Predicated region
      $region29: #{graph_encoder_forward.3} parent=11 // pred_check
        %p404 = pneg %p204
      $region30: #{graph_encoder_forward.3} parent=11 // pred_check_branch
        %406 = sbr.rel (%p404) target = $region32
      $region31: #{graph_encoder_forward.3} parent=11 // pred_region
        _
      $region32: #{graph_encoder_forward.3} parent=11 // pred_fallthru
        _
      // Predicated region
      $region33: #{graph_encoder_forward.3} parent=11 // pred_check
        %p407 = pneg %p225
      $region34: #{graph_encoder_forward.3} parent=11 // pred_check_branch
        %409 = sbr.rel (%p407) target = $region36
      $region35: #{graph_encoder_forward.3} parent=11 // pred_region
        _
      $region36: #{graph_encoder_forward.3} parent=11 // pred_fallthru
        _
      // Predicated region
      $region37: #{graph_encoder_forward.3} parent=11 // pred_check
        %p410 = pneg %p246
      $region38: #{graph_encoder_forward.3} parent=11 // pred_check_branch
        %412 = sbr.rel (%p410) target = $region40
      $region39: #{graph_encoder_forward.3} parent=11 // pred_region
        _
      $region40: #{graph_encoder_forward.3} parent=11 // pred_fallthru
        _
      // Predicated region
      $region41: #{graph_encoder_forward.3} parent=11 // pred_check
        %p413 = pneg %p267
      $region42: #{graph_encoder_forward.3} parent=11 // pred_check_branch
        %415 = sbr.rel (%p413) target = $region44
      $region43: #{graph_encoder_forward.3} parent=11 // pred_region
        _
      $region44: #{graph_encoder_forward.3} parent=11 // pred_fallthru
        _
      // Predicated region
      $region45: #{graph_encoder_forward.3} parent=11 // pred_check
        %p416 = pneg %p288
      $region46: #{graph_encoder_forward.3} parent=11 // pred_check_branch
        %418 = sbr.rel (%p416) target = $region48
      $region47: #{graph_encoder_forward.3} parent=11 // pred_region
        _
      $region48: #{graph_encoder_forward.3} parent=11 // pred_fallthru
        _
      // Predicated region
      $region49: #{graph_encoder_forward.3} parent=11 // pred_check
        %p419 = pneg %p309
      $region50: #{graph_encoder_forward.3} parent=11 // pred_check_branch
        %421 = sbr.rel (%p419) target = $region52
      $region51: #{graph_encoder_forward.3} parent=11 // pred_region
        _
      $region52: #{graph_encoder_forward.3} parent=11 // pred_fallthru
        _
      // Predicated region
      $region53: #{graph_encoder_forward.3} parent=11 // pred_check
        %p422 = pneg %p330
      $region54: #{graph_encoder_forward.3} parent=11 // pred_check_branch
        %424 = sbr.rel (%p422) target = $region56
      $region55: #{graph_encoder_forward.3} parent=11 // pred_region
        _
      $region56: #{graph_encoder_forward.3} parent=11 // pred_fallthru
        _
      // Predicated region
      $region57: #{graph_encoder_forward.3} parent=11 // pred_check
        %p425 = pneg %p351
      $region58: #{graph_encoder_forward.3} parent=11 // pred_check_branch
        %427 = sbr.rel (%p425) target = $region60
      $region59: #{graph_encoder_forward.3} parent=11 // pred_region
        _
      $region60: #{graph_encoder_forward.3} parent=11 // pred_fallthru
        _
    $region12: #{graph_encoder_forward.3} parent=5 // pred_fallthru
      _
    %p428 = scmp.lt.s32.totalorder %s21, 2
    // Predicated region
    $region61: #{graph_encoder_forward.3} parent=5 // pred_check
      %p429 = pneg %p428
    $region62: #{graph_encoder_forward.3} parent=5 // pred_check_branch
      %431 = sbr.rel (%p429) target = $region64
    $region63: #{graph_encoder_forward.3} parent=5 // pred_region
      // Predicated region
      $region65: #{graph_encoder_forward.3} parent=63 // pred_check
        %p432 = pneg %p41
      $region66: #{graph_encoder_forward.3} parent=63 // pred_check_branch
        %434 = sbr.rel (%p432) target = $region68
      $region67: #{graph_encoder_forward.3} parent=63 // pred_region
        %s435 = smul.u32 2, %s21
        %p436 = scmp.lt.s32.totalorder %s435, 3
        %s437 = scalar_select %p436, %s435, 3
        %s438 = smul.addr %s437, 8
        %s439 = scalar_lea.vmem %s0, %s438
        %s440 = smul.u32 2, %s21
      $region68: #{graph_encoder_forward.3} parent=63 // pred_fallthru
        _
      // Predicated region
      $region69: #{graph_encoder_forward.3} parent=63 // pred_check
        %p441 = pneg %p67
      $region70: #{graph_encoder_forward.3} parent=63 // pred_check_branch
        %443 = sbr.rel (%p441) target = $region72
      $region71: #{graph_encoder_forward.3} parent=63 // pred_region
        %s444 = smul.u32 2, %s21
        %p445 = scmp.lt.s32.totalorder %s444, 3
        %s446 = scalar_select %p445, %s444, 3
        %s447 = scalar_lea.vmem %s1, %s446
        %s448 = smul.u32 2, %s21
      $region72: #{graph_encoder_forward.3} parent=63 // pred_fallthru
        _
      // Predicated region
      $region73: #{graph_encoder_forward.3} parent=63 // pred_check
        %p449 = pneg %p93
      $region74: #{graph_encoder_forward.3} parent=63 // pred_check_branch
        %451 = sbr.rel (%p449) target = $region76
      $region75: #{graph_encoder_forward.3} parent=63 // pred_region
        %s452 = smul.u32 2, %s21
        %p453 = scmp.lt.s32.totalorder %s452, 3
        %s454 = scalar_select %p453, %s452, 3
        %s455 = smul.addr %s454, 8
        %s456 = scalar_lea.vmem %s2, %s455
        %s457 = smul.u32 2, %s21
      $region76: #{graph_encoder_forward.3} parent=63 // pred_fallthru
        _
    $region64: #{graph_encoder_forward.3} parent=5 // pred_fallthru
      _
    %p458 = scmp.le.s32.totalorder 1, %s21
    %p459 = scmp.lt.s32.totalorder %s21, 3
    %p460 = pnand %p458, %p459
    %p461 = pneg %p460
    // Predicated region
    $region77: #{graph_encoder_forward.3} parent=5 // pred_check
      _
    $region78: #{graph_encoder_forward.3} parent=5 // pred_check_branch
      %463 = sbr.rel (%p460) target = $region80
    $region79: #{graph_encoder_forward.3} parent=5 // pred_region
      %s464 = ssub.s32 %s21, 1
      %s465 = smul.u32 2, %s26
      %p466 = scmp.lt.s32.totalorder %s465, 3
      %s467 = scalar_select %p466, %s465, 3
      %s468 = smul.addr %s467, 8
      %s469 = scalar_lea.vmem %s0, %s468
      %p470 = pneg %p47
      %p471 = pneg %p44
      %s472 = smul.u32 2, %s26
      %p473 = scmp.lt.s32.totalorder %s472, 3
      %s474 = scalar_select %p473, %s472, 3
      %s475 = scalar_lea.vmem %s1, %s474
      %p476 = pneg %p73
      %p477 = pneg %p70
      %s478 = smul.u32 2, %s26
      %p479 = scmp.lt.s32.totalorder %s478, 3
      %s480 = scalar_select %p479, %s478, 3
      %s481 = smul.addr %s480, 8
      %s482 = scalar_lea.vmem %s2, %s481
      %p483 = pneg %p99
      %p484 = pneg %p96
      %p485 = pneg %p120
      %p486 = pneg %p117
      %p487 = pneg %p141
      %p488 = pneg %p138
      %p489 = pneg %p162
      %p490 = pneg %p159
      %p491 = pneg %p183
      %p492 = pneg %p180
      %p493 = pneg %p204
      %p494 = pneg %p201
      %p495 = pneg %p225
      %p496 = pneg %p222
      %p497 = pneg %p246
      %p498 = pneg %p243
      %p499 = pneg %p267
      %p500 = pneg %p264
      %p501 = pneg %p288
      %p502 = pneg %p285
      %p503 = pneg %p309
      %p504 = pneg %p306
      %p505 = pneg %p330
      %p506 = pneg %p327
      %p507 = pneg %p351
      %p508 = pneg %p348
      %p509 = pneg %p377
      %p510 = pneg %p374
      %s511 = smul.u32 2, %s26
      %p512 = scmp.lt.s32.totalorder %s511, 3
      %s513 = scalar_select %p512, %s511, 3
      %s514 = smul.addr %s513, 8
      %s515 = scalar_lea.vmem %s15, %s514
      %s516 = smul.u32 2, %s26
      %p517 = scmp.lt.s32.totalorder %s516, 3
      %s518 = scalar_select %p517, %s516, 3
      %s519 = smul.addr %s518, 8
      %s520 = scalar_lea.vmem %s0, %s519
      %s521 = smul.u32 2, %s26
      %s522 = smul.u32 2, %s26
      %p523 = scmp.lt.s32.totalorder %s522, 3
      %s524 = scalar_select %p523, %s522, 3
      %s525 = scalar_lea.vmem %s1, %s524
      %s526 = smul.u32 2, %s26
      %s527 = smul.u32 2, %s26
      %p528 = scmp.lt.s32.totalorder %s527, 3
      %s529 = scalar_select %p528, %s527, 3
      %s530 = smul.addr %s529, 8
      %s531 = scalar_lea.vmem %s2, %s530
      %s532 = smul.u32 2, %s26
      %s533 = smul.u32 2, %s26
      %p534 = scmp.lt.s32.totalorder %s533, 3
      %s535 = scalar_select %p534, %s533, 3
      %s536 = smul.addr %s535, 8
      %s537 = scalar_lea.vmem %s15, %s536
      %s538 = smul.u32 2, %s26
      %v540 = vld [vmem:[%s520] sm:$0xff]
      %v541 = vld [vmem:[%s520 + $0x8] sm:$0xff]
      %v542 = vpack.c.bf16 %v541, %v540
      %v543 = vld [vmem:[%s3] sm:$0xf]
      %v544 = vld [vmem:[%s3 + $0x4] sm:$0xf]
      %v545 = vld [vmem:[%s3 + $0x8] sm:$0xf]
      %v546 = vld [vmem:[%s3 + $0xc] sm:$0xf]
      %v547 = vld [vmem:[%s4] sm:$0x1]
      %v549 = vlaneseq
      %v550 = vshrl.u32 %v549, 7
      %v551 = vsub.s32 0, %v550
      %v552 = vrot.slane %v547, %v551
      %v558 = vunpack.c.l.b16 %v543
      %v559 = vunpack.c.l.b16 %v544
      %v560 = vunpack.c.l.b16 %v545
      %v561 = vunpack.c.l.b16 %v546
      %v562 = vpack.c.b16 %v559, %v558
      %v563 = vpack.c.b16 %v561, %v560
      %vm566 = vcmask 261120
      %v568 = vsel %vm566, %v542, 0
      %570 = vmatprep.subr.bf16.mxu0 0
      %571 = vmatpush1.bf16.msra.mxu0 %v562
      %572 = vmatprep.subr.bf16.mxu0 0
      %573 = vmatpush1.bf16.msra.mxu0 %v563
      %574 = vmatprep.subr.bf16.mxu0 0
      %575 = vmatpush1.bf16.msra.mxu0 0
      %576 = vmatprep.subr.bf16.mxu0 0
      %577 = vmatpush1.bf16.msra.mxu0 0
      %578 = vmatprep.subr.bf16.mxu0 0
      %579 = vmatpush1.bf16.msra.mxu0 0
      %580 = vmatprep.subr.bf16.mxu0 0
      %581 = vmatpush1.bf16.msra.mxu0 0
      %582 = vmatprep.subr.bf16.mxu0 0
      %583 = vmatpush1.bf16.msra.mxu0 0
      %584 = vmatprep.subr.bf16.mxu0 0
      %585 = vmatpush1.bf16.msra.mxu0 0
      %586 = vmatprep.subr.bf16.mxu0 0
      %587 = vmatpush1.bf16.msra.mxu0 0
      %588 = vmatprep.subr.bf16.mxu0 0
      %589 = vmatpush1.bf16.msra.mxu0 0
      %590 = vmatprep.subr.bf16.mxu0 0
      %591 = vmatpush1.bf16.msra.mxu0 0
      %592 = vmatprep.subr.bf16.mxu0 0
      %593 = vmatpush1.bf16.msra.mxu0 0
      %594 = vmatprep.subr.bf16.mxu0 0
      %595 = vmatpush1.bf16.msra.mxu0 0
      %596 = vmatprep.subr.bf16.mxu0 0
      %597 = vmatpush1.bf16.msra.mxu0 0
      %598 = vmatprep.subr.bf16.mxu0 0
      %599 = vmatpush1.bf16.msra.mxu0 0
      %600 = vmatprep.subr.bf16.mxu0 0
      %601 = vmatpush1.bf16.msra.mxu0 0
      %602 = vmatprep.mubr.bf16.mxu0 0
      %603 = vmatmul.mubr.bf16.gmra.mrb[0].mxu0 %v568
      %v604 = vpop.f32.mrb[0].mxu0
      %v605 = vadd.f32 %v552, %v604
      %v606 = vpop.f32.mrb[0].mxu0
      %v607 = vpop.f32.mrb[0].mxu0
      %v608 = vadd.f32 %v552, %v607
      %v609 = vpop.f32.mrb[0].mxu0
      %610 = vdwg.mxu0
      %v611 = vld [vmem:[%s525] sm:$0x1]
      %v612 = vld [vmem:[%s525 + $0x1] sm:$0x1]
      %v613 = vld [vmem:[%s531] sm:$0xff]
      %v614 = vld [vmem:[%s531 + $0x8] sm:$0xff]
      %v615 = vpack.c.bf16 %v605, %v605
      %v616 = vpack.c.bf16 %v608, %v608
      %618 = vrot.lane.b32.xlu0 %v615, 96
      %v619 = vpop.permute.xlu0 %618
      %vm620 = vcmask 130048
      %v622 = vsel %vm620, %v615, 0
      %v625 = vsel %vm620, %v619, 0
      %627 = vmatprep.subr.bf16.mxu0 0
      %628 = vmatpush1.bf16.xpose.msra.mxu0 %v625
      %629 = vmatprep.subr.bf16.mxu0 0
      %630 = vmatpush1.bf16.xpose.msra.mxu0 0
      %631 = vmatprep.subr.bf16.mxu0 0
      %632 = vmatpush1.bf16.xpose.msra.mxu0 0
      %633 = vmatprep.subr.bf16.mxu0 0
      %634 = vmatpush1.bf16.xpose.msra.mxu0 0
      %635 = vmatprep.subr.bf16.mxu0 0
      %636 = vmatpush1.bf16.xpose.msra.mxu0 0
      %637 = vmatprep.subr.bf16.mxu0 0
      %638 = vmatpush1.bf16.xpose.msra.mxu0 0
      %639 = vmatprep.subr.bf16.mxu0 0
      %640 = vmatpush1.bf16.xpose.msra.mxu0 0
      %641 = vmatprep.subr.bf16.mxu0 0
      %642 = vmatpush1.bf16.xpose.msra.mxu0 0
      %643 = vmatprep.subr.bf16.mxu0 0
      %644 = vmatpush1.bf16.xpose.msra.mxu0 0
      %645 = vmatprep.subr.bf16.mxu0 0
      %646 = vmatpush1.bf16.xpose.msra.mxu0 0
      %647 = vmatprep.subr.bf16.mxu0 0
      %648 = vmatpush1.bf16.xpose.msra.mxu0 0
      %649 = vmatprep.subr.bf16.mxu0 0
      %650 = vmatpush1.bf16.xpose.msra.mxu0 0
      %651 = vmatprep.subr.bf16.mxu0 0
      %652 = vmatpush1.bf16.xpose.msra.mxu0 0
      %653 = vmatprep.subr.bf16.mxu0 0
      %654 = vmatpush1.bf16.xpose.msra.mxu0 0
      %655 = vmatprep.subr.bf16.mxu0 0
      %656 = vmatpush1.bf16.xpose.msra.mxu0 0
      %657 = vmatprep.subr.bf16.mxu0 0
      %658 = vmatpush1.bf16.xpose.msra.mxu0 0
      %659 = vmatprep.mubr.bf16.mxu0 0
      %660 = vmatmul.mubr.bf16.gmra.mrb[0].mxu0 %v622
      %v661 = vpop.f32.mrb[0].mxu0
      %v662 = vadd.f32 0.0, %v661
      %v663 = vpop.f32.mrb[0].mxu0
      %v664 = vpop.f32.mrb[0].mxu0
      %v665 = vpop.f32.mrb[0].mxu0
      %666 = vdwg.mxu0
      %668 = vrot.lane.b32.xlu0 %v616, 96
      %v669 = vpop.permute.xlu0 %668
      %v671 = vsel %vm620, %v616, 0
      %v674 = vsel %vm620, %v669, 0
      %676 = vmatprep.subr.bf16.mxu0 0
      %677 = vmatpush1.bf16.xpose.msra.mxu0 %v674
      %678 = vmatprep.subr.bf16.mxu0 0
      %679 = vmatpush1.bf16.xpose.msra.mxu0 0
      %680 = vmatprep.subr.bf16.mxu0 0
      %681 = vmatpush1.bf16.xpose.msra.mxu0 0
      %682 = vmatprep.subr.bf16.mxu0 0
      %683 = vmatpush1.bf16.xpose.msra.mxu0 0
      %684 = vmatprep.subr.bf16.mxu0 0
      %685 = vmatpush1.bf16.xpose.msra.mxu0 0
      %686 = vmatprep.subr.bf16.mxu0 0
      %687 = vmatpush1.bf16.xpose.msra.mxu0 0
      %688 = vmatprep.subr.bf16.mxu0 0
      %689 = vmatpush1.bf16.xpose.msra.mxu0 0
      %690 = vmatprep.subr.bf16.mxu0 0
      %691 = vmatpush1.bf16.xpose.msra.mxu0 0
      %692 = vmatprep.subr.bf16.mxu0 0
      %693 = vmatpush1.bf16.xpose.msra.mxu0 0
      %694 = vmatprep.subr.bf16.mxu0 0
      %695 = vmatpush1.bf16.xpose.msra.mxu0 0
      %696 = vmatprep.subr.bf16.mxu0 0
      %697 = vmatpush1.bf16.xpose.msra.mxu0 0
      %698 = vmatprep.subr.bf16.mxu0 0
      %699 = vmatpush1.bf16.xpose.msra.mxu0 0
      %700 = vmatprep.subr.bf16.mxu0 0
      %701 = vmatpush1.bf16.xpose.msra.mxu0 0
      %702 = vmatprep.subr.bf16.mxu0 0
      %703 = vmatpush1.bf16.xpose.msra.mxu0 0
      %704 = vmatprep.subr.bf16.mxu0 0
      %705 = vmatpush1.bf16.xpose.msra.mxu0 0
      %706 = vmatprep.subr.bf16.mxu0 0
      %707 = vmatpush1.bf16.xpose.msra.mxu0 0
      %708 = vmatprep.mubr.bf16.mxu0 0
      %709 = vmatmul.mubr.bf16.gmra.mrb[0].mxu0 %v671
      %v710 = vpop.f32.mrb[0].mxu0
      %v711 = vadd.f32 0.0, %v710
      %v712 = vpop.f32.mrb[0].mxu0
      %v713 = vpop.f32.mrb[0].mxu0
      %v714 = vpop.f32.mrb[0].mxu0
      %715 = vdwg.mxu0
      %v716 = vmul.f32 %v662, 0.25
      %v717 = vmul.f32 %v711, 0.25
      %v720 = vlaneseq
      %v721 = vshrl.u32 %v720, 7
      %v722 = vsub.s32 0, %v721
      %v723 = vrot.slane %v611, %v722
      %v724 = vlaneseq
      %v725 = vshrl.u32 %v724, 7
      %v726 = vsub.s32 0, %v725
      %v727 = vrot.slane %v612, %v726
      %v730 = vadd.f32 %v716, %v723
      %v731 = vadd.f32 %v717, %v727
      %vm732 = vcmask 64512
      %v733 = vsel %vm732, %v730, -inf
      %734 = vmax.xlane.f32.xlu0 %v733
      %v735 = vpop.xlane.xlu0 %734
      %v736 = vsel %vm732, %v731, -inf
      %737 = vmax.xlane.f32.xlu0 %v736
      %v738 = vpop.xlane.xlu0 %737
      %v739 = vsub.f32 %v730, %v735
      %v740 = vsub.f32 %v731, %v738
      %v741 = vmul.f32 %v739, 1.442695
      %v742 = vpow.pop %v741
      %v743 = vmul.f32 %v740, 1.442695
      %v744 = vpow.pop %v743
      %v745 = vsel %vm732, %v742, 0.0
      %746 = vadd.xlane.f32.xlu0 %v745
      %v747 = vpop.xlane.xlu0 %746
      %v748 = vsel %vm732, %v744, 0.0
      %749 = vadd.xlane.f32.xlu0 %v748
      %v750 = vpop.xlane.xlu0 %749
      %v751 = vrcp.pop %v747
      %v752 = vrcp.pop %v750
      %v753 = vmul.f32 %v742, %v751
      %v754 = vmul.f32 %v744, %v752
      %v755 = vpack.c.bf16 %v753, %v753
      %v756 = vpack.c.bf16 %v754, %v754
      %757 = vrot.lane.b32.xlu0 %v615, 64
      %v758 = vpop.permute.xlu0 %757
      %v760 = vsel %vm732, %v755, 0
      %vm762 = vcmask 1043456
      %v764 = vsel %vm762, %v758, 0
      %766 = vmatprep.subr.bf16.mxu0 0
      %767 = vmatpush1.bf16.msra.mxu0 %v764
      %768 = vmatprep.subr.bf16.mxu0 0
      %769 = vmatpush1.bf16.msra.mxu0 0
      %770 = vmatprep.subr.bf16.mxu0 0
      %771 = vmatpush1.bf16.msra.mxu0 0
      %772 = vmatprep.subr.bf16.mxu0 0
      %773 = vmatpush1.bf16.msra.mxu0 0
      %774 = vmatprep.subr.bf16.mxu0 0
      %775 = vmatpush1.bf16.msra.mxu0 0
      %776 = vmatprep.subr.bf16.mxu0 0
      %777 = vmatpush1.bf16.msra.mxu0 0
      %778 = vmatprep.subr.bf16.mxu0 0
      %779 = vmatpush1.bf16.msra.mxu0 0
      %780 = vmatprep.subr.bf16.mxu0 0
      %781 = vmatpush1.bf16.msra.mxu0 0
      %782 = vmatprep.subr.bf16.mxu0 0
      %783 = vmatpush1.bf16.msra.mxu0 0
      %784 = vmatprep.subr.bf16.mxu0 0
      %785 = vmatpush1.bf16.msra.mxu0 0
      %786 = vmatprep.subr.bf16.mxu0 0
      %787 = vmatpush1.bf16.msra.mxu0 0
      %788 = vmatprep.subr.bf16.mxu0 0
      %789 = vmatpush1.bf16.msra.mxu0 0
      %790 = vmatprep.subr.bf16.mxu0 0
      %791 = vmatpush1.bf16.msra.mxu0 0
      %792 = vmatprep.subr.bf16.mxu0 0
      %793 = vmatpush1.bf16.msra.mxu0 0
      %794 = vmatprep.subr.bf16.mxu0 0
      %795 = vmatpush1.bf16.msra.mxu0 0
      %796 = vmatprep.subr.bf16.mxu0 0
      %797 = vmatpush1.bf16.msra.mxu0 0
      %798 = vmatprep.mubr.bf16.mxu0 0
      %799 = vmatmul.mubr.bf16.gmra.mrb[0].mxu0 %v760
      %v800 = vpop.f32.mrb[0].mxu0
      %v801 = vadd.f32 0.0, %v800
      %v802 = vpop.f32.mrb[0].mxu0
      %v803 = vpop.f32.mrb[0].mxu0
      %v804 = vpop.f32.mrb[0].mxu0
      %805 = vdwg.mxu0
      %806 = vrot.lane.b32.xlu0 %v616, 64
      %v807 = vpop.permute.xlu0 %806
      %v809 = vsel %vm732, %v756, 0
      %v812 = vsel %vm762, %v807, 0
      %814 = vmatprep.subr.bf16.mxu0 0
      %815 = vmatpush1.bf16.msra.mxu0 %v812
      %816 = vmatprep.subr.bf16.mxu0 0
      %817 = vmatpush1.bf16.msra.mxu0 0
      %818 = vmatprep.subr.bf16.mxu0 0
      %819 = vmatpush1.bf16.msra.mxu0 0
      %820 = vmatprep.subr.bf16.mxu0 0
      %821 = vmatpush1.bf16.msra.mxu0 0
      %822 = vmatprep.subr.bf16.mxu0 0
      %823 = vmatpush1.bf16.msra.mxu0 0
      %824 = vmatprep.subr.bf16.mxu0 0
      %825 = vmatpush1.bf16.msra.mxu0 0
      %826 = vmatprep.subr.bf16.mxu0 0
      %827 = vmatpush1.bf16.msra.mxu0 0
      %828 = vmatprep.subr.bf16.mxu0 0
      %829 = vmatpush1.bf16.msra.mxu0 0
      %830 = vmatprep.subr.bf16.mxu0 0
      %831 = vmatpush1.bf16.msra.mxu0 0
      %832 = vmatprep.subr.bf16.mxu0 0
      %833 = vmatpush1.bf16.msra.mxu0 0
      %834 = vmatprep.subr.bf16.mxu0 0
      %835 = vmatpush1.bf16.msra.mxu0 0
      %836 = vmatprep.subr.bf16.mxu0 0
      %837 = vmatpush1.bf16.msra.mxu0 0
      %838 = vmatprep.subr.bf16.mxu0 0
      %839 = vmatpush1.bf16.msra.mxu0 0
      %840 = vmatprep.subr.bf16.mxu0 0
      %841 = vmatpush1.bf16.msra.mxu0 0
      %842 = vmatprep.subr.bf16.mxu0 0
      %843 = vmatpush1.bf16.msra.mxu0 0
      %844 = vmatprep.subr.bf16.mxu0 0
      %845 = vmatpush1.bf16.msra.mxu0 0
      %846 = vmatprep.mubr.bf16.mxu0 0
      %847 = vmatmul.mubr.bf16.gmra.mrb[0].mxu0 %v809
      %v848 = vpop.f32.mrb[0].mxu0
      %v849 = vadd.f32 0.0, %v848
      %v850 = vpop.f32.mrb[0].mxu0
      %v851 = vpop.f32.mrb[0].mxu0
      %v852 = vpop.f32.mrb[0].mxu0
      %853 = vdwg.mxu0
      %854 = vst.msk [vmem:[#allocation2] sm:$0xff] %vm620, %v801
      %855 = vst.msk [vmem:[#allocation2 + $0x8] sm:$0xff] %vm620, %v849
      %856 = vrot.lane.b32.xlu0 %v615, 112
      %v857 = vpop.permute.xlu0 %856
      %858 = vrot.lane.b32.xlu0 %v615, 80
      %v859 = vpop.permute.xlu0 %858
      %v861 = vsel %vm620, %v857, 0
      %v864 = vsel %vm620, %v859, 0
      %866 = vmatprep.subr.bf16.mxu0 0
      %867 = vmatpush1.bf16.xpose.msra.mxu0 %v864
      %868 = vmatprep.subr.bf16.mxu0 0
      %869 = vmatpush1.bf16.xpose.msra.mxu0 0
      %870 = vmatprep.subr.bf16.mxu0 0
      %871 = vmatpush1.bf16.xpose.msra.mxu0 0
      %872 = vmatprep.subr.bf16.mxu0 0
      %873 = vmatpush1.bf16.xpose.msra.mxu0 0
      %874 = vmatprep.subr.bf16.mxu0 0
      %875 = vmatpush1.bf16.xpose.msra.mxu0 0
      %876 = vmatprep.subr.bf16.mxu0 0
      %877 = vmatpush1.bf16.xpose.msra.mxu0 0
      %878 = vmatprep.subr.bf16.mxu0 0
      %879 = vmatpush1.bf16.xpose.msra.mxu0 0
      %880 = vmatprep.subr.bf16.mxu0 0
      %881 = vmatpush1.bf16.xpose.msra.mxu0 0
      %882 = vmatprep.subr.bf16.mxu0 0
      %883 = vmatpush1.bf16.xpose.msra.mxu0 0
      %884 = vmatprep.subr.bf16.mxu0 0
      %885 = vmatpush1.bf16.xpose.msra.mxu0 0
      %886 = vmatprep.subr.bf16.mxu0 0
      %887 = vmatpush1.bf16.xpose.msra.mxu0 0
      %888 = vmatprep.subr.bf16.mxu0 0
      %889 = vmatpush1.bf16.xpose.msra.mxu0 0
      %890 = vmatprep.subr.bf16.mxu0 0
      %891 = vmatpush1.bf16.xpose.msra.mxu0 0
      %892 = vmatprep.subr.bf16.mxu0 0
      %893 = vmatpush1.bf16.xpose.msra.mxu0 0
      %894 = vmatprep.subr.bf16.mxu0 0
      %895 = vmatpush1.bf16.xpose.msra.mxu0 0
      %896 = vmatprep.subr.bf16.mxu0 0
      %897 = vmatpush1.bf16.xpose.msra.mxu0 0
      %898 = vmatprep.mubr.bf16.mxu0 0
      %899 = vmatmul.mubr.bf16.gmra.mrb[0].mxu0 %v861
      %v900 = vpop.f32.mrb[0].mxu0
      %v901 = vadd.f32 0.0, %v900
      %v902 = vpop.f32.mrb[0].mxu0
      %v903 = vpop.f32.mrb[0].mxu0
      %v904 = vpop.f32.mrb[0].mxu0
      %905 = vdwg.mxu0
      %906 = vrot.lane.b32.xlu0 %v616, 112
      %v907 = vpop.permute.xlu0 %906
      %908 = vrot.lane.b32.xlu0 %v616, 80
      %v909 = vpop.permute.xlu0 %908
      %v911 = vsel %vm620, %v907, 0
      %v914 = vsel %vm620, %v909, 0
      %916 = vmatprep.subr.bf16.mxu0 0
      %917 = vmatpush1.bf16.xpose.msra.mxu0 %v914
      %918 = vmatprep.subr.bf16.mxu0 0
      %919 = vmatpush1.bf16.xpose.msra.mxu0 0
      %920 = vmatprep.subr.bf16.mxu0 0
      %921 = vmatpush1.bf16.xpose.msra.mxu0 0
      %922 = vmatprep.subr.bf16.mxu0 0
      %923 = vmatpush1.bf16.xpose.msra.mxu0 0
      %924 = vmatprep.subr.bf16.mxu0 0
      %925 = vmatpush1.bf16.xpose.msra.mxu0 0
      %926 = vmatprep.subr.bf16.mxu0 0
      %927 = vmatpush1.bf16.xpose.msra.mxu0 0
      %928 = vmatprep.subr.bf16.mxu0 0
      %929 = vmatpush1.bf16.xpose.msra.mxu0 0
      %930 = vmatprep.subr.bf16.mxu0 0
      %931 = vmatpush1.bf16.xpose.msra.mxu0 0
      %932 = vmatprep.subr.bf16.mxu0 0
      %933 = vmatpush1.bf16.xpose.msra.mxu0 0
      %934 = vmatprep.subr.bf16.mxu0 0
      %935 = vmatpush1.bf16.xpose.msra.mxu0 0
      %936 = vmatprep.subr.bf16.mxu0 0
      %937 = vmatpush1.bf16.xpose.msra.mxu0 0
      %938 = vmatprep.subr.bf16.mxu0 0
      %939 = vmatpush1.bf16.xpose.msra.mxu0 0
      %940 = vmatprep.subr.bf16.mxu0 0
      %941 = vmatpush1.bf16.xpose.msra.mxu0 0
      %942 = vmatprep.subr.bf16.mxu0 0
      %943 = vmatpush1.bf16.xpose.msra.mxu0 0
      %944 = vmatprep.subr.bf16.mxu0 0
      %945 = vmatpush1.bf16.xpose.msra.mxu0 0
      %946 = vmatprep.subr.bf16.mxu0 0
      %947 = vmatpush1.bf16.xpose.msra.mxu0 0
      %948 = vmatprep.mubr.bf16.mxu0 0
      %949 = vmatmul.mubr.bf16.gmra.mrb[0].mxu0 %v911
      %v950 = vpop.f32.mrb[0].mxu0
      %v951 = vadd.f32 0.0, %v950
      %v952 = vpop.f32.mrb[0].mxu0
      %v953 = vpop.f32.mrb[0].mxu0
      %v954 = vpop.f32.mrb[0].mxu0
      %955 = vdwg.mxu0
      %v956 = vmul.f32 %v901, 0.25
      %v957 = vmul.f32 %v951, 0.25
      %v958 = vadd.f32 %v956, %v723
      %v959 = vadd.f32 %v957, %v727
      %v960 = vsel %vm732, %v958, -inf
      %961 = vmax.xlane.f32.xlu0 %v960
      %v962 = vpop.xlane.xlu0 %961
      %v963 = vsel %vm732, %v959, -inf
      %964 = vmax.xlane.f32.xlu0 %v963
      %v965 = vpop.xlane.xlu0 %964
      %v966 = vsub.f32 %v958, %v962
      %v967 = vsub.f32 %v959, %v965
      %v968 = vmul.f32 %v966, 1.442695
      %v969 = vpow.pop %v968
      %v970 = vmul.f32 %v967, 1.442695
      %v971 = vpow.pop %v970
      %v972 = vsel %vm732, %v969, 0.0
      %973 = vadd.xlane.f32.xlu0 %v972
      %v974 = vpop.xlane.xlu0 %973
      %v975 = vsel %vm732, %v971, 0.0
      %976 = vadd.xlane.f32.xlu0 %v975
      %v977 = vpop.xlane.xlu0 %976
      %v978 = vrcp.pop %v974
      %v979 = vrcp.pop %v977
      %v980 = vmul.f32 %v969, %v978
      %v981 = vmul.f32 %v971, %v979
      %v982 = vpack.c.bf16 %v980, %v980
      %v983 = vpack.c.bf16 %v981, %v981
      %984 = vrot.lane.b32.xlu0 %v615, 48
      %v985 = vpop.permute.xlu0 %984
      %v987 = vsel %vm732, %v982, 0
      %v990 = vsel %vm762, %v985, 0
      %992 = vmatprep.subr.bf16.mxu0 0
      %993 = vmatpush1.bf16.msra.mxu0 %v990
      %994 = vmatprep.subr.bf16.mxu0 0
      %995 = vmatpush1.bf16.msra.mxu0 0
      %996 = vmatprep.subr.bf16.mxu0 0
      %997 = vmatpush1.bf16.msra.mxu0 0
      %998 = vmatprep.subr.bf16.mxu0 0
      %999 = vmatpush1.bf16.msra.mxu0 0
      %1000 = vmatprep.subr.bf16.mxu0 0
      %1001 = vmatpush1.bf16.msra.mxu0 0
      %1002 = vmatprep.subr.bf16.mxu0 0
      %1003 = vmatpush1.bf16.msra.mxu0 0
      %1004 = vmatprep.subr.bf16.mxu0 0
      %1005 = vmatpush1.bf16.msra.mxu0 0
      %1006 = vmatprep.subr.bf16.mxu0 0
      %1007 = vmatpush1.bf16.msra.mxu0 0
      %1008 = vmatprep.subr.bf16.mxu0 0
      %1009 = vmatpush1.bf16.msra.mxu0 0
      %1010 = vmatprep.subr.bf16.mxu0 0
      %1011 = vmatpush1.bf16.msra.mxu0 0
      %1012 = vmatprep.subr.bf16.mxu0 0
      %1013 = vmatpush1.bf16.msra.mxu0 0
      %1014 = vmatprep.subr.bf16.mxu0 0
      %1015 = vmatpush1.bf16.msra.mxu0 0
      %1016 = vmatprep.subr.bf16.mxu0 0
      %1017 = vmatpush1.bf16.msra.mxu0 0
      %1018 = vmatprep.subr.bf16.mxu0 0
      %1019 = vmatpush1.bf16.msra.mxu0 0
      %1020 = vmatprep.subr.bf16.mxu0 0
      %1021 = vmatpush1.bf16.msra.mxu0 0
      %1022 = vmatprep.subr.bf16.mxu0 0
      %1023 = vmatpush1.bf16.msra.mxu0 0
      %1024 = vmatprep.mubr.bf16.mxu0 0
      %1025 = vmatmul.mubr.bf16.gmra.mrb[0].mxu0 %v987
      %v1026 = vpop.f32.mrb[0].mxu0
      %v1027 = vadd.f32 0.0, %v1026
      %v1028 = vpop.f32.mrb[0].mxu0
      %v1029 = vpop.f32.mrb[0].mxu0
      %v1030 = vpop.f32.mrb[0].mxu0
      %1031 = vdwg.mxu0
      %1032 = vrot.lane.b32.xlu0 %v616, 48
      %v1033 = vpop.permute.xlu0 %1032
      %v1035 = vsel %vm732, %v983, 0
      %v1038 = vsel %vm762, %v1033, 0
      %1040 = vmatprep.subr.bf16.mxu0 0
      %1041 = vmatpush1.bf16.msra.mxu0 %v1038
      %1042 = vmatprep.subr.bf16.mxu0 0
      %1043 = vmatpush1.bf16.msra.mxu0 0
      %1044 = vmatprep.subr.bf16.mxu0 0
      %1045 = vmatpush1.bf16.msra.mxu0 0
      %1046 = vmatprep.subr.bf16.mxu0 0
      %1047 = vmatpush1.bf16.msra.mxu0 0
      %1048 = vmatprep.subr.bf16.mxu0 0
      %1049 = vmatpush1.bf16.msra.mxu0 0
      %1050 = vmatprep.subr.bf16.mxu0 0
      %1051 = vmatpush1.bf16.msra.mxu0 0
      %1052 = vmatprep.subr.bf16.mxu0 0
      %1053 = vmatpush1.bf16.msra.mxu0 0
      %1054 = vmatprep.subr.bf16.mxu0 0
      %1055 = vmatpush1.bf16.msra.mxu0 0
      %1056 = vmatprep.subr.bf16.mxu0 0
      %1057 = vmatpush1.bf16.msra.mxu0 0
      %1058 = vmatprep.subr.bf16.mxu0 0
      %1059 = vmatpush1.bf16.msra.mxu0 0
      %1060 = vmatprep.subr.bf16.mxu0 0
      %1061 = vmatpush1.bf16.msra.mxu0 0
      %1062 = vmatprep.subr.bf16.mxu0 0
      %1063 = vmatpush1.bf16.msra.mxu0 0
      %1064 = vmatprep.subr.bf16.mxu0 0
      %1065 = vmatpush1.bf16.msra.mxu0 0
      %1066 = vmatprep.subr.bf16.mxu0 0
      %1067 = vmatpush1.bf16.msra.mxu0 0
      %1068 = vmatprep.subr.bf16.mxu0 0
      %1069 = vmatpush1.bf16.msra.mxu0 0
      %1070 = vmatprep.subr.bf16.mxu0 0
      %1071 = vmatpush1.bf16.msra.mxu0 0
      %1072 = vmatprep.mubr.bf16.mxu0 0
      %1073 = vmatmul.mubr.bf16.gmra.mrb[0].mxu0 %v1035
      %v1074 = vpop.f32.mrb[0].mxu0
      %v1075 = vadd.f32 0.0, %v1074
      %v1076 = vpop.f32.mrb[0].mxu0
      %v1077 = vpop.f32.mrb[0].mxu0
      %v1078 = vpop.f32.mrb[0].mxu0
      %1079 = vdwg.mxu0
      %1082 = vrot.lane.b32.xlu0 %v1027, 16
      %v1083 = vpop.permute.xlu0 %1082
      %1084 = vrot.lane.b32.xlu0 %v1075, 16
      %v1085 = vpop.permute.xlu0 %1084
      %vm1088 = vcmask 261248
      %1089 = vst.msk [vmem:[#allocation2] sm:$0xff] %vm1088, %v1083
      %1090 = vst.msk [vmem:[#allocation2 + $0x8] sm:$0xff] %vm1088, %v1085
      %v1091 = vld [vmem:[#allocation2] sm:$0xff]
      %v1092 = vld [vmem:[#allocation2 + $0x8] sm:$0xff]
      %v1093 = vpack.c.bf16 %v1092, %v1091
      %v1094 = vld [vmem:[%s5] sm:$0xf]
      %v1095 = vld [vmem:[%s5 + $0x4] sm:$0xf]
      %v1096 = vld [vmem:[%s5 + $0x8] sm:$0xf]
      %v1097 = vld [vmem:[%s5 + $0xc] sm:$0xf]
      %v1098 = vld [vmem:[%s6] sm:$0x1]
      %v1100 = vlaneseq
      %v1101 = vshrl.u32 %v1100, 7
      %v1102 = vsub.s32 0, %v1101
      %v1103 = vrot.slane %v1098, %v1102
      %v1109 = vunpack.c.l.b16 %v1094
      %v1110 = vunpack.c.l.b16 %v1095
      %v1111 = vunpack.c.l.b16 %v1096
      %v1112 = vunpack.c.l.b16 %v1097
      %v1113 = vpack.c.b16 %v1110, %v1109
      %v1114 = vpack.c.b16 %v1112, %v1111
      %v1118 = vsel %vm566, %v1093, 0
      %1120 = vmatprep.subr.bf16.mxu0 0
      %1121 = vmatpush1.bf16.msra.mxu0 %v1113
      %1122 = vmatprep.subr.bf16.mxu0 0
      %1123 = vmatpush1.bf16.msra.mxu0 %v1114
      %1124 = vmatprep.subr.bf16.mxu0 0
      %1125 = vmatpush1.bf16.msra.mxu0 0
      %1126 = vmatprep.subr.bf16.mxu0 0
      %1127 = vmatpush1.bf16.msra.mxu0 0
      %1128 = vmatprep.subr.bf16.mxu0 0
      %1129 = vmatpush1.bf16.msra.mxu0 0
      %1130 = vmatprep.subr.bf16.mxu0 0
      %1131 = vmatpush1.bf16.msra.mxu0 0
      %1132 = vmatprep.subr.bf16.mxu0 0
      %1133 = vmatpush1.bf16.msra.mxu0 0
      %1134 = vmatprep.subr.bf16.mxu0 0
      %1135 = vmatpush1.bf16.msra.mxu0 0
      %1136 = vmatprep.subr.bf16.mxu0 0
      %1137 = vmatpush1.bf16.msra.mxu0 0
      %1138 = vmatprep.subr.bf16.mxu0 0
      %1139 = vmatpush1.bf16.msra.mxu0 0
      %1140 = vmatprep.subr.bf16.mxu0 0
      %1141 = vmatpush1.bf16.msra.mxu0 0
      %1142 = vmatprep.subr.bf16.mxu0 0
      %1143 = vmatpush1.bf16.msra.mxu0 0
      %1144 = vmatprep.subr.bf16.mxu0 0
      %1145 = vmatpush1.bf16.msra.mxu0 0
      %1146 = vmatprep.subr.bf16.mxu0 0
      %1147 = vmatpush1.bf16.msra.mxu0 0
      %1148 = vmatprep.subr.bf16.mxu0 0
      %1149 = vmatpush1.bf16.msra.mxu0 0
      %1150 = vmatprep.subr.bf16.mxu0 0
      %1151 = vmatpush1.bf16.msra.mxu0 0
      %1152 = vmatprep.mubr.bf16.mxu0 0
      %1153 = vmatmul.mubr.bf16.gmra.mrb[0].mxu0 %v1118
      %v1154 = vpop.f32.mrb[0].mxu0
      %v1155 = vadd.f32 %v1103, %v1154
      %v1156 = vpop.f32.mrb[0].mxu0
      %v1157 = vpop.f32.mrb[0].mxu0
      %v1158 = vadd.f32 %v1103, %v1157
      %v1159 = vpop.f32.mrb[0].mxu0
      %1160 = vdwg.mxu0
      %v1161 = vadd.f32 %v1155, %v540
      %v1162 = vadd.f32 %v1158, %v541
      %v1163 = vsel %vm566, %v1161, 0.0
      %1164 = vadd.xlane.f32.xlu0 %v1163
      %v1165 = vpop.xlane.xlu0 %1164
      %v1166 = vsel %vm566, %v1162, 0.0
      %1167 = vadd.xlane.f32.xlu0 %v1166
      %v1168 = vpop.xlane.xlu0 %1167
      %v1169 = vrcp.pop 32.0
      %v1170 = vmul.f32 %v1165, %v1169
      %v1171 = vmul.f32 %v1168, %v1169
      %v1172 = vsub.f32 %v1161, %v1170
      %v1173 = vsub.f32 %v1162, %v1171
      %v1174 = vmul.f32 %v1172, %v1172
      %v1175 = vmul.f32 %v1173, %v1173
      %v1176 = vsel %vm566, %v1174, 0.0
      %1177 = vadd.xlane.f32.xlu0 %v1176
      %v1178 = vpop.xlane.xlu0 %1177
      %v1179 = vsel %vm566, %v1175, 0.0
      %1180 = vadd.xlane.f32.xlu0 %v1179
      %v1181 = vpop.xlane.xlu0 %1180
      %v1182 = vmul.f32 %v1178, %v1169
      %v1183 = vmul.f32 %v1181, %v1169
      %v1184 = vadd.f32 %v1182, 1e-05
      %v1185 = vadd.f32 %v1183, 1e-05
      %v1186 = vrsqrt.pop %v1184
      %v1187 = vrsqrt.pop %v1185
      %v1188 = vmul.f32 %v1172, %v1186
      %v1189 = vmul.f32 %v1173, %v1187
      %v1190 = vld [vmem:[%s7] sm:$0x1]
      %v1192 = vlaneseq
      %v1193 = vshrl.u32 %v1192, 7
      %v1194 = vsub.s32 0, %v1193
      %v1195 = vrot.slane %v1190, %v1194
      %v1197 = vmul.f32 %v1188, %v1195
      %v1198 = vmul.f32 %v1189, %v1195
      %v1199 = vld [vmem:[%s8] sm:$0x1]
      %v1201 = vlaneseq
      %v1202 = vshrl.u32 %v1201, 7
      %v1203 = vsub.s32 0, %v1202
      %v1204 = vrot.slane %v1199, %v1203
      %v1206 = vadd.f32 %v1197, %v1204
      %v1207 = vadd.f32 %v1198, %v1204
      %1209 = vset.pattern.permute.xlu0 0
      %1210 = vperm.xlu0 %1209, %v613
      %v1211 = vpop.permute.xlu0 %1210
      %1214 = vset.pattern.permute.xlu0 0
      %1215 = vperm.xlu0 %1214, %v614
      %v1216 = vpop.permute.xlu0 %1215
      %v1218 = vmul.f32 %v1206, %v1211
      %v1219 = vmul.f32 %v1207, %v1216
      %v1220 = vpack.c.bf16 %v1219, %v1218
      %v1221 = vld [vmem:[%s9] sm:$0xf]
      %v1222 = vld [vmem:[%s9 + $0x4] sm:$0xf]
      %v1223 = vld [vmem:[%s9 + $0x8] sm:$0xf]
      %v1224 = vld [vmem:[%s9 + $0xc] sm:$0xf]
      %v1225 = vld [vmem:[%s10] sm:$0x1]
      %v1227 = vlaneseq
      %v1228 = vshrl.u32 %v1227, 7
      %v1229 = vsub.s32 0, %v1228
      %v1230 = vrot.slane %v1225, %v1229
      %v1236 = vunpack.c.l.b16 %v1221
      %v1237 = vunpack.c.l.b16 %v1222
      %v1238 = vunpack.c.l.b16 %v1223
      %v1239 = vunpack.c.l.b16 %v1224
      %v1240 = vpack.c.b16 %v1237, %v1236
      %v1241 = vpack.c.b16 %v1239, %v1238
      %v1245 = vsel %vm566, %v1220, 0
      %1247 = vmatprep.subr.bf16.mxu0 0
      %1248 = vmatpush1.bf16.msra.mxu0 %v1240
      %1249 = vmatprep.subr.bf16.mxu0 0
      %1250 = vmatpush1.bf16.msra.mxu0 %v1241
      %1251 = vmatprep.subr.bf16.mxu0 0
      %1252 = vmatpush1.bf16.msra.mxu0 0
      %1253 = vmatprep.subr.bf16.mxu0 0
      %1254 = vmatpush1.bf16.msra.mxu0 0
      %1255 = vmatprep.subr.bf16.mxu0 0
      %1256 = vmatpush1.bf16.msra.mxu0 0
      %1257 = vmatprep.subr.bf16.mxu0 0
      %1258 = vmatpush1.bf16.msra.mxu0 0
      %1259 = vmatprep.subr.bf16.mxu0 0
      %1260 = vmatpush1.bf16.msra.mxu0 0
      %1261 = vmatprep.subr.bf16.mxu0 0
      %1262 = vmatpush1.bf16.msra.mxu0 0
      %1263 = vmatprep.subr.bf16.mxu0 0
      %1264 = vmatpush1.bf16.msra.mxu0 0
      %1265 = vmatprep.subr.bf16.mxu0 0
      %1266 = vmatpush1.bf16.msra.mxu0 0
      %1267 = vmatprep.subr.bf16.mxu0 0
      %1268 = vmatpush1.bf16.msra.mxu0 0
      %1269 = vmatprep.subr.bf16.mxu0 0
      %1270 = vmatpush1.bf16.msra.mxu0 0
      %1271 = vmatprep.subr.bf16.mxu0 0
      %1272 = vmatpush1.bf16.msra.mxu0 0
      %1273 = vmatprep.subr.bf16.mxu0 0
      %1274 = vmatpush1.bf16.msra.mxu0 0
      %1275 = vmatprep.subr.bf16.mxu0 0
      %1276 = vmatpush1.bf16.msra.mxu0 0
      %1277 = vmatprep.subr.bf16.mxu0 0
      %1278 = vmatpush1.bf16.msra.mxu0 0
      %1279 = vmatprep.mubr.bf16.mxu0 0
      %1280 = vmatmul.mubr.bf16.gmra.mrb[0].mxu0 %v1245
      %v1281 = vpop.f32.mrb[0].mxu0
      %v1282 = vadd.f32 %v1230, %v1281
      %v1283 = vpop.f32.mrb[0].mxu0
      %v1284 = vpop.f32.mrb[0].mxu0
      %v1285 = vadd.f32 %v1230, %v1284
      %v1286 = vpop.f32.mrb[0].mxu0
      %1287 = vdwg.mxu0
      %v1288 = vmax.f32 %v1282, 0.0
      %v1289 = vmax.f32 %v1285, 0.0
      %v1290 = vpack.c.bf16 %v1289, %v1288
      %v1291 = vld [vmem:[%s11] sm:$0xf]
      %v1292 = vld [vmem:[%s11 + $0x4] sm:$0xf]
      %v1293 = vld [vmem:[%s11 + $0x8] sm:$0xf]
      %v1294 = vld [vmem:[%s11 + $0xc] sm:$0xf]
      %v1295 = vld [vmem:[%s11 + $0x10] sm:$0xf]
      %v1296 = vld [vmem:[%s11 + $0x14] sm:$0xf]
      %v1297 = vld [vmem:[%s11 + $0x18] sm:$0xf]
      %v1298 = vld [vmem:[%s11 + $0x1c] sm:$0xf]
      %v1299 = vld [vmem:[%s12] sm:$0x1]
      %v1301 = vlaneseq
      %v1302 = vshrl.u32 %v1301, 7
      %v1303 = vsub.s32 0, %v1302
      %v1304 = vrot.slane %v1299, %v1303
      %v1314 = vunpack.c.l.b16 %v1291
      %v1315 = vunpack.c.l.b16 %v1292
      %v1316 = vunpack.c.l.b16 %v1293
      %v1317 = vunpack.c.l.b16 %v1294
      %v1318 = vunpack.c.l.b16 %v1295
      %v1319 = vunpack.c.l.b16 %v1296
      %v1320 = vunpack.c.l.b16 %v1297
      %v1321 = vunpack.c.l.b16 %v1298
      %v1322 = vpack.c.b16 %v1315, %v1314
      %v1323 = vpack.c.b16 %v1317, %v1316
      %v1324 = vpack.c.b16 %v1319, %v1318
      %v1325 = vpack.c.b16 %v1321, %v1320
      %vm1330 = vcmask 523264
      %v1332 = vsel %vm1330, %v1290, 0
      %1334 = vmatprep.subr.bf16.mxu0 0
      %1335 = vmatpush1.bf16.msra.mxu0 %v1322
      %1336 = vmatprep.subr.bf16.mxu0 0
      %1337 = vmatpush1.bf16.msra.mxu0 %v1323
      %1338 = vmatprep.subr.bf16.mxu0 0
      %1339 = vmatpush1.bf16.msra.mxu0 %v1324
      %1340 = vmatprep.subr.bf16.mxu0 0
      %1341 = vmatpush1.bf16.msra.mxu0 %v1325
      %1342 = vmatprep.subr.bf16.mxu0 0
      %1343 = vmatpush1.bf16.msra.mxu0 0
      %1344 = vmatprep.subr.bf16.mxu0 0
      %1345 = vmatpush1.bf16.msra.mxu0 0
      %1346 = vmatprep.subr.bf16.mxu0 0
      %1347 = vmatpush1.bf16.msra.mxu0 0
      %1348 = vmatprep.subr.bf16.mxu0 0
      %1349 = vmatpush1.bf16.msra.mxu0 0
      %1350 = vmatprep.subr.bf16.mxu0 0
      %1351 = vmatpush1.bf16.msra.mxu0 0
      %1352 = vmatprep.subr.bf16.mxu0 0
      %1353 = vmatpush1.bf16.msra.mxu0 0
      %1354 = vmatprep.subr.bf16.mxu0 0
      %1355 = vmatpush1.bf16.msra.mxu0 0
      %1356 = vmatprep.subr.bf16.mxu0 0
      %1357 = vmatpush1.bf16.msra.mxu0 0
      %1358 = vmatprep.subr.bf16.mxu0 0
      %1359 = vmatpush1.bf16.msra.mxu0 0
      %1360 = vmatprep.subr.bf16.mxu0 0
      %1361 = vmatpush1.bf16.msra.mxu0 0
      %1362 = vmatprep.subr.bf16.mxu0 0
      %1363 = vmatpush1.bf16.msra.mxu0 0
      %1364 = vmatprep.subr.bf16.mxu0 0
      %1365 = vmatpush1.bf16.msra.mxu0 0
      %1366 = vmatprep.mubr.bf16.mxu0 0
      %1367 = vmatmul.mubr.bf16.gmra.mrb[0].mxu0 %v1332
      %v1368 = vpop.f32.mrb[0].mxu0
      %v1369 = vadd.f32 %v1304, %v1368
      %v1370 = vpop.f32.mrb[0].mxu0
      %v1371 = vpop.f32.mrb[0].mxu0
      %v1372 = vadd.f32 %v1304, %v1371
      %v1373 = vpop.f32.mrb[0].mxu0
      %1374 = vdwg.mxu0
      %v1375 = vadd.f32 %v1369, %v1218
      %v1376 = vadd.f32 %v1372, %v1219
      %v1377 = vsel %vm566, %v1375, 0.0
      %1378 = vadd.xlane.f32.xlu0 %v1377
      %v1379 = vpop.xlane.xlu0 %1378
      %v1380 = vsel %vm566, %v1376, 0.0
      %1381 = vadd.xlane.f32.xlu0 %v1380
      %v1382 = vpop.xlane.xlu0 %1381
      %v1383 = vmul.f32 %v1379, %v1169
      %v1384 = vmul.f32 %v1382, %v1169
      %v1385 = vsub.f32 %v1375, %v1383
      %v1386 = vsub.f32 %v1376, %v1384
      %v1387 = vmul.f32 %v1385, %v1385
      %v1388 = vmul.f32 %v1386, %v1386
      %v1389 = vsel %vm566, %v1387, 0.0
      %1390 = vadd.xlane.f32.xlu0 %v1389
      %v1391 = vpop.xlane.xlu0 %1390
      %v1392 = vsel %vm566, %v1388, 0.0
      %1393 = vadd.xlane.f32.xlu0 %v1392
      %v1394 = vpop.xlane.xlu0 %1393
      %v1395 = vmul.f32 %v1391, %v1169
      %v1396 = vmul.f32 %v1394, %v1169
      %v1397 = vadd.f32 %v1395, 1e-05
      %v1398 = vadd.f32 %v1396, 1e-05
      %v1399 = vrsqrt.pop %v1397
      %v1400 = vrsqrt.pop %v1398
      %v1401 = vmul.f32 %v1385, %v1399
      %v1402 = vmul.f32 %v1386, %v1400
      %v1403 = vld [vmem:[%s13] sm:$0x1]
      %v1405 = vlaneseq
      %v1406 = vshrl.u32 %v1405, 7
      %v1407 = vsub.s32 0, %v1406
      %v1408 = vrot.slane %v1403, %v1407
      %v1410 = vmul.f32 %v1401, %v1408
      %v1411 = vmul.f32 %v1402, %v1408
      %v1412 = vld [vmem:[%s14] sm:$0x1]
      %v1414 = vlaneseq
      %v1415 = vshrl.u32 %v1414, 7
      %v1416 = vsub.s32 0, %v1415
      %v1417 = vrot.slane %v1412, %v1416
      %v1419 = vadd.f32 %v1410, %v1417
      %v1420 = vadd.f32 %v1411, %v1417
      %v1421 = vmul.f32 %v1419, %v1211
      %v1422 = vmul.f32 %v1420, %v1216
      %1423 = vst.msk [vmem:[%s537] sm:$0xff] %vm566, %v1421
      %1424 = vst.msk [vmem:[%s537 + $0x8] sm:$0xff] %vm566, %v1422
      %s1425 = smul.u32 2, %s26
      %p1426 = scmp.lt.s32.totalorder %s1425, 3
      %s1427 = scalar_select %p1426, %s1425, 3
      %s1428 = smul.addr %s1427, 8
      %s1429 = scalar_lea.vmem %s15, %s1428
      // Predicated region
      $region81: #{graph_encoder_forward.3} parent=79 // pred_check
        %p1430 = pneg %p374
      $region82: #{graph_encoder_forward.3} parent=79 // pred_check_branch
        %1432 = sbr.rel (%p1430) target = $region84
      $region83: #{graph_encoder_forward.3} parent=79 // pred_region
        %s1433 = smul.u32 2, %s26
      $region84: #{graph_encoder_forward.3} parent=79 // pred_fallthru
        _
    $region80: #{graph_encoder_forward.3} parent=5 // pred_fallthru
      _
    %p1434 = scmp.le.s32.totalorder 2, %s21
    // Predicated region
    $region85: #{graph_encoder_forward.3} parent=5 // pred_check
      %p1435 = pneg %p1434
    $region86: #{graph_encoder_forward.3} parent=5 // pred_check_branch
      %1437 = sbr.rel (%p1435) target = $region88
    $region87: #{graph_encoder_forward.3} parent=5 // pred_region
      %s1438 = ssub.s32 %s21, 2
      // Predicated region
      $region89: #{graph_encoder_forward.3} parent=87 // pred_check
        %p1439 = pneg %p380
      $region90: #{graph_encoder_forward.3} parent=87 // pred_check_branch
        %1441 = sbr.rel (%p1439) target = $region92
      $region91: #{graph_encoder_forward.3} parent=87 // pred_region
        %s1442 = smul.u32 2, %s27
        %p1443 = scmp.lt.s32.totalorder %s1442, 3
        %s1444 = scalar_select %p1443, %s1442, 3
        %s1445 = smul.addr %s1444, 8
        %s1446 = scalar_lea.vmem %s15, %s1445
      $region92: #{graph_encoder_forward.3} parent=87 // pred_fallthru
        _
    $region88: #{graph_encoder_forward.3} parent=5 // pred_fallthru
      _
  $region6: #{graph_encoder_forward.3} parent=0 // loop_footer
    %s25 = sadd.s32 1, %s21
  $region7: #{graph_encoder_forward.3} parent=0 // loop_footer_branch
    %20 = sbr.rel target = $region3
  $region8: #{graph_encoder_forward.3} parent=0 // loop_exit
    _

</llo_original>
